<compile_context>
chip_gen: v6e
topology: v6e:2x2x1
jax: 0.10.0
libtpu: 0.0.40
codegen_flags: <defaults>
</compile_context>

<pallas_src>
import math

import numpy as np
import jax
import jax.numpy as jnp
from jax.experimental import pallas as pl
from jax.experimental.pallas import tpu as pltpu

_KSIZE = 3
_CPAD = 8                      # channel padding multiple (f32 sublane multiple)


def _pad_to(c, m=_CPAD):
    return ((c + m - 1) // m) * m


def _resize_mode(l_src, l_tgt):
    if l_src == l_tgt:
        return ("id", 1)
    if l_src % l_tgt == 0:
        return ("down", l_src // l_tgt)
    if l_tgt % l_src == 0:
        return ("up", l_tgt // l_src)
    # TODO(synk): non power-of-two nearest resize would need an in-kernel gather.
    raise NotImplementedError(f"nearest resize {l_src}->{l_tgt}: ratio not integral")


# ---------------------------------------------------------------------------
# Plan builder: flatten the dense-skip net into static layer descriptors plus
# pre-transposed / channel-padded parameter arrays (all numpy at trace time).
# ---------------------------------------------------------------------------
def _build_plan(params, in_channels, seq_len):
    acts = [(in_channels, _pad_to(in_channels), seq_len)]   # (C_real, C_pad, L)
    skip_ids = []
    flat, meta = [], []

    def add_arr(a):
        flat.append(a)
        return len(flat) - 1

    def add_layer(p, source_ids, l_tgt, stride, pad, k, relu, upsample):
        w = np.asarray(p["w"], np.float32)          # (C_out, sum C_real, K)
        b = np.asarray(p["b"], np.float32)
        c_out = int(w.shape[0])
        c_out_pad = _pad_to(c_out)

        # Split W per skip source along its input channels, zero-pad each chunk
        # to that source's padded channel count, then pad C_out as well.
        chunks, off = [], 0
        for sid in source_ids:
            c_real, c_pad, _ = acts[sid]
            blk = w[:, off:off + c_real, :]
            off += c_real
            if c_pad > c_real:
                blk = np.concatenate(
                    [blk, np.zeros((c_out, c_pad - c_real, k), np.float32)], axis=1)
            chunks.append(blk)
        assert off == w.shape[1], "weight input-channel mismatch"
        w_pad = np.concatenate(chunks, axis=1) if len(chunks) > 1 else chunks[0]
        if c_out_pad > c_out:
            w_pad = np.concatenate(
                [w_pad, np.zeros((c_out_pad - c_out, w_pad.shape[1], k), np.float32)],
                axis=0)
        c_cat_pad = int(w_pad.shape[1])
        # (C_out_pad, C_cat_pad, K) -> (K*C_cat_pad, C_out_pad); row = k*C_cat_pad + c
        wt = np.transpose(w_pad, (2, 1, 0)).reshape(k * c_cat_pad, c_out_pad)
        b_pad = np.zeros((1, c_out_pad), np.float32)
        b_pad[0, :c_out] = b

        l_conv_in = (2 if upsample else 1) * l_tgt
        l_out = (l_conv_in + 2 * pad - k) // stride + 1
        srcs = [(sid,) + _resize_mode(acts[sid][2], l_tgt) for sid in source_ids]

        meta.append(dict(
            srcs=srcs, up=upsample, stride=stride, pad=pad, k=k,
            l_conv_in=l_conv_in, l_out=l_out, c_cat_pad=c_cat_pad, relu=relu,
            wt=add_arr(jnp.asarray(wt, jnp.bfloat16)),     # bf16 MXU operand
            b=add_arr(jnp.asarray(b_pad, jnp.float32)),    # f32 VPU operand
        ))
        acts.append((c_out, c_out_pad, l_out))
        return len(acts) - 1

    # checkpoint 0: first layer
    cur = add_layer(params["first"], [0], seq_len, 1, 1, _KSIZE, True, False)
    skip_ids.append(cur)
    # down checkpoints (resize skips to current L, stride-2 conv)
    for p in params["down"]:
        cur = add_layer(p, list(skip_ids), acts[cur][2], 2, 1, _KSIZE, True, False)
        skip_ids.append(cur)
    # up checkpoints (resize skips to current L, x2 nearest upsample, conv)
    for p in params["up"]:
        cur = add_layer(p, list(skip_ids), acts[cur][2], 1, 1, _KSIZE, True, True)
        skip_ids.append(cur)
    # dense concat of every skip + OutLayer conv blocks + final 1x1 conv
    cur_len = acts[cur][2]
    cur = add_layer(params["out_blocks"][0], list(skip_ids), cur_len, 1, 1, _KSIZE, True, False)
    for p in params["out_blocks"][1:]:
        cur = add_layer(p, [cur], cur_len, 1, 1, _KSIZE, True, False)
    cur = add_layer(params["out_final"], [cur], cur_len, 1, 0, 1, False, False)

    c_out_real, c_out_pad, l_final = acts[cur]
    return meta, flat, (c_out_real, c_out_pad, l_final), acts[0][1]


# ---------------------------------------------------------------------------
# Fused kernel body: straight-line sublane data movement + one matmul / layer.
# Activations are (L, C_pad): length on sublanes, channels on lanes.
# ---------------------------------------------------------------------------
def _nearest_resize(v, mode, r):
    """Nearest-neighbour resize along the (sublane) length axis of (L, C)."""
    if mode == "id" or r == 1:
        return v
    l, c = v.shape
    if mode == "down":                    # keep every r-th row (phase 0)
        return v.reshape(l // r, r, c)[:, 0, :]
    # "up": repeat each row r times -- broadcast a middle axis, merge it back.
    return jnp.broadcast_to(v[:, None, :], (l, r, c)).reshape(l * r, c)


def _make_kernel(meta):
    def kernel(*refs):
        x_ref, out_ref = refs[0], refs[-1]
        prm = refs[1:-1]
        acts = [x_ref[...]]                       # (L0, C_in_pad) f32
        for m in meta:
            pieces = [_nearest_resize(acts[sid], mode, r)
                      for sid, mode, r in m["srcs"]]
            xc = pieces[0] if len(pieces) == 1 else jnp.concatenate(pieces, axis=1)
            if m["up"]:                           # UpNoCat: nearest x2 upsample
                xc = _nearest_resize(xc, "up", 2)

            k, s, pad = m["k"], m["stride"], m["pad"]
            l_in, l_out, c = m["l_conv_in"], m["l_out"], m["c_cat_pad"]

            if k == 1 and pad == 0 and s == 1:    # final 1x1 conv
                mat = xc
            else:
                # zero-pad along length (sublanes); extra trailing zero rows keep
                # the strided-tap reshape block in bounds for odd lengths.
                rows = max(l_in + 2 * pad, (k - 1) + s * l_out)
                parts = []
                if pad:
                    parts.append(jnp.zeros((pad, c), jnp.float32))
                parts.append(xc)
                if rows - l_in - pad > 0:
                    parts.append(jnp.zeros((rows - l_in - pad, c), jnp.float32))
                xp = jnp.concatenate(parts, axis=0) if len(parts) > 1 else xc
                taps = []
                for ki in range(k):
                    if s == 1:                    # contiguous shifted slice
                        taps.append(xp[ki:ki + l_out, :])
                    else:                         # stride-2 deinterleave: split
                        blk = xp[ki:ki + s * l_out, :]      # sublanes, take phase 0
                        taps.append(blk.reshape(l_out, s, c)[:, 0, :])
                mat = taps[0] if k == 1 else jnp.concatenate(taps, axis=1)

            # single fused MXU matmul per layer: bf16 operands, f32 accumulate
            acc = jnp.dot(mat.astype(jnp.bfloat16), prm[m["wt"]][...],
                          preferred_element_type=jnp.float32)
            acc = acc + prm[m["b"]][...]          # bias / ReLU stay f32 on the VPU
            if m["relu"]:
                acc = jnp.maximum(acc, 0.0)
            acts.append(acc)
        out_ref[...] = acts[-1].astype(out_ref.dtype)
    return kernel


def _zero_index_map(ndim):
    def idx(b):
        return (0,) * ndim
    return idx


def clarification_dense_forward(params, x, invert=False):
    """x: (N, in_channels, L) -> same result as ClarificationDenseOld.forward."""
    n_batch, c_in, seq_len = x.shape
    meta, flat, (c_out_real, c_out_pad, l_final), c_in_pad = _build_plan(
        params, c_in, seq_len)
    kernel = _make_kernel(meta)

    # Length-major layout: L on sublanes, channels on lanes; pad channels to 8.
    xt = jnp.transpose(x.astype(jnp.float32), (0, 2, 1))        # (N, L, C_in)
    if c_in_pad > c_in:
        xt = jnp.pad(xt, ((0, 0), (0, 0), (0, c_in_pad - c_in)))

    out_shape = jax.ShapeDtypeStruct((n_batch, l_final, c_out_pad), jnp.float32)
    out_spec = pl.BlockSpec((None, l_final, c_out_pad), lambda b: (b, 0, 0))
    x_spec = pl.BlockSpec((None, seq_len, c_in_pad), lambda b: (b, 0, 0))
    cparams = pltpu.CompilerParams(
        dimension_semantics=("parallel",),        # batch shards across TCs
        vmem_limit_bytes=32 * 1024 * 1024,
    )

    def run(single_buffer_consts):
        def const_spec(a):
            if single_buffer_consts:
                # never-changing operands: fetched once, no double buffering
                return pl.BlockSpec(a.shape, _zero_index_map(a.ndim),
                                    pipeline_mode=pl.Buffered(1))
            return pl.BlockSpec(a.shape, _zero_index_map(a.ndim))
        in_specs = [x_spec] + [const_spec(a) for a in flat]
        fn = pl.pallas_call(
            kernel, out_shape=out_shape, grid=(n_batch,),
            in_specs=in_specs, out_specs=out_spec, compiler_params=cparams)
        return jax.block_until_ready(fn(xt, *flat))

    try:
        y = run(True)
    except Exception:     # pipeline_mode=Buffered(1) unsupported -> default buffering
        y = run(False)

    y = jnp.transpose(y[..., :c_out_real], (0, 2, 1))           # (N, C_out, L_out)
    # mirror torch: x.squeeze(0).squeeze(0), then optional invert
    if y.shape[0] == 1:
        y = y[0]
    if y.shape[0] == 1:
        y = y[0]
    if invert:
        # TODO(synk): inherited from the torch module -- only shape-valid when
        # the output length matches the input length.
        y = x - y
    return y


# ---------------------------------------------------------------------------
# Parameter construction mirroring ClarificationDenseOld.__init__ (torch layout)
# ---------------------------------------------------------------------------
def build_params(key, in_channels, layer_sizes, num_output_convblocks=2):
    if len(layer_sizes) % 2 == 0:
        raise ValueError("The number of layers must be odd.")
    n = len(layer_sizes)
    n_convs = 1 + n // 2 + (n // 2 - 1) + num_output_convblocks + 1
    keys = iter(jax.random.split(key, n_convs))

    def mk(k, c_in, c_out, ks):
        k1, k2 = jax.random.split(k)
        w = jax.random.normal(k1, (c_out, c_in, ks), jnp.float32) / math.sqrt(c_in * ks)
        # round-trip through bf16 so the kernel (bf16 weights) and the f32 XLA
        # reference see numerically identical weight values.
        w = w.astype(jnp.bfloat16).astype(jnp.float32)
        b = jax.random.normal(k2, (c_out,), jnp.float32) * 0.01
        return {"w": w, "b": b}

    params = {"first": mk(next(keys), in_channels, layer_sizes[0], 3)}
    output_sizes = [layer_sizes[0]]
    params["down"] = []
    for i in range(n // 2):
        c_in, c_out = sum(output_sizes), layer_sizes[i + 1]
        output_sizes.append(c_out)
        params["down"].append(mk(next(keys), c_in, c_out, 3))
    params["up"] = []
    for i in range(n // 2 - 1):
        c_in, c_out = sum(output_sizes), layer_sizes[n // 2 + i + 1]
        output_sizes.append(c_out)
        params["up"].append(mk(next(keys), c_in, c_out, 3))
    c_in, c_out = sum(output_sizes), layer_sizes[-1]
    out_blocks = [mk(next(keys), c_in, c_out, 3)]
    for _ in range(num_output_convblocks - 1):
        out_blocks.append(mk(next(keys), c_out, c_out, 3))
    params["out_blocks"] = out_blocks
    params["out_final"] = mk(next(keys), c_out, c_out, 1)
    return params


# ---------------------------------------------------------------------------
# Pure-XLA reference (mirrors the PyTorch checkpointed forward) for validation.
# ---------------------------------------------------------------------------
def _conv1d_ref(x, w, b, stride, pad, relu):
    k_size = w.shape[-1]
    xp = jnp.pad(x, ((0, 0), (pad, pad)))
    l_out = (x.shape[-1] + 2 * pad - k_size) // stride + 1
    out = b[:, None]
    for k in range(k_size):
        out = out + jnp.dot(w[:, :, k],
                            xp[:, k: k + stride * (l_out - 1) + 1: stride])
    return jnp.maximum(out, 0.0) if relu else out


def _interp_ref(x, size):
    idx = (jnp.arange(size) * x.shape[-1]) // size
    return jnp.take(x, idx, axis=-1)


def forward_reference(params, x, invert=False):
    xi = x[0]
    h = _conv1d_ref(xi, params["first"]["w"], params["first"]["b"], 1, 1, True)
    outputs, cur = [h], h
    for p in params["down"]:
        z = jnp.concatenate([_interp_ref(o, cur.shape[-1]) for o in outputs], axis=0)
        cur = _conv1d_ref(z, p["w"], p["b"], 2, 1, True)
        outputs.append(cur)
    for p in params["up"]:
        z = jnp.concatenate([_interp_ref(o, cur.shape[-1]) for o in outputs], axis=0)
        z = _interp_ref(z, z.shape[-1] * 2)
        cur = _conv1d_ref(z, p["w"], p["b"], 1, 1, True)
        outputs.append(cur)
    z = jnp.concatenate([_interp_ref(o, cur.shape[-1]) for o in outputs], axis=0)
    for p in params["out_blocks"]:
        z = _conv1d_ref(z, p["w"], p["b"], 1, 1, True)
    z = _conv1d_ref(z, params["out_final"]["w"], params["out_final"]["b"], 1, 0, False)
    y = z[0]
    if invert:
        y = x - y
    return y


if __name__ == "__main__":
    key = jax.random.PRNGKey(0)
    k_par, k_in = jax.random.split(key)

    in_channels = 4
    seq_len = 16
    layer_sizes = [8, 16, 32, 16, 1]        # odd length: 2 downs, 1 up

    params = build_params(k_par, in_channels, layer_sizes, num_output_convblocks=2)
    x = jax.random.normal(k_in, (1, in_channels, seq_len), jnp.float32)

    y = clarification_dense_forward(params, x, invert=False)
    y = jax.block_until_ready(y)

    y_ref = forward_reference(params, x, invert=False)
    assert y.shape == y_ref.shape == (seq_len // 2,), (y.shape, y_ref.shape)
    assert bool(jnp.all(jnp.isfinite(y)))
    err = float(jnp.max(jnp.abs(y - y_ref)))
    # bf16 matmul operands vs. f32 reference: loosened tolerance
    assert jnp.allclose(y, y_ref, atol=5e-2, rtol=5e-2), f"max abs err {err}"
    print("KERNEL_OK")
</pallas_src>

<mosaic_0001>
module attributes {stable_mosaic.version = 11 : i64} {
  func.func @kernel(%arg0: i32, %arg1: memref<1x16x8xf32, #tpu.memory_space<vmem>>, %arg2: memref<24x8xbf16, #tpu.memory_space<vmem>>, %arg3: memref<1x8xf32, #tpu.memory_space<vmem>>, %arg4: memref<24x16xbf16, #tpu.memory_space<vmem>>, %arg5: memref<1x16xf32, #tpu.memory_space<vmem>>, %arg6: memref<72x32xbf16, #tpu.memory_space<vmem>>, %arg7: memref<1x32xf32, #tpu.memory_space<vmem>>, %arg8: memref<168x16xbf16, #tpu.memory_space<vmem>>, %arg9: memref<1x16xf32, #tpu.memory_space<vmem>>, %arg10: memref<216x8xbf16, #tpu.memory_space<vmem>>, %arg11: memref<1x8xf32, #tpu.memory_space<vmem>>, %arg12: memref<24x8xbf16, #tpu.memory_space<vmem>>, %arg13: memref<1x8xf32, #tpu.memory_space<vmem>>, %arg14: memref<8x8xbf16, #tpu.memory_space<vmem>>, %arg15: memref<1x8xf32, #tpu.memory_space<vmem>>, %arg16: memref<1x8x8xf32, #tpu.memory_space<vmem>>) attributes {dimension_semantics = [#tpu.dimension_semantics<parallel>], iteration_bounds = array<i64: 1>, scalar_prefetch = 0 : i64, scratch_operands = 0 : i64, tpu.core_type = #tpu.core_type<tc>, window_params = [{transform_indices = @transform_0, window_bounds = array<i64: 1, 16, 8>}, {pipeline_mode = #tpu.pipeline_mode<synchronous>, transform_indices = @transform_1, window_bounds = array<i64: 24, 8>}, {pipeline_mode = #tpu.pipeline_mode<synchronous>, transform_indices = @transform_2, window_bounds = array<i64: 1, 8>}, {pipeline_mode = #tpu.pipeline_mode<synchronous>, transform_indices = @transform_3, window_bounds = array<i64: 24, 16>}, {pipeline_mode = #tpu.pipeline_mode<synchronous>, transform_indices = @transform_4, window_bounds = array<i64: 1, 16>}, {pipeline_mode = #tpu.pipeline_mode<synchronous>, transform_indices = @transform_5, window_bounds = array<i64: 72, 32>}, {pipeline_mode = #tpu.pipeline_mode<synchronous>, transform_indices = @transform_6, window_bounds = array<i64: 1, 32>}, {pipeline_mode = #tpu.pipeline_mode<synchronous>, transform_indices = @transform_7, window_bounds = array<i64: 168, 16>}, {pipeline_mode = #tpu.pipeline_mode<synchronous>, transform_indices = @transform_8, window_bounds = array<i64: 1, 16>}, {pipeline_mode = #tpu.pipeline_mode<synchronous>, transform_indices = @transform_9, window_bounds = array<i64: 216, 8>}, {pipeline_mode = #tpu.pipeline_mode<synchronous>, transform_indices = @transform_10, window_bounds = array<i64: 1, 8>}, {pipeline_mode = #tpu.pipeline_mode<synchronous>, transform_indices = @transform_11, window_bounds = array<i64: 24, 8>}, {pipeline_mode = #tpu.pipeline_mode<synchronous>, transform_indices = @transform_12, window_bounds = array<i64: 1, 8>}, {pipeline_mode = #tpu.pipeline_mode<synchronous>, transform_indices = @transform_13, window_bounds = array<i64: 8, 8>}, {pipeline_mode = #tpu.pipeline_mode<synchronous>, transform_indices = @transform_14, window_bounds = array<i64: 1, 8>}, {transform_indices = @transform_15, window_bounds = array<i64: 1, 8, 8>}]} {
    %c0 = arith.constant 0 : index
    %c0_0 = arith.constant 0 : index
    %c0_1 = arith.constant 0 : index
    %0 = vector.load %arg1[%c0, %c0_0, %c0_1] : memref<1x16x8xf32, #tpu.memory_space<vmem>>, vector<1x16x8xf32>
    %1 = vector.shape_cast %0 : vector<1x16x8xf32> to vector<16x8xf32>
    %cst = arith.constant 0.000000e+00 : f32
    %2 = vector.broadcast %cst : f32 to vector<1x8xf32>
    %cst_2 = arith.constant 0.000000e+00 : f32
    %3 = vector.broadcast %cst_2 : f32 to vector<1x8xf32>
    %4 = tpu.concatenate %2, %1, %3 in 0 : vector<1x8xf32>, vector<16x8xf32>, vector<1x8xf32> -> vector<18x8xf32>
    %5 = vector.extract_strided_slice %4 {offsets = [0, 0], sizes = [16, 8], strides = [1, 1]} : vector<18x8xf32> to vector<16x8xf32>
    %6 = vector.extract_strided_slice %4 {offsets = [1, 0], sizes = [16, 8], strides = [1, 1]} : vector<18x8xf32> to vector<16x8xf32>
    %7 = vector.extract_strided_slice %4 {offsets = [2, 0], sizes = [16, 8], strides = [1, 1]} : vector<18x8xf32> to vector<16x8xf32>
    %8 = tpu.concatenate %5, %6, %7 in 1 : vector<16x8xf32>, vector<16x8xf32>, vector<16x8xf32> -> vector<16x24xf32>
    %9 = arith.truncf %8 : vector<16x24xf32> to vector<16x24xbf16>
    %c0_3 = arith.constant 0 : index
    %c0_4 = arith.constant 0 : index
    %10 = vector.load %arg2[%c0_3, %c0_4] : memref<24x8xbf16, #tpu.memory_space<vmem>>, vector<24x8xbf16>
    %cst_5 = arith.constant dense<0.000000e+00> : vector<16x8xf32>
    %11 = tpu.matmul %9, %10, %cst_5 {dimension_numbers = #tpu.dot_dimension_numbers<[1], [0], [0], [1], [0, 0, 1, 1], [], []>} : vector<16x24xbf16>, vector<24x8xbf16>, vector<16x8xf32> -> vector<16x8xf32>
    %c0_6 = arith.constant 0 : index
    %c0_7 = arith.constant 0 : index
    %12 = vector.load %arg3[%c0_6, %c0_7] : memref<1x8xf32, #tpu.memory_space<vmem>>, vector<1x8xf32>
    %13 = vector.broadcast %12 : vector<1x8xf32> to vector<16x8xf32>
    %14 = arith.addf %11, %13 : vector<16x8xf32>
    %cst_8 = arith.constant 0.000000e+00 : f32
    %15 = vector.broadcast %cst_8 : f32 to vector<16x8xf32>
    %16 = arith.maximumf %14, %15 : vector<16x8xf32>
    %cst_9 = arith.constant 0.000000e+00 : f32
    %17 = vector.broadcast %cst_9 : f32 to vector<1x8xf32>
    %cst_10 = arith.constant 0.000000e+00 : f32
    %18 = vector.broadcast %cst_10 : f32 to vector<1x8xf32>
    %19 = tpu.concatenate %17, %16, %18 in 0 : vector<1x8xf32>, vector<16x8xf32>, vector<1x8xf32> -> vector<18x8xf32>
    %20 = vector.extract_strided_slice %19 {offsets = [0, 0], sizes = [16, 8], strides = [1, 1]} : vector<18x8xf32> to vector<16x8xf32>
    %21 = vector.shape_cast %20 : vector<16x8xf32> to vector<8x2x8xf32>
    %22 = vector.extract_strided_slice %21 {offsets = [0, 0, 0], sizes = [8, 1, 8], strides = [1, 1, 1]} : vector<8x2x8xf32> to vector<8x1x8xf32>
    %23 = vector.shape_cast %22 : vector<8x1x8xf32> to vector<8x8xf32>
    %24 = vector.extract_strided_slice %19 {offsets = [1, 0], sizes = [16, 8], strides = [1, 1]} : vector<18x8xf32> to vector<16x8xf32>
    %25 = vector.shape_cast %24 : vector<16x8xf32> to vector<8x2x8xf32>
    %26 = vector.extract_strided_slice %25 {offsets = [0, 0, 0], sizes = [8, 1, 8], strides = [1, 1, 1]} : vector<8x2x8xf32> to vector<8x1x8xf32>
    %27 = vector.shape_cast %26 : vector<8x1x8xf32> to vector<8x8xf32>
    %28 = vector.extract_strided_slice %19 {offsets = [2, 0], sizes = [16, 8], strides = [1, 1]} : vector<18x8xf32> to vector<16x8xf32>
    %29 = vector.shape_cast %28 : vector<16x8xf32> to vector<8x2x8xf32>
    %30 = vector.extract_strided_slice %29 {offsets = [0, 0, 0], sizes = [8, 1, 8], strides = [1, 1, 1]} : vector<8x2x8xf32> to vector<8x1x8xf32>
    %31 = vector.shape_cast %30 : vector<8x1x8xf32> to vector<8x8xf32>
    %32 = tpu.concatenate %23, %27, %31 in 1 : vector<8x8xf32>, vector<8x8xf32>, vector<8x8xf32> -> vector<8x24xf32>
    %33 = arith.truncf %32 : vector<8x24xf32> to vector<8x24xbf16>
    %c0_11 = arith.constant 0 : index
    %c0_12 = arith.constant 0 : index
    %34 = vector.load %arg4[%c0_11, %c0_12] : memref<24x16xbf16, #tpu.memory_space<vmem>>, vector<24x16xbf16>
    %cst_13 = arith.constant dense<0.000000e+00> : vector<8x16xf32>
    %35 = tpu.matmul %33, %34, %cst_13 {dimension_numbers = #tpu.dot_dimension_numbers<[1], [0], [0], [1], [0, 0, 1, 1], [], []>} : vector<8x24xbf16>, vector<24x16xbf16>, vector<8x16xf32> -> vector<8x16xf32>
    %c0_14 = arith.constant 0 : index
    %c0_15 = arith.constant 0 : index
    %36 = vector.load %arg5[%c0_14, %c0_15] : memref<1x16xf32, #tpu.memory_space<vmem>>, vector<1x16xf32>
    %37 = vector.broadcast %36 : vector<1x16xf32> to vector<8x16xf32>
    %38 = arith.addf %35, %37 : vector<8x16xf32>
    %cst_16 = arith.constant 0.000000e+00 : f32
    %39 = vector.broadcast %cst_16 : f32 to vector<8x16xf32>
    %40 = arith.maximumf %38, %39 : vector<8x16xf32>
    %41 = vector.shape_cast %16 : vector<16x8xf32> to vector<8x2x8xf32>
    %42 = vector.extract_strided_slice %41 {offsets = [0, 0, 0], sizes = [8, 1, 8], strides = [1, 1, 1]} : vector<8x2x8xf32> to vector<8x1x8xf32>
    %43 = vector.shape_cast %42 : vector<8x1x8xf32> to vector<8x8xf32>
    %44 = tpu.concatenate %43, %40 in 1 : vector<8x8xf32>, vector<8x16xf32> -> vector<8x24xf32>
    %cst_17 = arith.constant 0.000000e+00 : f32
    %45 = vector.broadcast %cst_17 : f32 to vector<1x24xf32>
    %cst_18 = arith.constant 0.000000e+00 : f32
    %46 = vector.broadcast %cst_18 : f32 to vector<1x24xf32>
    %47 = tpu.concatenate %45, %44, %46 in 0 : vector<1x24xf32>, vector<8x24xf32>, vector<1x24xf32> -> vector<10x24xf32>
    %48 = vector.extract_strided_slice %47 {offsets = [0, 0], sizes = [8, 24], strides = [1, 1]} : vector<10x24xf32> to vector<8x24xf32>
    %49 = vector.shape_cast %48 : vector<8x24xf32> to vector<4x2x24xf32>
    %50 = vector.extract_strided_slice %49 {offsets = [0, 0, 0], sizes = [4, 1, 24], strides = [1, 1, 1]} : vector<4x2x24xf32> to vector<4x1x24xf32>
    %51 = vector.shape_cast %50 : vector<4x1x24xf32> to vector<4x24xf32>
    %52 = vector.extract_strided_slice %47 {offsets = [1, 0], sizes = [8, 24], strides = [1, 1]} : vector<10x24xf32> to vector<8x24xf32>
    %53 = vector.shape_cast %52 : vector<8x24xf32> to vector<4x2x24xf32>
    %54 = vector.extract_strided_slice %53 {offsets = [0, 0, 0], sizes = [4, 1, 24], strides = [1, 1, 1]} : vector<4x2x24xf32> to vector<4x1x24xf32>
    %55 = vector.shape_cast %54 : vector<4x1x24xf32> to vector<4x24xf32>
    %56 = vector.extract_strided_slice %47 {offsets = [2, 0], sizes = [8, 24], strides = [1, 1]} : vector<10x24xf32> to vector<8x24xf32>
    %57 = vector.shape_cast %56 : vector<8x24xf32> to vector<4x2x24xf32>
    %58 = vector.extract_strided_slice %57 {offsets = [0, 0, 0], sizes = [4, 1, 24], strides = [1, 1, 1]} : vector<4x2x24xf32> to vector<4x1x24xf32>
    %59 = vector.shape_cast %58 : vector<4x1x24xf32> to vector<4x24xf32>
    %60 = tpu.concatenate %51, %55, %59 in 1 : vector<4x24xf32>, vector<4x24xf32>, vector<4x24xf32> -> vector<4x72xf32>
    %61 = arith.truncf %60 : vector<4x72xf32> to vector<4x72xbf16>
    %c0_19 = arith.constant 0 : index
    %c0_20 = arith.constant 0 : index
    %62 = vector.load %arg6[%c0_19, %c0_20] : memref<72x32xbf16, #tpu.memory_space<vmem>>, vector<72x32xbf16>
    %cst_21 = arith.constant dense<0.000000e+00> : vector<4x32xf32>
    %63 = tpu.matmul %61, %62, %cst_21 {dimension_numbers = #tpu.dot_dimension_numbers<[1], [0], [0], [1], [0, 0, 1, 1], [], []>} : vector<4x72xbf16>, vector<72x32xbf16>, vector<4x32xf32> -> vector<4x32xf32>
    %c0_22 = arith.constant 0 : index
    %c0_23 = arith.constant 0 : index
    %64 = vector.load %arg7[%c0_22, %c0_23] : memref<1x32xf32, #tpu.memory_space<vmem>>, vector<1x32xf32>
    %65 = vector.broadcast %64 : vector<1x32xf32> to vector<4x32xf32>
    %66 = arith.addf %63, %65 : vector<4x32xf32>
    %cst_24 = arith.constant 0.000000e+00 : f32
    %67 = vector.broadcast %cst_24 : f32 to vector<4x32xf32>
    %68 = arith.maximumf %66, %67 : vector<4x32xf32>
    %69 = vector.shape_cast %16 : vector<16x8xf32> to vector<4x4x8xf32>
    %70 = vector.extract_strided_slice %69 {offsets = [0, 0, 0], sizes = [4, 1, 8], strides = [1, 1, 1]} : vector<4x4x8xf32> to vector<4x1x8xf32>
    %71 = vector.shape_cast %70 : vector<4x1x8xf32> to vector<4x8xf32>
    %72 = vector.shape_cast %40 : vector<8x16xf32> to vector<4x2x16xf32>
    %73 = vector.extract_strided_slice %72 {offsets = [0, 0, 0], sizes = [4, 1, 16], strides = [1, 1, 1]} : vector<4x2x16xf32> to vector<4x1x16xf32>
    %74 = vector.shape_cast %73 : vector<4x1x16xf32> to vector<4x16xf32>
    %75 = tpu.concatenate %71, %74, %68 in 1 : vector<4x8xf32>, vector<4x16xf32>, vector<4x32xf32> -> vector<4x56xf32>
    %76 = vector.shape_cast %75 : vector<4x56xf32> to vector<4x1x56xf32>
    %77 = vector.shape_cast %76 : vector<4x1x56xf32> to vector<4x1x56xf32>
    %78 = vector.broadcast %77 : vector<4x1x56xf32> to vector<4x2x56xf32>
    %79 = vector.shape_cast %78 : vector<4x2x56xf32> to vector<8x56xf32>
    %cst_25 = arith.constant 0.000000e+00 : f32
    %80 = vector.broadcast %cst_25 : f32 to vector<1x56xf32>
    %cst_26 = arith.constant 0.000000e+00 : f32
    %81 = vector.broadcast %cst_26 : f32 to vector<1x56xf32>
    %82 = tpu.concatenate %80, %79, %81 in 0 : vector<1x56xf32>, vector<8x56xf32>, vector<1x56xf32> -> vector<10x56xf32>
    %83 = vector.extract_strided_slice %82 {offsets = [0, 0], sizes = [8, 56], strides = [1, 1]} : vector<10x56xf32> to vector<8x56xf32>
    %84 = vector.extract_strided_slice %82 {offsets = [1, 0], sizes = [8, 56], strides = [1, 1]} : vector<10x56xf32> to vector<8x56xf32>
    %85 = vector.extract_strided_slice %82 {offsets = [2, 0], sizes = [8, 56], strides = [1, 1]} : vector<10x56xf32> to vector<8x56xf32>
    %86 = tpu.concatenate %83, %84, %85 in 1 : vector<8x56xf32>, vector<8x56xf32>, vector<8x56xf32> -> vector<8x168xf32>
    %87 = arith.truncf %86 : vector<8x168xf32> to vector<8x168xbf16>
    %c0_27 = arith.constant 0 : index
    %c0_28 = arith.constant 0 : index
    %88 = vector.load %arg8[%c0_27, %c0_28] : memref<168x16xbf16, #tpu.memory_space<vmem>>, vector<168x16xbf16>
    %cst_29 = arith.constant dense<0.000000e+00> : vector<8x16xf32>
    %89 = tpu.matmul %87, %88, %cst_29 {dimension_numbers = #tpu.dot_dimension_numbers<[1], [0], [0], [1], [0, 0, 1, 1], [], []>} : vector<8x168xbf16>, vector<168x16xbf16>, vector<8x16xf32> -> vector<8x16xf32>
    %c0_30 = arith.constant 0 : index
    %c0_31 = arith.constant 0 : index
    %90 = vector.load %arg9[%c0_30, %c0_31] : memref<1x16xf32, #tpu.memory_space<vmem>>, vector<1x16xf32>
    %91 = vector.broadcast %90 : vector<1x16xf32> to vector<8x16xf32>
    %92 = arith.addf %89, %91 : vector<8x16xf32>
    %cst_32 = arith.constant 0.000000e+00 : f32
    %93 = vector.broadcast %cst_32 : f32 to vector<8x16xf32>
    %94 = arith.maximumf %92, %93 : vector<8x16xf32>
    %95 = vector.shape_cast %16 : vector<16x8xf32> to vector<8x2x8xf32>
    %96 = vector.extract_strided_slice %95 {offsets = [0, 0, 0], sizes = [8, 1, 8], strides = [1, 1, 1]} : vector<8x2x8xf32> to vector<8x1x8xf32>
    %97 = vector.shape_cast %96 : vector<8x1x8xf32> to vector<8x8xf32>
    %98 = vector.shape_cast %68 : vector<4x32xf32> to vector<4x1x32xf32>
    %99 = vector.shape_cast %98 : vector<4x1x32xf32> to vector<4x1x32xf32>
    %100 = vector.broadcast %99 : vector<4x1x32xf32> to vector<4x2x32xf32>
    %101 = vector.shape_cast %100 : vector<4x2x32xf32> to vector<8x32xf32>
    %102 = tpu.concatenate %97, %40, %101, %94 in 1 : vector<8x8xf32>, vector<8x16xf32>, vector<8x32xf32>, vector<8x16xf32> -> vector<8x72xf32>
    %cst_33 = arith.constant 0.000000e+00 : f32
    %103 = vector.broadcast %cst_33 : f32 to vector<1x72xf32>
    %cst_34 = arith.constant 0.000000e+00 : f32
    %104 = vector.broadcast %cst_34 : f32 to vector<1x72xf32>
    %105 = tpu.concatenate %103, %102, %104 in 0 : vector<1x72xf32>, vector<8x72xf32>, vector<1x72xf32> -> vector<10x72xf32>
    %106 = vector.extract_strided_slice %105 {offsets = [0, 0], sizes = [8, 72], strides = [1, 1]} : vector<10x72xf32> to vector<8x72xf32>
    %107 = vector.extract_strided_slice %105 {offsets = [1, 0], sizes = [8, 72], strides = [1, 1]} : vector<10x72xf32> to vector<8x72xf32>
    %108 = vector.extract_strided_slice %105 {offsets = [2, 0], sizes = [8, 72], strides = [1, 1]} : vector<10x72xf32> to vector<8x72xf32>
    %109 = tpu.concatenate %106, %107, %108 in 1 : vector<8x72xf32>, vector<8x72xf32>, vector<8x72xf32> -> vector<8x216xf32>
    %110 = arith.truncf %109 : vector<8x216xf32> to vector<8x216xbf16>
    %c0_35 = arith.constant 0 : index
    %c0_36 = arith.constant 0 : index
    %111 = vector.load %arg10[%c0_35, %c0_36] : memref<216x8xbf16, #tpu.memory_space<vmem>>, vector<216x8xbf16>
    %cst_37 = arith.constant dense<0.000000e+00> : vector<8x8xf32>
    %112 = tpu.matmul %110, %111, %cst_37 {dimension_numbers = #tpu.dot_dimension_numbers<[1], [0], [0], [1], [0, 0, 1, 1], [], []>} : vector<8x216xbf16>, vector<216x8xbf16>, vector<8x8xf32> -> vector<8x8xf32>
    %c0_38 = arith.constant 0 : index
    %c0_39 = arith.constant 0 : index
    %113 = vector.load %arg11[%c0_38, %c0_39] : memref<1x8xf32, #tpu.memory_space<vmem>>, vector<1x8xf32>
    %114 = vector.broadcast %113 : vector<1x8xf32> to vector<8x8xf32>
    %115 = arith.addf %112, %114 : vector<8x8xf32>
    %cst_40 = arith.constant 0.000000e+00 : f32
    %116 = vector.broadcast %cst_40 : f32 to vector<8x8xf32>
    %117 = arith.maximumf %115, %116 : vector<8x8xf32>
    %cst_41 = arith.constant 0.000000e+00 : f32
    %118 = vector.broadcast %cst_41 : f32 to vector<1x8xf32>
    %cst_42 = arith.constant 0.000000e+00 : f32
    %119 = vector.broadcast %cst_42 : f32 to vector<1x8xf32>
    %120 = tpu.concatenate %118, %117, %119 in 0 : vector<1x8xf32>, vector<8x8xf32>, vector<1x8xf32> -> vector<10x8xf32>
    %121 = vector.extract_strided_slice %120 {offsets = [0, 0], sizes = [8, 8], strides = [1, 1]} : vector<10x8xf32> to vector<8x8xf32>
    %122 = vector.extract_strided_slice %120 {offsets = [1, 0], sizes = [8, 8], strides = [1, 1]} : vector<10x8xf32> to vector<8x8xf32>
    %123 = vector.extract_strided_slice %120 {offsets = [2, 0], sizes = [8, 8], strides = [1, 1]} : vector<10x8xf32> to vector<8x8xf32>
    %124 = tpu.concatenate %121, %122, %123 in 1 : vector<8x8xf32>, vector<8x8xf32>, vector<8x8xf32> -> vector<8x24xf32>
    %125 = arith.truncf %124 : vector<8x24xf32> to vector<8x24xbf16>
    %c0_43 = arith.constant 0 : index
    %c0_44 = arith.constant 0 : index
    %126 = vector.load %arg12[%c0_43, %c0_44] : memref<24x8xbf16, #tpu.memory_space<vmem>>, vector<24x8xbf16>
    %cst_45 = arith.constant dense<0.000000e+00> : vector<8x8xf32>
    %127 = tpu.matmul %125, %126, %cst_45 {dimension_numbers = #tpu.dot_dimension_numbers<[1], [0], [0], [1], [0, 0, 1, 1], [], []>} : vector<8x24xbf16>, vector<24x8xbf16>, vector<8x8xf32> -> vector<8x8xf32>
    %c0_46 = arith.constant 0 : index
    %c0_47 = arith.constant 0 : index
    %128 = vector.load %arg13[%c0_46, %c0_47] : memref<1x8xf32, #tpu.memory_space<vmem>>, vector<1x8xf32>
    %129 = vector.broadcast %128 : vector<1x8xf32> to vector<8x8xf32>
    %130 = arith.addf %127, %129 : vector<8x8xf32>
    %cst_48 = arith.constant 0.000000e+00 : f32
    %131 = vector.broadcast %cst_48 : f32 to vector<8x8xf32>
    %132 = arith.maximumf %130, %131 : vector<8x8xf32>
    %133 = arith.truncf %132 : vector<8x8xf32> to vector<8x8xbf16>
    %c0_49 = arith.constant 0 : index
    %c0_50 = arith.constant 0 : index
    %134 = vector.load %arg14[%c0_49, %c0_50] : memref<8x8xbf16, #tpu.memory_space<vmem>>, vector<8x8xbf16>
    %cst_51 = arith.constant dense<0.000000e+00> : vector<8x8xf32>
    %135 = tpu.matmul %133, %134, %cst_51 {dimension_numbers = #tpu.dot_dimension_numbers<[1], [0], [0], [1], [0, 0, 1, 1], [], []>} : vector<8x8xbf16>, vector<8x8xbf16>, vector<8x8xf32> -> vector<8x8xf32>
    %c0_52 = arith.constant 0 : index
    %c0_53 = arith.constant 0 : index
    %136 = vector.load %arg15[%c0_52, %c0_53] : memref<1x8xf32, #tpu.memory_space<vmem>>, vector<1x8xf32>
    %137 = vector.broadcast %136 : vector<1x8xf32> to vector<8x8xf32>
    %138 = arith.addf %135, %137 : vector<8x8xf32>
    %c0_54 = arith.constant 0 : index
    %c0_55 = arith.constant 0 : index
    %c0_56 = arith.constant 0 : index
    %139 = vector.load %arg16[%c0_54, %c0_55, %c0_56] : memref<1x8x8xf32, #tpu.memory_space<vmem>>, vector<1x8x8xf32>
    %140 = vector.shape_cast %139 : vector<1x8x8xf32> to vector<8x8xf32>
    %141 = vector.shape_cast %138 : vector<8x8xf32> to vector<1x8x8xf32>
    tpu.vector_store %arg16[%c0_54, %c0_55, %c0_56], %141 {strides = array<i32>} : memref<1x8x8xf32, #tpu.memory_space<vmem>>, vector<1x8x8xf32>,
    return
  }
  func.func @transform_0(%arg0: i32) -> (i32, i32, i32) {
    %c0_i32 = arith.constant 0 : i32
    %c0_i32_0 = arith.constant 0 : i32
    %c0_i32_1 = arith.constant 0 : i32
    return %arg0, %c0_i32, %c0_i32_0 : i32, i32, i32
  }
  func.func @transform_1(%arg0: i32) -> (i32, i32) {
    %c0_i32 = arith.constant 0 : i32
    %c0_i32_0 = arith.constant 0 : i32
    %c0_i32_1 = arith.constant 0 : i32
    return %c0_i32, %c0_i32_0 : i32, i32
  }
  func.func @transform_2(%arg0: i32) -> (i32, i32) {
    %c0_i32 = arith.constant 0 : i32
    %c0_i32_0 = arith.constant 0 : i32
    %c0_i32_1 = arith.constant 0 : i32
    return %c0_i32, %c0_i32_0 : i32, i32
  }
  func.func @transform_3(%arg0: i32) -> (i32, i32) {
    %c0_i32 = arith.constant 0 : i32
    %c0_i32_0 = arith.constant 0 : i32
    %c0_i32_1 = arith.constant 0 : i32
    return %c0_i32, %c0_i32_0 : i32, i32
  }
  func.func @transform_4(%arg0: i32) -> (i32, i32) {
    %c0_i32 = arith.constant 0 : i32
    %c0_i32_0 = arith.constant 0 : i32
    %c0_i32_1 = arith.constant 0 : i32
    return %c0_i32, %c0_i32_0 : i32, i32
  }
  func.func @transform_5(%arg0: i32) -> (i32, i32) {
    %c0_i32 = arith.constant 0 : i32
    %c0_i32_0 = arith.constant 0 : i32
    %c0_i32_1 = arith.constant 0 : i32
    return %c0_i32, %c0_i32_0 : i32, i32
  }
  func.func @transform_6(%arg0: i32) -> (i32, i32) {
    %c0_i32 = arith.constant 0 : i32
    %c0_i32_0 = arith.constant 0 : i32
    %c0_i32_1 = arith.constant 0 : i32
    return %c0_i32, %c0_i32_0 : i32, i32
  }
  func.func @transform_7(%arg0: i32) -> (i32, i32) {
    %c0_i32 = arith.constant 0 : i32
    %c0_i32_0 = arith.constant 0 : i32
    %c0_i32_1 = arith.constant 0 : i32
    return %c0_i32, %c0_i32_0 : i32, i32
  }
  func.func @transform_8(%arg0: i32) -> (i32, i32) {
    %c0_i32 = arith.constant 0 : i32
    %c0_i32_0 = arith.constant 0 : i32
    %c0_i32_1 = arith.constant 0 : i32
    return %c0_i32, %c0_i32_0 : i32, i32
  }
  func.func @transform_9(%arg0: i32) -> (i32, i32) {
    %c0_i32 = arith.constant 0 : i32
    %c0_i32_0 = arith.constant 0 : i32
    %c0_i32_1 = arith.constant 0 : i32
    return %c0_i32, %c0_i32_0 : i32, i32
  }
  func.func @transform_10(%arg0: i32) -> (i32, i32) {
    %c0_i32 = arith.constant 0 : i32
    %c0_i32_0 = arith.constant 0 : i32
    %c0_i32_1 = arith.constant 0 : i32
    return %c0_i32, %c0_i32_0 : i32, i32
  }
  func.func @transform_11(%arg0: i32) -> (i32, i32) {
    %c0_i32 = arith.constant 0 : i32
    %c0_i32_0 = arith.constant 0 : i32
    %c0_i32_1 = arith.constant 0 : i32
    return %c0_i32, %c0_i32_0 : i32, i32
  }
  func.func @transform_12(%arg0: i32) -> (i32, i32) {
    %c0_i32 = arith.constant 0 : i32
    %c0_i32_0 = arith.constant 0 : i32
    %c0_i32_1 = arith.constant 0 : i32
    return %c0_i32, %c0_i32_0 : i32, i32
  }
  func.func @transform_13(%arg0: i32) -> (i32, i32) {
    %c0_i32 = arith.constant 0 : i32
    %c0_i32_0 = arith.constant 0 : i32
    %c0_i32_1 = arith.constant 0 : i32
    return %c0_i32, %c0_i32_0 : i32, i32
  }
  func.func @transform_14(%arg0: i32) -> (i32, i32) {
    %c0_i32 = arith.constant 0 : i32
    %c0_i32_0 = arith.constant 0 : i32
    %c0_i32_1 = arith.constant 0 : i32
    return %c0_i32, %c0_i32_0 : i32, i32
  }
  func.func @transform_15(%arg0: i32) -> (i32, i32, i32) {
    %c0_i32 = arith.constant 0 : i32
    %c0_i32_0 = arith.constant 0 : i32
    %c0_i32_1 = arith.constant 0 : i32
    return %arg0, %c0_i32, %c0_i32_0 : i32, i32, i32
  }
}

module attributes {stable_mosaic.version = 11 : i64} {
  func.func @kernel(%arg0: i32, %arg1: memref<1x16x8xf32, #tpu.memory_space<vmem>>, %arg2: memref<24x8xbf16, #tpu.memory_space<vmem>>, %arg3: memref<1x8xf32, #tpu.memory_space<vmem>>, %arg4: memref<24x16xbf16, #tpu.memory_space<vmem>>, %arg5: memref<1x16xf32, #tpu.memory_space<vmem>>, %arg6: memref<72x32xbf16, #tpu.memory_space<vmem>>, %arg7: memref<1x32xf32, #tpu.memory_space<vmem>>, %arg8: memref<168x16xbf16, #tpu.memory_space<vmem>>, %arg9: memref<1x16xf32, #tpu.memory_space<vmem>>, %arg10: memref<216x8xbf16, #tpu.memory_space<vmem>>, %arg11: memref<1x8xf32, #tpu.memory_space<vmem>>, %arg12: memref<24x8xbf16, #tpu.memory_space<vmem>>, %arg13: memref<1x8xf32, #tpu.memory_space<vmem>>, %arg14: memref<8x8xbf16, #tpu.memory_space<vmem>>, %arg15: memref<1x8xf32, #tpu.memory_space<vmem>>, %arg16: memref<1x8x8xf32, #tpu.memory_space<vmem>>) attributes {dimension_semantics = [#tpu.dimension_semantics<parallel>], iteration_bounds = array<i64: 1>, scalar_prefetch = 0 : i64, scratch_operands = 0 : i64, tpu.core_type = #tpu.core_type<tc>, window_params = [{transform_indices = @transform_0, window_bounds = array<i64: 1, 16, 8>}, {pipeline_mode = #tpu.pipeline_mode<synchronous>, transform_indices = @transform_1, window_bounds = array<i64: 24, 8>}, {pipeline_mode = #tpu.pipeline_mode<synchronous>, transform_indices = @transform_2, window_bounds = array<i64: 1, 8>}, {pipeline_mode = #tpu.pipeline_mode<synchronous>, transform_indices = @transform_3, window_bounds = array<i64: 24, 16>}, {pipeline_mode = #tpu.pipeline_mode<synchronous>, transform_indices = @transform_4, window_bounds = array<i64: 1, 16>}, {pipeline_mode = #tpu.pipeline_mode<synchronous>, transform_indices = @transform_5, window_bounds = array<i64: 72, 32>}, {pipeline_mode = #tpu.pipeline_mode<synchronous>, transform_indices = @transform_6, window_bounds = array<i64: 1, 32>}, {pipeline_mode = #tpu.pipeline_mode<synchronous>, transform_indices = @transform_7, window_bounds = array<i64: 168, 16>}, {pipeline_mode = #tpu.pipeline_mode<synchronous>, transform_indices = @transform_8, window_bounds = array<i64: 1, 16>}, {pipeline_mode = #tpu.pipeline_mode<synchronous>, transform_indices = @transform_9, window_bounds = array<i64: 216, 8>}, {pipeline_mode = #tpu.pipeline_mode<synchronous>, transform_indices = @transform_10, window_bounds = array<i64: 1, 8>}, {pipeline_mode = #tpu.pipeline_mode<synchronous>, transform_indices = @transform_11, window_bounds = array<i64: 24, 8>}, {pipeline_mode = #tpu.pipeline_mode<synchronous>, transform_indices = @transform_12, window_bounds = array<i64: 1, 8>}, {pipeline_mode = #tpu.pipeline_mode<synchronous>, transform_indices = @transform_13, window_bounds = array<i64: 8, 8>}, {pipeline_mode = #tpu.pipeline_mode<synchronous>, transform_indices = @transform_14, window_bounds = array<i64: 1, 8>}, {transform_indices = @transform_15, window_bounds = array<i64: 1, 8, 8>}]} {
    %c0 = arith.constant 0 : index
    %c0_0 = arith.constant 0 : index
    %c0_1 = arith.constant 0 : index
    %0 = vector.load %arg1[%c0, %c0_0, %c0_1] : memref<1x16x8xf32, #tpu.memory_space<vmem>>, vector<1x16x8xf32>
    %1 = vector.shape_cast %0 : vector<1x16x8xf32> to vector<16x8xf32>
    %cst = arith.constant 0.000000e+00 : f32
    %2 = vector.broadcast %cst : f32 to vector<1x8xf32>
    %cst_2 = arith.constant 0.000000e+00 : f32
    %3 = vector.broadcast %cst_2 : f32 to vector<1x8xf32>
    %4 = tpu.concatenate %2, %1, %3 in 0 : vector<1x8xf32>, vector<16x8xf32>, vector<1x8xf32> -> vector<18x8xf32>
    %5 = vector.extract_strided_slice %4 {offsets = [0, 0], sizes = [16, 8], strides = [1, 1]} : vector<18x8xf32> to vector<16x8xf32>
    %6 = vector.extract_strided_slice %4 {offsets = [1, 0], sizes = [16, 8], strides = [1, 1]} : vector<18x8xf32> to vector<16x8xf32>
    %7 = vector.extract_strided_slice %4 {offsets = [2, 0], sizes = [16, 8], strides = [1, 1]} : vector<18x8xf32> to vector<16x8xf32>
    %8 = tpu.concatenate %5, %6, %7 in 1 : vector<16x8xf32>, vector<16x8xf32>, vector<16x8xf32> -> vector<16x24xf32>
    %9 = arith.truncf %8 : vector<16x24xf32> to vector<16x24xbf16>
    %c0_3 = arith.constant 0 : index
    %c0_4 = arith.constant 0 : index
    %10 = vector.load %arg2[%c0_3, %c0_4] : memref<24x8xbf16, #tpu.memory_space<vmem>>, vector<24x8xbf16>
    %cst_5 = arith.constant dense<0.000000e+00> : vector<16x8xf32>
    %11 = tpu.matmul %9, %10, %cst_5 {dimension_numbers = #tpu.dot_dimension_numbers<[1], [0], [0], [1], [0, 0, 1, 1], [], []>} : vector<16x24xbf16>, vector<24x8xbf16>, vector<16x8xf32> -> vector<16x8xf32>
    %c0_6 = arith.constant 0 : index
    %c0_7 = arith.constant 0 : index
    %12 = vector.load %arg3[%c0_6, %c0_7] : memref<1x8xf32, #tpu.memory_space<vmem>>, vector<1x8xf32>
    %13 = vector.broadcast %12 : vector<1x8xf32> to vector<16x8xf32>
    %14 = arith.addf %11, %13 : vector<16x8xf32>
    %cst_8 = arith.constant 0.000000e+00 : f32
    %15 = vector.broadcast %cst_8 : f32 to vector<16x8xf32>
    %16 = arith.maximumf %14, %15 : vector<16x8xf32>
    %cst_9 = arith.constant 0.000000e+00 : f32
    %17 = vector.broadcast %cst_9 : f32 to vector<1x8xf32>
    %cst_10 = arith.constant 0.000000e+00 : f32
    %18 = vector.broadcast %cst_10 : f32 to vector<1x8xf32>
    %19 = tpu.concatenate %17, %16, %18 in 0 : vector<1x8xf32>, vector<16x8xf32>, vector<1x8xf32> -> vector<18x8xf32>
    %20 = vector.extract_strided_slice %19 {offsets = [0, 0], sizes = [16, 8], strides = [1, 1]} : vector<18x8xf32> to vector<16x8xf32>
    %21 = vector.shape_cast %20 : vector<16x8xf32> to vector<8x2x8xf32>
    %22 = vector.extract_strided_slice %21 {offsets = [0, 0, 0], sizes = [8, 1, 8], strides = [1, 1, 1]} : vector<8x2x8xf32> to vector<8x1x8xf32>
    %23 = vector.shape_cast %22 : vector<8x1x8xf32> to vector<8x8xf32>
    %24 = vector.extract_strided_slice %19 {offsets = [1, 0], sizes = [16, 8], strides = [1, 1]} : vector<18x8xf32> to vector<16x8xf32>
    %25 = vector.shape_cast %24 : vector<16x8xf32> to vector<8x2x8xf32>
    %26 = vector.extract_strided_slice %25 {offsets = [0, 0, 0], sizes = [8, 1, 8], strides = [1, 1, 1]} : vector<8x2x8xf32> to vector<8x1x8xf32>
    %27 = vector.shape_cast %26 : vector<8x1x8xf32> to vector<8x8xf32>
    %28 = vector.extract_strided_slice %19 {offsets = [2, 0], sizes = [16, 8], strides = [1, 1]} : vector<18x8xf32> to vector<16x8xf32>
    %29 = vector.shape_cast %28 : vector<16x8xf32> to vector<8x2x8xf32>
    %30 = vector.extract_strided_slice %29 {offsets = [0, 0, 0], sizes = [8, 1, 8], strides = [1, 1, 1]} : vector<8x2x8xf32> to vector<8x1x8xf32>
    %31 = vector.shape_cast %30 : vector<8x1x8xf32> to vector<8x8xf32>
    %32 = tpu.concatenate %23, %27, %31 in 1 : vector<8x8xf32>, vector<8x8xf32>, vector<8x8xf32> -> vector<8x24xf32>
    %33 = arith.truncf %32 : vector<8x24xf32> to vector<8x24xbf16>
    %c0_11 = arith.constant 0 : index
    %c0_12 = arith.constant 0 : index
    %34 = vector.load %arg4[%c0_11, %c0_12] : memref<24x16xbf16, #tpu.memory_space<vmem>>, vector<24x16xbf16>
    %cst_13 = arith.constant dense<0.000000e+00> : vector<8x16xf32>
    %35 = tpu.matmul %33, %34, %cst_13 {dimension_numbers = #tpu.dot_dimension_numbers<[1], [0], [0], [1], [0, 0, 1, 1], [], []>} : vector<8x24xbf16>, vector<24x16xbf16>, vector<8x16xf32> -> vector<8x16xf32>
    %c0_14 = arith.constant 0 : index
    %c0_15 = arith.constant 0 : index
    %36 = vector.load %arg5[%c0_14, %c0_15] : memref<1x16xf32, #tpu.memory_space<vmem>>, vector<1x16xf32>
    %37 = vector.broadcast %36 : vector<1x16xf32> to vector<8x16xf32>
    %38 = arith.addf %35, %37 : vector<8x16xf32>
    %cst_16 = arith.constant 0.000000e+00 : f32
    %39 = vector.broadcast %cst_16 : f32 to vector<8x16xf32>
    %40 = arith.maximumf %38, %39 : vector<8x16xf32>
    %41 = vector.shape_cast %16 : vector<16x8xf32> to vector<8x2x8xf32>
    %42 = vector.extract_strided_slice %41 {offsets = [0, 0, 0], sizes = [8, 1, 8], strides = [1, 1, 1]} : vector<8x2x8xf32> to vector<8x1x8xf32>
    %43 = vector.shape_cast %42 : vector<8x1x8xf32> to vector<8x8xf32>
    %44 = tpu.concatenate %43, %40 in 1 : vector<8x8xf32>, vector<8x16xf32> -> vector<8x24xf32>
    %cst_17 = arith.constant 0.000000e+00 : f32
    %45 = vector.broadcast %cst_17 : f32 to vector<1x24xf32>
    %cst_18 = arith.constant 0.000000e+00 : f32
    %46 = vector.broadcast %cst_18 : f32 to vector<1x24xf32>
    %47 = tpu.concatenate %45, %44, %46 in 0 : vector<1x24xf32>, vector<8x24xf32>, vector<1x24xf32> -> vector<10x24xf32>
    %48 = vector.extract_strided_slice %47 {offsets = [0, 0], sizes = [8, 24], strides = [1, 1]} : vector<10x24xf32> to vector<8x24xf32>
    %49 = vector.shape_cast %48 : vector<8x24xf32> to vector<4x2x24xf32>
    %50 = vector.extract_strided_slice %49 {offsets = [0, 0, 0], sizes = [4, 1, 24], strides = [1, 1, 1]} : vector<4x2x24xf32> to vector<4x1x24xf32>
    %51 = vector.shape_cast %50 : vector<4x1x24xf32> to vector<4x24xf32>
    %52 = vector.extract_strided_slice %47 {offsets = [1, 0], sizes = [8, 24], strides = [1, 1]} : vector<10x24xf32> to vector<8x24xf32>
    %53 = vector.shape_cast %52 : vector<8x24xf32> to vector<4x2x24xf32>
    %54 = vector.extract_strided_slice %53 {offsets = [0, 0, 0], sizes = [4, 1, 24], strides = [1, 1, 1]} : vector<4x2x24xf32> to vector<4x1x24xf32>
    %55 = vector.shape_cast %54 : vector<4x1x24xf32> to vector<4x24xf32>
    %56 = vector.extract_strided_slice %47 {offsets = [2, 0], sizes = [8, 24], strides = [1, 1]} : vector<10x24xf32> to vector<8x24xf32>
    %57 = vector.shape_cast %56 : vector<8x24xf32> to vector<4x2x24xf32>
    %58 = vector.extract_strided_slice %57 {offsets = [0, 0, 0], sizes = [4, 1, 24], strides = [1, 1, 1]} : vector<4x2x24xf32> to vector<4x1x24xf32>
    %59 = vector.shape_cast %58 : vector<4x1x24xf32> to vector<4x24xf32>
    %60 = tpu.concatenate %51, %55, %59 in 1 : vector<4x24xf32>, vector<4x24xf32>, vector<4x24xf32> -> vector<4x72xf32>
    %61 = arith.truncf %60 : vector<4x72xf32> to vector<4x72xbf16>
    %c0_19 = arith.constant 0 : index
    %c0_20 = arith.constant 0 : index
    %62 = vector.load %arg6[%c0_19, %c0_20] : memref<72x32xbf16, #tpu.memory_space<vmem>>, vector<72x32xbf16>
    %cst_21 = arith.constant dense<0.000000e+00> : vector<4x32xf32>
    %63 = tpu.matmul %61, %62, %cst_21 {dimension_numbers = #tpu.dot_dimension_numbers<[1], [0], [0], [1], [0, 0, 1, 1], [], []>} : vector<4x72xbf16>, vector<72x32xbf16>, vector<4x32xf32> -> vector<4x32xf32>
    %c0_22 = arith.constant 0 : index
    %c0_23 = arith.constant 0 : index
    %64 = vector.load %arg7[%c0_22, %c0_23] : memref<1x32xf32, #tpu.memory_space<vmem>>, vector<1x32xf32>
    %65 = vector.broadcast %64 : vector<1x32xf32> to vector<4x32xf32>
    %66 = arith.addf %63, %65 : vector<4x32xf32>
    %cst_24 = arith.constant 0.000000e+00 : f32
    %67 = vector.broadcast %cst_24 : f32 to vector<4x32xf32>
    %68 = arith.maximumf %66, %67 : vector<4x32xf32>
    %69 = vector.shape_cast %16 : vector<16x8xf32> to vector<4x4x8xf32>
    %70 = vector.extract_strided_slice %69 {offsets = [0, 0, 0], sizes = [4, 1, 8], strides = [1, 1, 1]} : vector<4x4x8xf32> to vector<4x1x8xf32>
    %71 = vector.shape_cast %70 : vector<4x1x8xf32> to vector<4x8xf32>
    %72 = vector.shape_cast %40 : vector<8x16xf32> to vector<4x2x16xf32>
    %73 = vector.extract_strided_slice %72 {offsets = [0, 0, 0], sizes = [4, 1, 16], strides = [1, 1, 1]} : vector<4x2x16xf32> to vector<4x1x16xf32>
    %74 = vector.shape_cast %73 : vector<4x1x16xf32> to vector<4x16xf32>
    %75 = tpu.concatenate %71, %74, %68 in 1 : vector<4x8xf32>, vector<4x16xf32>, vector<4x32xf32> -> vector<4x56xf32>
    %76 = vector.shape_cast %75 : vector<4x56xf32> to vector<4x1x56xf32>
    %77 = vector.shape_cast %76 : vector<4x1x56xf32> to vector<4x1x56xf32>
    %78 = vector.broadcast %77 : vector<4x1x56xf32> to vector<4x2x56xf32>
    %79 = vector.shape_cast %78 : vector<4x2x56xf32> to vector<8x56xf32>
    %cst_25 = arith.constant 0.000000e+00 : f32
    %80 = vector.broadcast %cst_25 : f32 to vector<1x56xf32>
    %cst_26 = arith.constant 0.000000e+00 : f32
    %81 = vector.broadcast %cst_26 : f32 to vector<1x56xf32>
    %82 = tpu.concatenate %80, %79, %81 in 0 : vector<1x56xf32>, vector<8x56xf32>, vector<1x56xf32> -> vector<10x56xf32>
    %83 = vector.extract_strided_slice %82 {offsets = [0, 0], sizes = [8, 56], strides = [1, 1]} : vector<10x56xf32> to vector<8x56xf32>
    %84 = vector.extract_strided_slice %82 {offsets = [1, 0], sizes = [8, 56], strides = [1, 1]} : vector<10x56xf32> to vector<8x56xf32>
    %85 = vector.extract_strided_slice %82 {offsets = [2, 0], sizes = [8, 56], strides = [1, 1]} : vector<10x56xf32> to vector<8x56xf32>
    %86 = tpu.concatenate %83, %84, %85 in 1 : vector<8x56xf32>, vector<8x56xf32>, vector<8x56xf32> -> vector<8x168xf32>
    %87 = arith.truncf %86 : vector<8x168xf32> to vector<8x168xbf16>
    %c0_27 = arith.constant 0 : index
    %c0_28 = arith.constant 0 : index
    %88 = vector.load %arg8[%c0_27, %c0_28] : memref<168x16xbf16, #tpu.memory_space<vmem>>, vector<168x16xbf16>
    %cst_29 = arith.constant dense<0.000000e+00> : vector<8x16xf32>
    %89 = tpu.matmul %87, %88, %cst_29 {dimension_numbers = #tpu.dot_dimension_numbers<[1], [0], [0], [1], [0, 0, 1, 1], [], []>} : vector<8x168xbf16>, vector<168x16xbf16>, vector<8x16xf32> -> vector<8x16xf32>
    %c0_30 = arith.constant 0 : index
    %c0_31 = arith.constant 0 : index
    %90 = vector.load %arg9[%c0_30, %c0_31] : memref<1x16xf32, #tpu.memory_space<vmem>>, vector<1x16xf32>
    %91 = vector.broadcast %90 : vector<1x16xf32> to vector<8x16xf32>
    %92 = arith.addf %89, %91 : vector<8x16xf32>
    %cst_32 = arith.constant 0.000000e+00 : f32
    %93 = vector.broadcast %cst_32 : f32 to vector<8x16xf32>
    %94 = arith.maximumf %92, %93 : vector<8x16xf32>
    %95 = vector.shape_cast %16 : vector<16x8xf32> to vector<8x2x8xf32>
    %96 = vector.extract_strided_slice %95 {offsets = [0, 0, 0], sizes = [8, 1, 8], strides = [1, 1, 1]} : vector<8x2x8xf32> to vector<8x1x8xf32>
    %97 = vector.shape_cast %96 : vector<8x1x8xf32> to vector<8x8xf32>
    %98 = vector.shape_cast %68 : vector<4x32xf32> to vector<4x1x32xf32>
    %99 = vector.shape_cast %98 : vector<4x1x32xf32> to vector<4x1x32xf32>
    %100 = vector.broadcast %99 : vector<4x1x32xf32> to vector<4x2x32xf32>
    %101 = vector.shape_cast %100 : vector<4x2x32xf32> to vector<8x32xf32>
    %102 = tpu.concatenate %97, %40, %101, %94 in 1 : vector<8x8xf32>, vector<8x16xf32>, vector<8x32xf32>, vector<8x16xf32> -> vector<8x72xf32>
    %cst_33 = arith.constant 0.000000e+00 : f32
    %103 = vector.broadcast %cst_33 : f32 to vector<1x72xf32>
    %cst_34 = arith.constant 0.000000e+00 : f32
    %104 = vector.broadcast %cst_34 : f32 to vector<1x72xf32>
    %105 = tpu.concatenate %103, %102, %104 in 0 : vector<1x72xf32>, vector<8x72xf32>, vector<1x72xf32> -> vector<10x72xf32>
    %106 = vector.extract_strided_slice %105 {offsets = [0, 0], sizes = [8, 72], strides = [1, 1]} : vector<10x72xf32> to vector<8x72xf32>
    %107 = vector.extract_strided_slice %105 {offsets = [1, 0], sizes = [8, 72], strides = [1, 1]} : vector<10x72xf32> to vector<8x72xf32>
    %108 = vector.extract_strided_slice %105 {offsets = [2, 0], sizes = [8, 72], strides = [1, 1]} : vector<10x72xf32> to vector<8x72xf32>
    %109 = tpu.concatenate %106, %107, %108 in 1 : vector<8x72xf32>, vector<8x72xf32>, vector<8x72xf32> -> vector<8x216xf32>
    %110 = arith.truncf %109 : vector<8x216xf32> to vector<8x216xbf16>
    %c0_35 = arith.constant 0 : index
    %c0_36 = arith.constant 0 : index
    %111 = vector.load %arg10[%c0_35, %c0_36] : memref<216x8xbf16, #tpu.memory_space<vmem>>, vector<216x8xbf16>
    %cst_37 = arith.constant dense<0.000000e+00> : vector<8x8xf32>
    %112 = tpu.matmul %110, %111, %cst_37 {dimension_numbers = #tpu.dot_dimension_numbers<[1], [0], [0], [1], [0, 0, 1, 1], [], []>} : vector<8x216xbf16>, vector<216x8xbf16>, vector<8x8xf32> -> vector<8x8xf32>
    %c0_38 = arith.constant 0 : index
    %c0_39 = arith.constant 0 : index
    %113 = vector.load %arg11[%c0_38, %c0_39] : memref<1x8xf32, #tpu.memory_space<vmem>>, vector<1x8xf32>
    %114 = vector.broadcast %113 : vector<1x8xf32> to vector<8x8xf32>
    %115 = arith.addf %112, %114 : vector<8x8xf32>
    %cst_40 = arith.constant 0.000000e+00 : f32
    %116 = vector.broadcast %cst_40 : f32 to vector<8x8xf32>
    %117 = arith.maximumf %115, %116 : vector<8x8xf32>
    %cst_41 = arith.constant 0.000000e+00 : f32
    %118 = vector.broadcast %cst_41 : f32 to vector<1x8xf32>
    %cst_42 = arith.constant 0.000000e+00 : f32
    %119 = vector.broadcast %cst_42 : f32 to vector<1x8xf32>
    %120 = tpu.concatenate %118, %117, %119 in 0 : vector<1x8xf32>, vector<8x8xf32>, vector<1x8xf32> -> vector<10x8xf32>
    %121 = vector.extract_strided_slice %120 {offsets = [0, 0], sizes = [8, 8], strides = [1, 1]} : vector<10x8xf32> to vector<8x8xf32>
    %122 = vector.extract_strided_slice %120 {offsets = [1, 0], sizes = [8, 8], strides = [1, 1]} : vector<10x8xf32> to vector<8x8xf32>
    %123 = vector.extract_strided_slice %120 {offsets = [2, 0], sizes = [8, 8], strides = [1, 1]} : vector<10x8xf32> to vector<8x8xf32>
    %124 = tpu.concatenate %121, %122, %123 in 1 : vector<8x8xf32>, vector<8x8xf32>, vector<8x8xf32> -> vector<8x24xf32>
    %125 = arith.truncf %124 : vector<8x24xf32> to vector<8x24xbf16>
    %c0_43 = arith.constant 0 : index
    %c0_44 = arith.constant 0 : index
    %126 = vector.load %arg12[%c0_43, %c0_44] : memref<24x8xbf16, #tpu.memory_space<vmem>>, vector<24x8xbf16>
    %cst_45 = arith.constant dense<0.000000e+00> : vector<8x8xf32>
    %127 = tpu.matmul %125, %126, %cst_45 {dimension_numbers = #tpu.dot_dimension_numbers<[1], [0], [0], [1], [0, 0, 1, 1], [], []>} : vector<8x24xbf16>, vector<24x8xbf16>, vector<8x8xf32> -> vector<8x8xf32>
    %c0_46 = arith.constant 0 : index
    %c0_47 = arith.constant 0 : index
    %128 = vector.load %arg13[%c0_46, %c0_47] : memref<1x8xf32, #tpu.memory_space<vmem>>, vector<1x8xf32>
    %129 = vector.broadcast %128 : vector<1x8xf32> to vector<8x8xf32>
    %130 = arith.addf %127, %129 : vector<8x8xf32>
    %cst_48 = arith.constant 0.000000e+00 : f32
    %131 = vector.broadcast %cst_48 : f32 to vector<8x8xf32>
    %132 = arith.maximumf %130, %131 : vector<8x8xf32>
    %133 = arith.truncf %132 : vector<8x8xf32> to vector<8x8xbf16>
    %c0_49 = arith.constant 0 : index
    %c0_50 = arith.constant 0 : index
    %134 = vector.load %arg14[%c0_49, %c0_50] : memref<8x8xbf16, #tpu.memory_space<vmem>>, vector<8x8xbf16>
    %cst_51 = arith.constant dense<0.000000e+00> : vector<8x8xf32>
    %135 = tpu.matmul %133, %134, %cst_51 {dimension_numbers = #tpu.dot_dimension_numbers<[1], [0], [0], [1], [0, 0, 1, 1], [], []>} : vector<8x8xbf16>, vector<8x8xbf16>, vector<8x8xf32> -> vector<8x8xf32>
    %c0_52 = arith.constant 0 : index
    %c0_53 = arith.constant 0 : index
    %136 = vector.load %arg15[%c0_52, %c0_53] : memref<1x8xf32, #tpu.memory_space<vmem>>, vector<1x8xf32>
    %137 = vector.broadcast %136 : vector<1x8xf32> to vector<8x8xf32>
    %138 = arith.addf %135, %137 : vector<8x8xf32>
    %c0_54 = arith.constant 0 : index
    %c0_55 = arith.constant 0 : index
    %c0_56 = arith.constant 0 : index
    %139 = vector.load %arg16[%c0_54, %c0_55, %c0_56] : memref<1x8x8xf32, #tpu.memory_space<vmem>>, vector<1x8x8xf32>
    %140 = vector.shape_cast %139 : vector<1x8x8xf32> to vector<8x8xf32>
    %141 = vector.shape_cast %138 : vector<8x8xf32> to vector<1x8x8xf32>
    tpu.vector_store %arg16[%c0_54, %c0_55, %c0_56], %141 {strides = array<i32>} : memref<1x8x8xf32, #tpu.memory_space<vmem>>, vector<1x8x8xf32>,
    return
  }
  func.func @transform_0(%arg0: i32) -> (i32, i32, i32) {
    %c0_i32 = arith.constant 0 : i32
    %c0_i32_0 = arith.constant 0 : i32
    %c0_i32_1 = arith.constant 0 : i32
    return %arg0, %c0_i32, %c0_i32_0 : i32, i32, i32
  }
  func.func @transform_1(%arg0: i32) -> (i32, i32) {
    %c0_i32 = arith.constant 0 : i32
    %c0_i32_0 = arith.constant 0 : i32
    %c0_i32_1 = arith.constant 0 : i32
    return %c0_i32, %c0_i32_0 : i32, i32
  }
  func.func @transform_2(%arg0: i32) -> (i32, i32) {
    %c0_i32 = arith.constant 0 : i32
    %c0_i32_0 = arith.constant 0 : i32
    %c0_i32_1 = arith.constant 0 : i32
    return %c0_i32, %c0_i32_0 : i32, i32
  }
  func.func @transform_3(%arg0: i32) -> (i32, i32) {
    %c0_i32 = arith.constant 0 : i32
    %c0_i32_0 = arith.constant 0 : i32
    %c0_i32_1 = arith.constant 0 : i32
    return %c0_i32, %c0_i32_0 : i32, i32
  }
  func.func @transform_4(%arg0: i32) -> (i32, i32) {
    %c0_i32 = arith.constant 0 : i32
    %c0_i32_0 = arith.constant 0 : i32
    %c0_i32_1 = arith.constant 0 : i32
    return %c0_i32, %c0_i32_0 : i32, i32
  }
  func.func @transform_5(%arg0: i32) -> (i32, i32) {
    %c0_i32 = arith.constant 0 : i32
    %c0_i32_0 = arith.constant 0 : i32
    %c0_i32_1 = arith.constant 0 : i32
    return %c0_i32, %c0_i32_0 : i32, i32
  }
  func.func @transform_6(%arg0: i32) -> (i32, i32) {
    %c0_i32 = arith.constant 0 : i32
    %c0_i32_0 = arith.constant 0 : i32
    %c0_i32_1 = arith.constant 0 : i32
    return %c0_i32, %c0_i32_0 : i32, i32
  }
  func.func @transform_7(%arg0: i32) -> (i32, i32) {
    %c0_i32 = arith.constant 0 : i32
    %c0_i32_0 = arith.constant 0 : i32
    %c0_i32_1 = arith.constant 0 : i32
    return %c0_i32, %c0_i32_0 : i32, i32
  }
  func.func @transform_8(%arg0: i32) -> (i32, i32) {
    %c0_i32 = arith.constant 0 : i32
    %c0_i32_0 = arith.constant 0 : i32
    %c0_i32_1 = arith.constant 0 : i32
    return %c0_i32, %c0_i32_0 : i32, i32
  }
  func.func @transform_9(%arg0: i32) -> (i32, i32) {
    %c0_i32 = arith.constant 0 : i32
    %c0_i32_0 = arith.constant 0 : i32
    %c0_i32_1 = arith.constant 0 : i32
    return %c0_i32, %c0_i32_0 : i32, i32
  }
  func.func @transform_10(%arg0: i32) -> (i32, i32) {
    %c0_i32 = arith.constant 0 : i32
    %c0_i32_0 = arith.constant 0 : i32
    %c0_i32_1 = arith.constant 0 : i32
    return %c0_i32, %c0_i32_0 : i32, i32
  }
  func.func @transform_11(%arg0: i32) -> (i32, i32) {
    %c0_i32 = arith.constant 0 : i32
    %c0_i32_0 = arith.constant 0 : i32
    %c0_i32_1 = arith.constant 0 : i32
    return %c0_i32, %c0_i32_0 : i32, i32
  }
  func.func @transform_12(%arg0: i32) -> (i32, i32) {
    %c0_i32 = arith.constant 0 : i32
    %c0_i32_0 = arith.constant 0 : i32
    %c0_i32_1 = arith.constant 0 : i32
    return %c0_i32, %c0_i32_0 : i32, i32
  }
  func.func @transform_13(%arg0: i32) -> (i32, i32) {
    %c0_i32 = arith.constant 0 : i32
    %c0_i32_0 = arith.constant 0 : i32
    %c0_i32_1 = arith.constant 0 : i32
    return %c0_i32, %c0_i32_0 : i32, i32
  }
  func.func @transform_14(%arg0: i32) -> (i32, i32) {
    %c0_i32 = arith.constant 0 : i32
    %c0_i32_0 = arith.constant 0 : i32
    %c0_i32_1 = arith.constant 0 : i32
    return %c0_i32, %c0_i32_0 : i32, i32
  }
  func.func @transform_15(%arg0: i32) -> (i32, i32, i32) {
    %c0_i32 = arith.constant 0 : i32
    %c0_i32_0 = arith.constant 0 : i32
    %c0_i32_1 = arith.constant 0 : i32
    return %arg0, %c0_i32, %c0_i32_0 : i32, i32, i32
  }
}

</mosaic_0001>

<llo_original>
// kernel: tpu_custom_call.1
$region0: #{tpu_custom_call.1}
  #allocation0 [shape = 'u32[]', space=smem, size = 0x4, offset = 0x4, fixed_abs, tag = 'smem constant byte address 0x4 - core index']
  #allocation1 [shape = 'u32[144,128]{1,0:T(1,128)}', space=vmem, size = 0x12000, scoped, tag = 'internal scratch']
  %s0 = inlined_call_operand.vmem [shape: f32[1,16,8], index: 0, kind: input, shape index: {}]
  %s1 = inlined_call_operand.vmem [shape: bf16[24,8], index: 1, kind: input, shape index: {}]
  %s2 = inlined_call_operand.vmem [shape: f32[1,8], index: 2, kind: input, shape index: {}]
  %s3 = inlined_call_operand.vmem [shape: bf16[24,16], index: 3, kind: input, shape index: {}]
  %s4 = inlined_call_operand.vmem [shape: f32[1,16], index: 4, kind: input, shape index: {}]
  %s5 = inlined_call_operand.vmem [shape: bf16[72,32], index: 5, kind: input, shape index: {}]
  %s6 = inlined_call_operand.vmem [shape: f32[1,32], index: 6, kind: input, shape index: {}]
  %s7 = inlined_call_operand.vmem [shape: bf16[168,16], index: 7, kind: input, shape index: {}]
  %s8 = inlined_call_operand.vmem [shape: f32[1,16], index: 8, kind: input, shape index: {}]
  %s9 = inlined_call_operand.vmem [shape: bf16[216,8], index: 9, kind: input, shape index: {}]
  %s10 = inlined_call_operand.vmem [shape: f32[1,8], index: 10, kind: input, shape index: {}]
  %s11 = inlined_call_operand.vmem [shape: bf16[24,8], index: 11, kind: input, shape index: {}]
  %s12 = inlined_call_operand.vmem [shape: f32[1,8], index: 12, kind: input, shape index: {}]
  %s13 = inlined_call_operand.vmem [shape: bf16[8,8], index: 13, kind: input, shape index: {}]
  %s14 = inlined_call_operand.vmem [shape: f32[1,8], index: 14, kind: input, shape index: {}]
  %s15 = inlined_call_operand.hbm [shape: f32[1,8,8], index: 15, kind: output, shape index: {}]
  %s16 = sld [smem:[#allocation0]]
  $region70: #{tpu_custom_call.1} parent=0
    _
  %s18 = ssub.s32 1, %s16
  %s19 = scalar_select 0, %s18, %s16
  $region1: #{tpu_custom_call.1} parent=0
    #allocation2 [shape = 'u8[4096]{0}', space=vmem, size = 0x1000, scoped, tag = 'output window, operand 0, single buffered']
    #allocation3 [shape = 's32[1]{0}', space=sflag, size = 0x4, scoped, tag = 'scoped memory for tpu_custom_call.1']
    %20 = vsyncpa [#allocation3], 0
    // Predicated region
    $region2: #{tpu_custom_call.1} parent=1 // pred_check
      _
    $region3: #{tpu_custom_call.1} parent=1 // pred_check_branch
      %22 = sbr.rel (0) target = $region5
    $region4: #{tpu_custom_call.1} parent=1 // pred_region
      _
    $region5: #{tpu_custom_call.1} parent=1 // pred_fallthru
      _
    // Predicated region
    $region6: #{tpu_custom_call.1} parent=1 // pred_check
      _
    $region7: #{tpu_custom_call.1} parent=1 // pred_check_branch
      %24 = sbr.rel (0) target = $region9
    $region8: #{tpu_custom_call.1} parent=1 // pred_region
      _
    $region9: #{tpu_custom_call.1} parent=1 // pred_fallthru
      _
    // Predicated region
    $region10: #{tpu_custom_call.1} parent=1 // pred_check
      _
    $region11: #{tpu_custom_call.1} parent=1 // pred_check_branch
      %26 = sbr.rel (0) target = $region13
    $region12: #{tpu_custom_call.1} parent=1 // pred_region
      _
    $region13: #{tpu_custom_call.1} parent=1 // pred_fallthru
      _
    // Predicated region
    $region14: #{tpu_custom_call.1} parent=1 // pred_check
      _
    $region15: #{tpu_custom_call.1} parent=1 // pred_check_branch
      %28 = sbr.rel (0) target = $region17
    $region16: #{tpu_custom_call.1} parent=1 // pred_region
      _
    $region17: #{tpu_custom_call.1} parent=1 // pred_fallthru
      _
    // Predicated region
    $region18: #{tpu_custom_call.1} parent=1 // pred_check
      _
    $region19: #{tpu_custom_call.1} parent=1 // pred_check_branch
      %30 = sbr.rel (0) target = $region21
    $region20: #{tpu_custom_call.1} parent=1 // pred_region
      _
    $region21: #{tpu_custom_call.1} parent=1 // pred_fallthru
      _
    // Predicated region
    $region22: #{tpu_custom_call.1} parent=1 // pred_check
      _
    $region23: #{tpu_custom_call.1} parent=1 // pred_check_branch
      %32 = sbr.rel (0) target = $region25
    $region24: #{tpu_custom_call.1} parent=1 // pred_region
      _
    $region25: #{tpu_custom_call.1} parent=1 // pred_fallthru
      _
    // Predicated region
    $region26: #{tpu_custom_call.1} parent=1 // pred_check
      _
    $region27: #{tpu_custom_call.1} parent=1 // pred_check_branch
      %34 = sbr.rel (0) target = $region29
    $region28: #{tpu_custom_call.1} parent=1 // pred_region
      _
    $region29: #{tpu_custom_call.1} parent=1 // pred_fallthru
      _
    // Predicated region
    $region30: #{tpu_custom_call.1} parent=1 // pred_check
      _
    $region31: #{tpu_custom_call.1} parent=1 // pred_check_branch
      %36 = sbr.rel (0) target = $region33
    $region32: #{tpu_custom_call.1} parent=1 // pred_region
      _
    $region33: #{tpu_custom_call.1} parent=1 // pred_fallthru
      _
    // Predicated region
    $region34: #{tpu_custom_call.1} parent=1 // pred_check
      _
    $region35: #{tpu_custom_call.1} parent=1 // pred_check_branch
      %38 = sbr.rel (0) target = $region37
    $region36: #{tpu_custom_call.1} parent=1 // pred_region
      _
    $region37: #{tpu_custom_call.1} parent=1 // pred_fallthru
      _
    // Predicated region
    $region38: #{tpu_custom_call.1} parent=1 // pred_check
      _
    $region39: #{tpu_custom_call.1} parent=1 // pred_check_branch
      %40 = sbr.rel (0) target = $region41
    $region40: #{tpu_custom_call.1} parent=1 // pred_region
      _
    $region41: #{tpu_custom_call.1} parent=1 // pred_fallthru
      _
    // Predicated region
    $region42: #{tpu_custom_call.1} parent=1 // pred_check
      _
    $region43: #{tpu_custom_call.1} parent=1 // pred_check_branch
      %42 = sbr.rel (0) target = $region45
    $region44: #{tpu_custom_call.1} parent=1 // pred_region
      _
    $region45: #{tpu_custom_call.1} parent=1 // pred_fallthru
      _
    // Predicated region
    $region46: #{tpu_custom_call.1} parent=1 // pred_check
      _
    $region47: #{tpu_custom_call.1} parent=1 // pred_check_branch
      %44 = sbr.rel (0) target = $region49
    $region48: #{tpu_custom_call.1} parent=1 // pred_region
      _
    $region49: #{tpu_custom_call.1} parent=1 // pred_fallthru
      _
    // Predicated region
    $region50: #{tpu_custom_call.1} parent=1 // pred_check
      _
    $region51: #{tpu_custom_call.1} parent=1 // pred_check_branch
      %46 = sbr.rel (0) target = $region53
    $region52: #{tpu_custom_call.1} parent=1 // pred_region
      _
    $region53: #{tpu_custom_call.1} parent=1 // pred_fallthru
      _
    // Predicated region
    $region54: #{tpu_custom_call.1} parent=1 // pred_check
      _
    $region55: #{tpu_custom_call.1} parent=1 // pred_check_branch
      %48 = sbr.rel (0) target = $region57
    $region56: #{tpu_custom_call.1} parent=1 // pred_region
      _
    $region57: #{tpu_custom_call.1} parent=1 // pred_fallthru
      _
    // Predicated region
    $region58: #{tpu_custom_call.1} parent=1 // pred_check
      _
    $region59: #{tpu_custom_call.1} parent=1 // pred_check_branch
      %50 = sbr.rel (0) target = $region61
    $region60: #{tpu_custom_call.1} parent=1 // pred_region
      _
    $region61: #{tpu_custom_call.1} parent=1 // pred_fallthru
      _
    %v52 = vld [vmem:[%s0] sm:$0xff]
    %v53 = vld [vmem:[%s0 + $0x8] sm:$0xff]
    %vm56 = vcmask 1040384
    %v57 = vrot.slane %v52, 7
    %v58 = vrot.slane %v53, 7
    %v59 = vsel %vm56, %v57, %v58
    %v63 = vsel %vm56, 0.0, %v57
    %v64 = vsel %vm56, %v58, 0.0
    %vm67 = vcmask 1046528
    %v68 = vrot.slane %v63, 1
    %v69 = vrot.slane %v59, 1
    %v70 = vsel %vm67, %v68, %v69
    %v71 = vrot.slane %v64, 1
    %v72 = vsel %vm67, %v69, %v71
    %73 = vrot.lane.b32.xlu0 %v70, 8
    %v74 = vpop.permute.xlu0 %73
    %75 = vrot.lane.b32.xlu0 %v72, 8
    %v76 = vpop.permute.xlu0 %75
    %vm79 = vcmask 1045504
    %v80 = vrot.slane %v63, 2
    %v81 = vrot.slane %v59, 2
    %v82 = vsel %vm79, %v80, %v81
    %v83 = vrot.slane %v64, 2
    %v84 = vsel %vm79, %v81, %v83
    %85 = vrot.lane.b32.xlu0 %v82, 16
    %v86 = vpop.permute.xlu0 %85
    %87 = vrot.lane.b32.xlu0 %v84, 16
    %v88 = vpop.permute.xlu0 %87
    %vm91 = vcmask 64512
    %v92 = vsel %vm91, %v63, %v74
    %v93 = vsel %vm91, %v59, %v76
    %vm94 = vcmask 130048
    %v95 = vsel %vm94, %v92, %v86
    %v96 = vsel %vm94, %v93, %v88
    %v97 = vpack.c.bf16 %v96, %v95
    %v98 = vld [vmem:[%s1] sm:$0xf]
    %v99 = vld [vmem:[%s1 + $0x4] sm:$0xf]
    %v100 = vld [vmem:[%s1 + $0x8] sm:$0xf]
    %v101 = vld [vmem:[%s2] sm:$0x1]
    %v103 = vlaneseq
    %v104 = vshrl.u32 %v103, 7
    %v105 = vsub.s32 0, %v104
    %v106 = vrot.slane %v101, %v105
    %v111 = vunpack.c.l.b16 %v98
    %v112 = vunpack.c.l.b16 %v99
    %v113 = vunpack.c.l.b16 %v100
    %v114 = vpack.c.b16 %v112, %v111
    %v115 = vpack.c.b16 %v113, %v113
    %vm117 = vcmask 195584
    %v119 = vsel %vm117, %v97, 0
    %vm121 = vcmask 1043456
    %v123 = vsel %vm121, %v115, 0
    %125 = vmatprep.subr.bf16.mxu0 0
    %126 = vmatpush1.bf16.msra.mxu0 0
    %127 = vmatprep.subr.bf16.mxu0 0
    %128 = vmatpush1.bf16.msra.mxu0 0
    %129 = vmatprep.subr.bf16.mxu0 0
    %130 = vmatpush1.bf16.msra.mxu0 0
    %131 = vmatprep.subr.bf16.mxu0 0
    %132 = vmatpush1.bf16.msra.mxu0 0
    %133 = vmatprep.subr.bf16.mxu0 0
    %134 = vmatpush1.bf16.msra.mxu0 0
    %135 = vmatprep.subr.bf16.mxu0 0
    %136 = vmatpush1.bf16.msra.mxu0 0
    %137 = vmatprep.subr.bf16.mxu0 0
    %138 = vmatpush1.bf16.msra.mxu0 %v123
    %139 = vmatprep.subr.bf16.mxu0 0
    %140 = vmatpush1.bf16.msra.mxu0 %v114
    %141 = vmatprep.subr.bf16.mxu0 0
    %142 = vmatpush2.bf16.msra.mxu0 0
    %143 = vmatprep.subr.bf16.mxu0 0
    %144 = vmatpush2.bf16.msra.mxu0 0
    %145 = vmatprep.subr.bf16.mxu0 0
    %146 = vmatpush2.bf16.msra.mxu0 0
    %147 = vmatprep.subr.bf16.mxu0 0
    %148 = vmatpush2.bf16.msra.mxu0 0
    %149 = vmatprep.subr.bf16.mxu0 0
    %150 = vmatpush2.bf16.msra.mxu0 0
    %151 = vmatprep.subr.bf16.mxu0 0
    %152 = vmatpush2.bf16.msra.mxu0 0
    %153 = vmatprep.subr.bf16.mxu0 0
    %154 = vmatpush2.bf16.msra.mxu0 0
    %155 = vmatprep.subr.bf16.mxu0 0
    %156 = vmatpush2.bf16.msra.mxu0 0
    %157 = vmatprep.mubr.bf16.mxu0 0
    %158 = vmatmul.mubr.bf16.gmra.mxu0 %v119
    %v159 = vpop.f32.mrf.mxu0
    %v160 = vadd.f32 %v106, %v159
    %v161 = vpop.f32.mrf.mxu0
    %v162 = vpop.f32.mrf.mxu0
    %v163 = vadd.f32 %v106, %v162
    %v164 = vpop.f32.mrf.mxu0
    %165 = vdwg.mxu0
    %v166 = vmax.f32 %v160, 0.0
    %v167 = vmax.f32 %v163, 0.0
    %v170 = vrot.slane %v166, 7
    %v171 = vrot.slane %v167, 7
    %v172 = vsel %vm56, %v170, %v171
    %v175 = vsel %vm56, 0.0, %v170
    %v176 = vsel %vm56, %v171, 0.0
    %v178 = vcombine.high %v175, %v175
    %v180 = vunpack.c.l.s4 1983009808
    %v181 = vunpack.c.0.s8 %v180
    %v182 = vlaneseq
    %v183 = vshrl.u32 %v182, 7
    %v184 = vsub.s32 %v181, %v183
    %v185 = vrot.slane %v175, %v184
    %v187 = vunpack.c.l.s4 1983009808
    %v188 = vunpack.c.0.s8 %v187
    %v189 = vlaneseq
    %v190 = vshrl.u32 %v189, 7
    %v191 = vsub.s32 %v188, %v190
    %v192 = vrot.slane %v178, %v191
    %v193 = vcombine.high %v185, %v185
    %v194 = vcombine.high %v192, %v192
    %v195 = vcombine.high %v172, %v172
    %v197 = vunpack.c.l.s4 1983009808
    %v198 = vunpack.c.0.s8 %v197
    %v199 = vlaneseq
    %v200 = vshrl.u32 %v199, 7
    %v201 = vsub.s32 %v198, %v200
    %v202 = vrot.slane %v172, %v201
    %v204 = vunpack.c.l.s4 1983009808
    %v205 = vunpack.c.0.s8 %v204
    %v206 = vlaneseq
    %v207 = vshrl.u32 %v206, 7
    %v208 = vsub.s32 %v205, %v207
    %v209 = vrot.slane %v195, %v208
    %v210 = vcombine.high %v202, %v202
    %v211 = vcombine.high %v209, %v209
    %v214 = vunpack.c.l.s4 1983009808
    %v215 = vunpack.c.0.s8 %v214
    %v216 = vlaneseq
    %v217 = vshrl.u32 %v216, 7
    %v218 = vsub.s32 %v215, %v217
    %v219 = vrot.slane %v176, %v218
    %vm220 = vcmask 1042434
    %vm221 = vmor %vm56, %vm220
    %vm222 = vcmask 1044484
    %vm223 = vmor %vm221, %vm222
    %vm224 = vcmask 1046534
    %vm225 = vmor %vm223, %vm224
    %v226 = vrot.slane %v185, 7
    %v227 = vrot.slane %v226, 2
    %v228 = vrot.slane %v193, 7
    %v229 = vsel %vm225, %v227, %v228
    %v230 = vrot.slane %v228, 2
    %v231 = vrot.slane %v192, 7
    %v232 = vsel %vm225, %v230, %v231
    %v233 = vrot.slane %v231, 2
    %v234 = vrot.slane %v194, 7
    %v235 = vsel %vm225, %v233, %v234
    %v236 = vrot.slane %v234, 2
    %v237 = vrot.slane %v202, 7
    %v238 = vsel %vm225, %v236, %v237
    %v239 = vrot.slane %v237, 2
    %v240 = vrot.slane %v210, 7
    %v241 = vsel %vm225, %v239, %v240
    %v242 = vrot.slane %v240, 2
    %v243 = vrot.slane %v209, 7
    %v244 = vsel %vm225, %v242, %v243
    %v245 = vrot.slane %v243, 2
    %v246 = vrot.slane %v211, 7
    %v247 = vsel %vm225, %v245, %v246
    %v248 = vrot.slane %v246, 2
    %v249 = vrot.slane %v219, 7
    %v250 = vsel %vm225, %v248, %v249
    %v251 = vlaneseq
    %v252 = vshrl.u32 %v251, 7
    %v253 = vsub.s32 0, %v252
    %v254 = vrot.slane %v185, %v253
    %v255 = vlaneseq
    %v256 = vshrl.u32 %v255, 7
    %v257 = vsub.s32 0, %v256
    %v258 = vrot.slane %v193, %v257
    %v259 = vlaneseq
    %v260 = vshrl.u32 %v259, 7
    %v261 = vsub.s32 0, %v260
    %v262 = vrot.slane %v192, %v261
    %v263 = vlaneseq
    %v264 = vshrl.u32 %v263, 7
    %v265 = vsub.s32 0, %v264
    %v266 = vrot.slane %v194, %v265
    %v267 = vlaneseq
    %v268 = vshrl.u32 %v267, 7
    %v269 = vsub.s32 0, %v268
    %v270 = vrot.slane %v202, %v269
    %v271 = vlaneseq
    %v272 = vshrl.u32 %v271, 7
    %v273 = vsub.s32 0, %v272
    %v274 = vrot.slane %v210, %v273
    %v275 = vlaneseq
    %v276 = vshrl.u32 %v275, 7
    %v277 = vsub.s32 0, %v276
    %v278 = vrot.slane %v209, %v277
    %v279 = vlaneseq
    %v280 = vshrl.u32 %v279, 7
    %v281 = vsub.s32 0, %v280
    %v282 = vrot.slane %v211, %v281
    %vm283 = vcmask 1041409
    %v284 = vsel %vm283, %v258, %v254
    %v285 = vsel %vm220, %v262, %v284
    %vm286 = vcmask 1043459
    %v287 = vsel %vm286, %v266, %v285
    %v288 = vsel %vm222, %v270, %v287
    %vm289 = vcmask 1045509
    %v290 = vsel %vm289, %v274, %v288
    %v291 = vsel %vm224, %v278, %v290
    %vm292 = vcmask 1047559
    %v293 = vsel %vm292, %v282, %v291
    %v295 = vlaneseq
    %v296 = vshrl.u32 %v295, 7
    %v297 = vsub.s32 0, %v296
    %v298 = vrot.slane %v229, %v297
    %v299 = vlaneseq
    %v300 = vshrl.u32 %v299, 7
    %v301 = vsub.s32 0, %v300
    %v302 = vrot.slane %v232, %v301
    %v303 = vlaneseq
    %v304 = vshrl.u32 %v303, 7
    %v305 = vsub.s32 0, %v304
    %v306 = vrot.slane %v235, %v305
    %v307 = vlaneseq
    %v308 = vshrl.u32 %v307, 7
    %v309 = vsub.s32 0, %v308
    %v310 = vrot.slane %v238, %v309
    %v311 = vlaneseq
    %v312 = vshrl.u32 %v311, 7
    %v313 = vsub.s32 0, %v312
    %v314 = vrot.slane %v241, %v313
    %v315 = vlaneseq
    %v316 = vshrl.u32 %v315, 7
    %v317 = vsub.s32 0, %v316
    %v318 = vrot.slane %v244, %v317
    %v319 = vlaneseq
    %v320 = vshrl.u32 %v319, 7
    %v321 = vsub.s32 0, %v320
    %v322 = vrot.slane %v247, %v321
    %v323 = vlaneseq
    %v324 = vshrl.u32 %v323, 7
    %v325 = vsub.s32 0, %v324
    %v326 = vrot.slane %v250, %v325
    %v327 = vsel %vm283, %v302, %v298
    %v328 = vsel %vm220, %v306, %v327
    %v329 = vsel %vm286, %v310, %v328
    %v330 = vsel %vm222, %v314, %v329
    %v331 = vsel %vm289, %v318, %v330
    %v332 = vsel %vm224, %v322, %v331
    %v333 = vsel %vm292, %v326, %v332
    %334 = vrot.lane.b32.xlu0 %v333, 8
    %v335 = vpop.permute.xlu0 %334
    %v337 = vlaneseq
    %v338 = vshrl.u32 %v337, 7
    %v339 = vsub.s32 0, %v338
    %v340 = vrot.slane %v219, %v339
    %v341 = vsel %vm283, %v262, %v258
    %v342 = vsel %vm220, %v266, %v341
    %v343 = vsel %vm286, %v270, %v342
    %v344 = vsel %vm222, %v274, %v343
    %v345 = vsel %vm289, %v278, %v344
    %v346 = vsel %vm224, %v282, %v345
    %v347 = vsel %vm292, %v340, %v346
    %348 = vrot.lane.b32.xlu0 %v347, 16
    %v349 = vpop.permute.xlu0 %348
    %v351 = vsel %vm91, %v293, %v335
    %v352 = vsel %vm94, %v351, %v349
    %v353 = vpack.c.bf16 %v352, %v352
    %v354 = vld [vmem:[%s3] sm:$0xf]
    %v355 = vld [vmem:[%s3 + $0x4] sm:$0xf]
    %v356 = vld [vmem:[%s3 + $0x8] sm:$0xf]
    %v357 = vld [vmem:[%s4] sm:$0x1]
    %v359 = vlaneseq
    %v360 = vshrl.u32 %v359, 7
    %v361 = vsub.s32 0, %v360
    %v362 = vrot.slane %v357, %v361
    %v367 = vunpack.c.l.b16 %v354
    %v368 = vunpack.c.l.b16 %v355
    %v369 = vunpack.c.l.b16 %v356
    %v370 = vpack.c.b16 %v368, %v367
    %v371 = vpack.c.b16 %v369, %v369
    %v374 = vsel %vm117, %v353, 0
    %v377 = vsel %vm121, %v371, 0
    %379 = vmatprep.subr.bf16.mxu0 0
    %380 = vmatpush1.bf16.msra.mxu0 0
    %381 = vmatprep.subr.bf16.mxu0 0
    %382 = vmatpush1.bf16.msra.mxu0 0
    %383 = vmatprep.subr.bf16.mxu0 0
    %384 = vmatpush1.bf16.msra.mxu0 0
    %385 = vmatprep.subr.bf16.mxu0 0
    %386 = vmatpush1.bf16.msra.mxu0 0
    %387 = vmatprep.subr.bf16.mxu0 0
    %388 = vmatpush1.bf16.msra.mxu0 0
    %389 = vmatprep.subr.bf16.mxu0 0
    %390 = vmatpush1.bf16.msra.mxu0 0
    %391 = vmatprep.subr.bf16.mxu0 0
    %392 = vmatpush1.bf16.msra.mxu0 %v377
    %393 = vmatprep.subr.bf16.mxu0 0
    %394 = vmatpush1.bf16.msra.mxu0 %v370
    %395 = vmatprep.subr.bf16.mxu0 0
    %396 = vmatpush2.bf16.msra.mxu0 0
    %397 = vmatprep.subr.bf16.mxu0 0
    %398 = vmatpush2.bf16.msra.mxu0 0
    %399 = vmatprep.subr.bf16.mxu0 0
    %400 = vmatpush2.bf16.msra.mxu0 0
    %401 = vmatprep.subr.bf16.mxu0 0
    %402 = vmatpush2.bf16.msra.mxu0 0
    %403 = vmatprep.subr.bf16.mxu0 0
    %404 = vmatpush2.bf16.msra.mxu0 0
    %405 = vmatprep.subr.bf16.mxu0 0
    %406 = vmatpush2.bf16.msra.mxu0 0
    %407 = vmatprep.subr.bf16.mxu0 0
    %408 = vmatpush2.bf16.msra.mxu0 0
    %409 = vmatprep.subr.bf16.mxu0 0
    %410 = vmatpush2.bf16.msra.mxu0 0
    %411 = vmatprep.mubr.bf16.mxu0 0
    %412 = vmatmul.mubr.bf16.gmra.mxu0 %v374
    %v413 = vpop.f32.mrf.mxu0
    %v414 = vadd.f32 %v362, %v413
    %v415 = vpop.f32.mrf.mxu0
    %v416 = vpop.f32.mrf.mxu0
    %v417 = vpop.f32.mrf.mxu0
    %418 = vdwg.mxu0
    %v419 = vmax.f32 %v414, 0.0
    %v420 = vcombine.high %v166, %v166
    %v422 = vunpack.c.l.s4 1983009808
    %v423 = vunpack.c.0.s8 %v422
    %v424 = vlaneseq
    %v425 = vshrl.u32 %v424, 7
    %v426 = vsub.s32 %v423, %v425
    %v427 = vrot.slane %v166, %v426
    %v429 = vunpack.c.l.s4 1983009808
    %v430 = vunpack.c.0.s8 %v429
    %v431 = vlaneseq
    %v432 = vshrl.u32 %v431, 7
    %v433 = vsub.s32 %v430, %v432
    %v434 = vrot.slane %v420, %v433
    %v435 = vcombine.high %v427, %v427
    %v436 = vcombine.high %v434, %v434
    %v437 = vcombine.high %v167, %v167
    %v439 = vunpack.c.l.s4 1983009808
    %v440 = vunpack.c.0.s8 %v439
    %v441 = vlaneseq
    %v442 = vshrl.u32 %v441, 7
    %v443 = vsub.s32 %v440, %v442
    %v444 = vrot.slane %v167, %v443
    %v446 = vunpack.c.l.s4 1983009808
    %v447 = vunpack.c.0.s8 %v446
    %v448 = vlaneseq
    %v449 = vshrl.u32 %v448, 7
    %v450 = vsub.s32 %v447, %v449
    %v451 = vrot.slane %v437, %v450
    %v452 = vcombine.high %v444, %v444
    %v453 = vcombine.high %v451, %v451
    %v454 = vlaneseq
    %v455 = vshrl.u32 %v454, 7
    %v456 = vsub.s32 0, %v455
    %v457 = vrot.slane %v427, %v456
    %v458 = vlaneseq
    %v459 = vshrl.u32 %v458, 7
    %v460 = vsub.s32 0, %v459
    %v461 = vrot.slane %v435, %v460
    %v462 = vlaneseq
    %v463 = vshrl.u32 %v462, 7
    %v464 = vsub.s32 0, %v463
    %v465 = vrot.slane %v434, %v464
    %v466 = vlaneseq
    %v467 = vshrl.u32 %v466, 7
    %v468 = vsub.s32 0, %v467
    %v469 = vrot.slane %v436, %v468
    %v470 = vlaneseq
    %v471 = vshrl.u32 %v470, 7
    %v472 = vsub.s32 0, %v471
    %v473 = vrot.slane %v444, %v472
    %v474 = vlaneseq
    %v475 = vshrl.u32 %v474, 7
    %v476 = vsub.s32 0, %v475
    %v477 = vrot.slane %v452, %v476
    %v478 = vlaneseq
    %v479 = vshrl.u32 %v478, 7
    %v480 = vsub.s32 0, %v479
    %v481 = vrot.slane %v451, %v480
    %v482 = vlaneseq
    %v483 = vshrl.u32 %v482, 7
    %v484 = vsub.s32 0, %v483
    %v485 = vrot.slane %v453, %v484
    %v486 = vsel %vm283, %v461, %v457
    %v487 = vsel %vm220, %v465, %v486
    %v488 = vsel %vm286, %v469, %v487
    %v489 = vsel %vm222, %v473, %v488
    %v490 = vsel %vm289, %v477, %v489
    %v491 = vsel %vm224, %v481, %v490
    %v492 = vsel %vm292, %v485, %v491
    %495 = vrot.lane.b32.xlu0 %v419, 8
    %v496 = vpop.permute.xlu0 %495
    %v498 = vsel %vm91, %v492, %v496
    %v500 = vrot.slane %v498, 7
    %v502 = vsel %vm56, 0.0, %v500
    %v503 = vsel %vm56, %v500, 0.0
    %v505 = vcombine.high %v502, %v502
    %v507 = vunpack.c.l.s4 1983009808
    %v508 = vunpack.c.0.s8 %v507
    %v509 = vlaneseq
    %v510 = vshrl.u32 %v509, 7
    %v511 = vsub.s32 %v508, %v510
    %v512 = vrot.slane %v502, %v511
    %v514 = vunpack.c.l.s4 1983009808
    %v515 = vunpack.c.0.s8 %v514
    %v516 = vlaneseq
    %v517 = vshrl.u32 %v516, 7
    %v518 = vsub.s32 %v515, %v517
    %v519 = vrot.slane %v505, %v518
    %v520 = vcombine.high %v512, %v512
    %v521 = vcombine.high %v519, %v519
    %v524 = vunpack.c.l.s4 1983009808
    %v525 = vunpack.c.0.s8 %v524
    %v526 = vlaneseq
    %v527 = vshrl.u32 %v526, 7
    %v528 = vsub.s32 %v525, %v527
    %v529 = vrot.slane %v503, %v528
    %v530 = vrot.slane %v512, 7
    %v531 = vrot.slane %v530, 2
    %v532 = vrot.slane %v520, 7
    %v533 = vsel %vm225, %v531, %v532
    %v534 = vrot.slane %v532, 2
    %v535 = vrot.slane %v519, 7
    %v536 = vsel %vm225, %v534, %v535
    %v537 = vrot.slane %v535, 2
    %v538 = vrot.slane %v521, 7
    %v539 = vsel %vm225, %v537, %v538
    %v540 = vrot.slane %v538, 2
    %v541 = vrot.slane %v529, 7
    %v542 = vsel %vm225, %v540, %v541
    %v543 = vlaneseq
    %v544 = vshrl.u32 %v543, 7
    %v545 = vsub.s32 0, %v544
    %v546 = vrot.slane %v512, %v545
    %v547 = vlaneseq
    %v548 = vshrl.u32 %v547, 7
    %v549 = vsub.s32 0, %v548
    %v550 = vrot.slane %v520, %v549
    %v551 = vlaneseq
    %v552 = vshrl.u32 %v551, 7
    %v553 = vsub.s32 0, %v552
    %v554 = vrot.slane %v519, %v553
    %v555 = vlaneseq
    %v556 = vshrl.u32 %v555, 7
    %v557 = vsub.s32 0, %v556
    %v558 = vrot.slane %v521, %v557
    %v559 = vsel %vm283, %v550, %v546
    %v560 = vsel %vm220, %v554, %v559
    %v561 = vsel %vm286, %v558, %v560
    %v563 = vlaneseq
    %v564 = vshrl.u32 %v563, 7
    %v565 = vsub.s32 0, %v564
    %v566 = vrot.slane %v533, %v565
    %v567 = vlaneseq
    %v568 = vshrl.u32 %v567, 7
    %v569 = vsub.s32 0, %v568
    %v570 = vrot.slane %v536, %v569
    %v571 = vlaneseq
    %v572 = vshrl.u32 %v571, 7
    %v573 = vsub.s32 0, %v572
    %v574 = vrot.slane %v539, %v573
    %v575 = vlaneseq
    %v576 = vshrl.u32 %v575, 7
    %v577 = vsub.s32 0, %v576
    %v578 = vrot.slane %v542, %v577
    %v579 = vsel %vm283, %v570, %v566
    %v580 = vsel %vm220, %v574, %v579
    %v581 = vsel %vm286, %v578, %v580
    %582 = vrot.lane.b32.xlu0 %v581, 24
    %v583 = vpop.permute.xlu0 %582
    %v585 = vlaneseq
    %v586 = vshrl.u32 %v585, 7
    %v587 = vsub.s32 0, %v586
    %v588 = vrot.slane %v529, %v587
    %v589 = vsel %vm283, %v554, %v550
    %v590 = vsel %vm220, %v558, %v589
    %v591 = vsel %vm286, %v588, %v590
    %592 = vrot.lane.b32.xlu0 %v591, 48
    %v593 = vpop.permute.xlu0 %592
    %v595 = vsel %vm117, %v561, %v583
    %vm596 = vcmask 392192
    %v597 = vsel %vm596, %v595, %v593
    %v598 = vpack.c.bf16 %v597, %v597
    %v599 = vld [vmem:[%s5] sm:$0xf]
    %v600 = vld [vmem:[%s5 + $0x4] sm:$0xf]
    %v601 = vld [vmem:[%s5 + $0x8] sm:$0xf]
    %v602 = vld [vmem:[%s5 + $0xc] sm:$0xf]
    %v603 = vld [vmem:[%s5 + $0x10] sm:$0xf]
    %v604 = vld [vmem:[%s5 + $0x14] sm:$0xf]
    %v605 = vld [vmem:[%s5 + $0x18] sm:$0xf]
    %v606 = vld [vmem:[%s5 + $0x1c] sm:$0xf]
    %v607 = vld [vmem:[%s5 + $0x20] sm:$0xf]
    %v608 = vld [vmem:[%s6] sm:$0x1]
    %v610 = vlaneseq
    %v611 = vshrl.u32 %v610, 7
    %v612 = vsub.s32 0, %v611
    %v613 = vrot.slane %v608, %v612
    %v624 = vunpack.c.l.b16 %v599
    %v625 = vunpack.c.l.b16 %v600
    %v626 = vunpack.c.l.b16 %v601
    %v627 = vunpack.c.l.b16 %v602
    %v628 = vunpack.c.l.b16 %v603
    %v629 = vunpack.c.l.b16 %v604
    %v630 = vunpack.c.l.b16 %v605
    %v631 = vunpack.c.l.b16 %v606
    %v632 = vunpack.c.l.b16 %v607
    %v633 = vpack.c.b16 %v625, %v624
    %v634 = vpack.c.b16 %v627, %v626
    %v635 = vpack.c.b16 %v629, %v628
    %v636 = vpack.c.b16 %v631, %v630
    %v637 = vpack.c.b16 %v632, %v632
    %vm642 = vcmask 588800
    %v644 = vsel %vm642, %v598, 0
    %v647 = vsel %vm121, %v637, 0
    %649 = vmatprep.subr.bf16.mxu0 0
    %650 = vmatpush1.bf16.msra.mxu0 0
    %651 = vmatprep.subr.bf16.mxu0 0
    %652 = vmatpush1.bf16.msra.mxu0 0
    %653 = vmatprep.subr.bf16.mxu0 0
    %654 = vmatpush1.bf16.msra.mxu0 0
    %655 = vmatprep.subr.bf16.mxu0 0
    %656 = vmatpush1.bf16.msra.mxu0 %v647
    %657 = vmatprep.subr.bf16.mxu0 0
    %658 = vmatpush1.bf16.msra.mxu0 %v636
    %659 = vmatprep.subr.bf16.mxu0 0
    %660 = vmatpush1.bf16.msra.mxu0 %v635
    %661 = vmatprep.subr.bf16.mxu0 0
    %662 = vmatpush1.bf16.msra.mxu0 %v634
    %663 = vmatprep.subr.bf16.mxu0 0
    %664 = vmatpush1.bf16.msra.mxu0 %v633
    %665 = vmatprep.subr.bf16.mxu0 0
    %666 = vmatpush2.bf16.msra.mxu0 0
    %667 = vmatprep.subr.bf16.mxu0 0
    %668 = vmatpush2.bf16.msra.mxu0 0
    %669 = vmatprep.subr.bf16.mxu0 0
    %670 = vmatpush2.bf16.msra.mxu0 0
    %671 = vmatprep.subr.bf16.mxu0 0
    %672 = vmatpush2.bf16.msra.mxu0 0
    %673 = vmatprep.subr.bf16.mxu0 0
    %674 = vmatpush2.bf16.msra.mxu0 0
    %675 = vmatprep.subr.bf16.mxu0 0
    %676 = vmatpush2.bf16.msra.mxu0 0
    %677 = vmatprep.subr.bf16.mxu0 0
    %678 = vmatpush2.bf16.msra.mxu0 0
    %679 = vmatprep.subr.bf16.mxu0 0
    %680 = vmatpush2.bf16.msra.mxu0 0
    %681 = vmatprep.mubr.bf16.mxu0 0
    %682 = vmatmul.mubr.bf16.gmra.mxu0 %v644
    %v683 = vpop.f32.mrf.mxu0
    %v684 = vadd.f32 %v613, %v683
    %v685 = vpop.f32.mrf.mxu0
    %v686 = vpop.f32.mrf.mxu0
    %v687 = vpop.f32.mrf.mxu0
    %688 = vdwg.mxu0
    %v689 = vmax.f32 %v684, 0.0
    %v690 = vcombine.high %v419, %v419
    %v692 = vunpack.c.l.s4 1983009808
    %v693 = vunpack.c.0.s8 %v692
    %v694 = vlaneseq
    %v695 = vshrl.u32 %v694, 7
    %v696 = vsub.s32 %v693, %v695
    %v697 = vrot.slane %v419, %v696
    %v699 = vunpack.c.l.s4 1983009808
    %v700 = vunpack.c.0.s8 %v699
    %v701 = vlaneseq
    %v702 = vshrl.u32 %v701, 7
    %v703 = vsub.s32 %v700, %v702
    %v704 = vrot.slane %v690, %v703
    %v705 = vcombine.high %v697, %v697
    %v706 = vcombine.high %v704, %v704
    %v707 = vlaneseq
    %v708 = vshrl.u32 %v707, 7
    %v709 = vsub.s32 0, %v708
    %v710 = vrot.slane %v166, %v709
    %v711 = vlaneseq
    %v712 = vshrl.u32 %v711, 7
    %v713 = vsub.s32 0, %v712
    %v714 = vrot.slane %v420, %v713
    %v715 = vlaneseq
    %v716 = vshrl.u32 %v715, 7
    %v717 = vsub.s32 0, %v716
    %v718 = vrot.slane %v167, %v717
    %v719 = vlaneseq
    %v720 = vshrl.u32 %v719, 7
    %v721 = vsub.s32 0, %v720
    %v722 = vrot.slane %v437, %v721
    %v723 = vsel %vm283, %v714, %v710
    %v724 = vsel %vm220, %v718, %v723
    %v725 = vsel %vm286, %v722, %v724
    %v727 = vlaneseq
    %v728 = vshrl.u32 %v727, 7
    %v729 = vsub.s32 0, %v728
    %v730 = vrot.slane %v697, %v729
    %v731 = vlaneseq
    %v732 = vshrl.u32 %v731, 7
    %v733 = vsub.s32 0, %v732
    %v734 = vrot.slane %v705, %v733
    %v735 = vlaneseq
    %v736 = vshrl.u32 %v735, 7
    %v737 = vsub.s32 0, %v736
    %v738 = vrot.slane %v704, %v737
    %v739 = vlaneseq
    %v740 = vshrl.u32 %v739, 7
    %v741 = vsub.s32 0, %v740
    %v742 = vrot.slane %v706, %v741
    %v743 = vsel %vm283, %v734, %v730
    %v744 = vsel %vm220, %v738, %v743
    %v745 = vsel %vm286, %v742, %v744
    %746 = vrot.lane.b32.xlu0 %v745, 8
    %v747 = vpop.permute.xlu0 %746
    %750 = vrot.lane.b32.xlu0 %v689, 24
    %v751 = vpop.permute.xlu0 %750
    %v753 = vsel %vm91, %v725, %v747
    %v754 = vsel %vm117, %v753, %v751
    %v757 = vunpack.c.l.s4 1966171168
    %v758 = vunpack.c.0.s8 %v757
    %v759 = vlaneseq
    %v760 = vshrl.u32 %v759, 7
    %v761 = vsub.s32 %v758, %v760
    %v762 = vrot.slane %v754, %v761
    %v763 = vcombine.high %v762, %v762
    %v765 = vunpack.c.l.s4 1966171168
    %v766 = vunpack.c.0.s8 %v765
    %v767 = vlaneseq
    %v768 = vshrl.u32 %v767, 7
    %v769 = vsub.s32 %v766, %v768
    %v770 = vrot.slane %v762, %v769
    %v772 = vunpack.c.l.s4 1966171168
    %v773 = vunpack.c.0.s8 %v772
    %v774 = vlaneseq
    %v775 = vshrl.u32 %v774, 7
    %v776 = vsub.s32 %v773, %v775
    %v777 = vrot.slane %v763, %v776
    %v778 = vcombine.high %v770, %v770
    %v779 = vcombine.high %v777, %v777
    %v780 = vlaneseq
    %v781 = vshrl.u32 %v780, 7
    %v782 = vsub.s32 0, %v781
    %v783 = vrot.slane %v770, %v782
    %v784 = vlaneseq
    %v785 = vshrl.u32 %v784, 7
    %v786 = vsub.s32 0, %v785
    %v787 = vrot.slane %v777, %v786
    %v788 = vlaneseq
    %v789 = vshrl.u32 %v788, 7
    %v790 = vsub.s32 0, %v789
    %v791 = vrot.slane %v778, %v790
    %v792 = vlaneseq
    %v793 = vshrl.u32 %v792, 7
    %v794 = vsub.s32 0, %v793
    %v795 = vrot.slane %v779, %v794
    %v796 = vcombine.low %v783, %v787
    %v797 = vcombine.low %v791, %v795
    %v799 = vunpack.c.l.s4 1983009808
    %v800 = vunpack.c.0.s8 %v799
    %v801 = vlaneseq
    %v802 = vshrl.u32 %v801, 7
    %v803 = vsub.s32 %v800, %v802
    %v804 = vrot.slane %v796, %v803
    %v806 = vunpack.c.l.s4 1983009808
    %v807 = vunpack.c.0.s8 %v806
    %v808 = vlaneseq
    %v809 = vshrl.u32 %v808, 7
    %v810 = vsub.s32 %v807, %v809
    %v811 = vrot.slane %v797, %v810
    %v812 = vcombine.low %v804, %v811
    %v813 = vrot.slane %v812, 7
    %v815 = vsel %vm56, 0.0, %v813
    %v816 = vsel %vm56, %v813, 0.0
    %v819 = vrot.slane %v815, 1
    %v820 = vrot.slane %v816, 1
    %v821 = vsel %vm67, %v819, %v820
    %822 = vrot.lane.b32.xlu0 %v821, 56
    %v823 = vpop.permute.xlu0 %822
    %v825 = vrot.slane %v815, 2
    %v826 = vrot.slane %v816, 2
    %v827 = vsel %vm79, %v825, %v826
    %828 = vrot.lane.b32.xlu0 %v827, 112
    %v829 = vpop.permute.xlu0 %828
    %vm831 = vcmask 457728
    %v832 = vsel %vm831, %v815, %v823
    %vm833 = vcmask 916480
    %v834 = vsel %vm833, %v832, %v829
    %v835 = vpack.c.bf16 %v834, %v834
    %v836 = vpack.c.bf16 %v829, %v829
    %v837 = vld [vmem:[%s7] sm:$0xf]
    %v838 = vld [vmem:[%s7 + $0x4] sm:$0xf]
    %v839 = vld [vmem:[%s7 + $0x8] sm:$0xf]
    %v840 = vld [vmem:[%s7 + $0xc] sm:$0xf]
    %v841 = vld [vmem:[%s7 + $0x10] sm:$0xf]
    %v842 = vld [vmem:[%s7 + $0x14] sm:$0xf]
    %v843 = vld [vmem:[%s7 + $0x18] sm:$0xf]
    %v844 = vld [vmem:[%s7 + $0x1c] sm:$0xf]
    %v845 = vld [vmem:[%s7 + $0x20] sm:$0xf]
    %v846 = vld [vmem:[%s7 + $0x24] sm:$0xf]
    %v847 = vld [vmem:[%s7 + $0x28] sm:$0xf]
    %v848 = vld [vmem:[%s7 + $0x2c] sm:$0xf]
    %v849 = vld [vmem:[%s7 + $0x30] sm:$0xf]
    %v850 = vld [vmem:[%s7 + $0x34] sm:$0xf]
    %v851 = vld [vmem:[%s7 + $0x38] sm:$0xf]
    %v852 = vld [vmem:[%s7 + $0x3c] sm:$0xf]
    %v853 = vld [vmem:[%s7 + $0x40] sm:$0xf]
    %v854 = vld [vmem:[%s7 + $0x44] sm:$0xf]
    %v855 = vld [vmem:[%s7 + $0x48] sm:$0xf]
    %v856 = vld [vmem:[%s7 + $0x4c] sm:$0xf]
    %v857 = vld [vmem:[%s7 + $0x50] sm:$0xf]
    %v858 = vld [vmem:[%s8] sm:$0x1]
    %v860 = vlaneseq
    %v861 = vshrl.u32 %v860, 7
    %v862 = vsub.s32 0, %v861
    %v863 = vrot.slane %v858, %v862
    %v886 = vunpack.c.l.b16 %v837
    %v887 = vunpack.c.l.b16 %v838
    %v888 = vunpack.c.l.b16 %v839
    %v889 = vunpack.c.l.b16 %v840
    %v890 = vunpack.c.l.b16 %v841
    %v891 = vunpack.c.l.b16 %v842
    %v892 = vunpack.c.l.b16 %v843
    %v893 = vunpack.c.l.b16 %v844
    %v894 = vunpack.c.l.b16 %v845
    %v895 = vunpack.c.l.b16 %v846
    %v896 = vunpack.c.l.b16 %v847
    %v897 = vunpack.c.l.b16 %v848
    %v898 = vunpack.c.l.b16 %v849
    %v899 = vunpack.c.l.b16 %v850
    %v900 = vunpack.c.l.b16 %v851
    %v901 = vunpack.c.l.b16 %v852
    %v902 = vunpack.c.l.b16 %v853
    %v903 = vunpack.c.l.b16 %v854
    %v904 = vunpack.c.l.b16 %v855
    %v905 = vunpack.c.l.b16 %v856
    %v906 = vunpack.c.l.b16 %v857
    %v907 = vpack.c.b16 %v887, %v886
    %v908 = vpack.c.b16 %v889, %v888
    %v909 = vpack.c.b16 %v891, %v890
    %v910 = vpack.c.b16 %v893, %v892
    %v911 = vpack.c.b16 %v895, %v894
    %v912 = vpack.c.b16 %v897, %v896
    %v913 = vpack.c.b16 %v899, %v898
    %v914 = vpack.c.b16 %v901, %v900
    %v915 = vpack.c.b16 %v903, %v902
    %v916 = vpack.c.b16 %v905, %v904
    %v917 = vpack.c.b16 %v906, %v906
    %vm928 = vcmask 326656
    %v930 = vsel %vm928, %v836, 0
    %v933 = vsel %vm121, %v917, 0
    %935 = vmatprep.subr.bf16.mxu0 0
    %936 = vmatpush1.bf16.msra.mxu0 %v914
    %937 = vmatprep.subr.bf16.mxu0 0
    %938 = vmatpush1.bf16.msra.mxu0 %v913
    %939 = vmatprep.subr.bf16.mxu0 0
    %940 = vmatpush1.bf16.msra.mxu0 %v912
    %941 = vmatprep.subr.bf16.mxu0 0
    %942 = vmatpush1.bf16.msra.mxu0 %v911
    %943 = vmatprep.subr.bf16.mxu0 0
    %944 = vmatpush1.bf16.msra.mxu0 %v910
    %945 = vmatprep.subr.bf16.mxu0 0
    %946 = vmatpush1.bf16.msra.mxu0 %v909
    %947 = vmatprep.subr.bf16.mxu0 0
    %948 = vmatpush1.bf16.msra.mxu0 %v908
    %949 = vmatprep.subr.bf16.mxu0 0
    %950 = vmatpush1.bf16.msra.mxu0 %v907
    %951 = vmatprep.subr.bf16.mxu0 0
    %952 = vmatpush2.bf16.msra.mxu0 0
    %953 = vmatprep.subr.bf16.mxu0 0
    %954 = vmatpush2.bf16.msra.mxu0 0
    %955 = vmatprep.subr.bf16.mxu0 0
    %956 = vmatpush2.bf16.msra.mxu0 0
    %957 = vmatprep.subr.bf16.mxu0 0
    %958 = vmatpush2.bf16.msra.mxu0 0
    %959 = vmatprep.subr.bf16.mxu0 0
    %960 = vmatpush2.bf16.msra.mxu0 0
    %961 = vmatprep.subr.bf16.mxu0 0
    %962 = vmatpush2.bf16.msra.mxu0 %v933
    %963 = vmatprep.subr.bf16.mxu0 0
    %964 = vmatpush2.bf16.msra.mxu0 %v916
    %965 = vmatprep.subr.bf16.mxu0 0
    %966 = vmatpush2.bf16.msra.mxu0 %v915
    %967 = vmatprep.mubr.bf16.mxu0 %v930
    %968 = vmatmul.mubr.bf16.gmra.mxu0 %v835
    %v969 = vpop.f32.mrf.mxu0
    %v970 = vadd.f32 %v863, %v969
    %v971 = vpop.f32.mrf.mxu0
    %v972 = vpop.f32.mrf.mxu0
    %v973 = vpop.f32.mrf.mxu0
    %974 = vdwg.mxu0
    %v975 = vmax.f32 %v970, 0.0
    %v977 = vunpack.c.l.s4 1966171168
    %v978 = vunpack.c.0.s8 %v977
    %v979 = vlaneseq
    %v980 = vshrl.u32 %v979, 7
    %v981 = vsub.s32 %v978, %v980
    %v982 = vrot.slane %v689, %v981
    %v983 = vcombine.high %v982, %v982
    %v985 = vunpack.c.l.s4 1966171168
    %v986 = vunpack.c.0.s8 %v985
    %v987 = vlaneseq
    %v988 = vshrl.u32 %v987, 7
    %v989 = vsub.s32 %v986, %v988
    %v990 = vrot.slane %v982, %v989
    %v992 = vunpack.c.l.s4 1966171168
    %v993 = vunpack.c.0.s8 %v992
    %v994 = vlaneseq
    %v995 = vshrl.u32 %v994, 7
    %v996 = vsub.s32 %v993, %v995
    %v997 = vrot.slane %v983, %v996
    %v998 = vcombine.high %v990, %v990
    %v999 = vcombine.high %v997, %v997
    %v1000 = vlaneseq
    %v1001 = vshrl.u32 %v1000, 7
    %v1002 = vsub.s32 0, %v1001
    %v1003 = vrot.slane %v990, %v1002
    %v1004 = vlaneseq
    %v1005 = vshrl.u32 %v1004, 7
    %v1006 = vsub.s32 0, %v1005
    %v1007 = vrot.slane %v997, %v1006
    %v1008 = vlaneseq
    %v1009 = vshrl.u32 %v1008, 7
    %v1010 = vsub.s32 0, %v1009
    %v1011 = vrot.slane %v998, %v1010
    %v1012 = vlaneseq
    %v1013 = vshrl.u32 %v1012, 7
    %v1014 = vsub.s32 0, %v1013
    %v1015 = vrot.slane %v999, %v1014
    %v1016 = vcombine.low %v1003, %v1007
    %v1017 = vcombine.low %v1011, %v1015
    %v1019 = vunpack.c.l.s4 1983009808
    %v1020 = vunpack.c.0.s8 %v1019
    %v1021 = vlaneseq
    %v1022 = vshrl.u32 %v1021, 7
    %v1023 = vsub.s32 %v1020, %v1022
    %v1024 = vrot.slane %v1016, %v1023
    %v1026 = vunpack.c.l.s4 1983009808
    %v1027 = vunpack.c.0.s8 %v1026
    %v1028 = vlaneseq
    %v1029 = vshrl.u32 %v1028, 7
    %v1030 = vsub.s32 %v1027, %v1029
    %v1031 = vrot.slane %v1017, %v1030
    %v1032 = vcombine.low %v1024, %v1031
    %1033 = vrot.lane.b32.xlu0 %v1032, 24
    %v1034 = vpop.permute.xlu0 %1033
    %1037 = vrot.lane.b32.xlu0 %v975, 56
    %v1038 = vpop.permute.xlu0 %1037
    %v1040 = vsel %vm117, %v498, %v1034
    %v1041 = vsel %vm831, %v1040, %v1038
    %v1043 = vrot.slane %v1041, 7
    %v1045 = vsel %vm56, 0.0, %v1043
    %v1046 = vsel %vm56, %v1043, 0.0
    %v1049 = vrot.slane %v1045, 1
    %v1050 = vrot.slane %v1046, 1
    %v1051 = vsel %vm67, %v1049, %v1050
    %1052 = vrot.lane.b32.xlu0 %v1051, 72
    %v1053 = vpop.permute.xlu0 %1052
    %v1055 = vrot.slane %v1045, 2
    %v1056 = vrot.slane %v1046, 2
    %v1057 = vsel %vm79, %v1055, %v1056
    %1058 = vrot.lane.b32.xlu0 %v1057, 16
    %v1059 = vpop.permute.xlu0 %1058
    %v1061 = vsel %vm642, %v1045, %v1053
    %v1062 = vsel %vm94, %v1053, %v1059
    %v1063 = vpack.c.bf16 %v1061, %v1061
    %v1064 = vpack.c.bf16 %v1062, %v1062
    %v1065 = vld [vmem:[%s9] sm:$0xf]
    %v1066 = vld [vmem:[%s9 + $0x4] sm:$0xf]
    %v1067 = vld [vmem:[%s9 + $0x8] sm:$0xf]
    %v1068 = vld [vmem:[%s9 + $0xc] sm:$0xf]
    %v1069 = vld [vmem:[%s9 + $0x10] sm:$0xf]
    %v1070 = vld [vmem:[%s9 + $0x14] sm:$0xf]
    %v1071 = vld [vmem:[%s9 + $0x18] sm:$0xf]
    %v1072 = vld [vmem:[%s9 + $0x1c] sm:$0xf]
    %v1073 = vld [vmem:[%s9 + $0x20] sm:$0xf]
    %v1074 = vld [vmem:[%s9 + $0x24] sm:$0xf]
    %v1075 = vld [vmem:[%s9 + $0x28] sm:$0xf]
    %v1076 = vld [vmem:[%s9 + $0x2c] sm:$0xf]
    %v1077 = vld [vmem:[%s9 + $0x30] sm:$0xf]
    %v1078 = vld [vmem:[%s9 + $0x34] sm:$0xf]
    %v1079 = vld [vmem:[%s9 + $0x38] sm:$0xf]
    %v1080 = vld [vmem:[%s9 + $0x3c] sm:$0xf]
    %v1081 = vld [vmem:[%s9 + $0x40] sm:$0xf]
    %v1082 = vld [vmem:[%s9 + $0x44] sm:$0xf]
    %v1083 = vld [vmem:[%s9 + $0x48] sm:$0xf]
    %v1084 = vld [vmem:[%s9 + $0x4c] sm:$0xf]
    %v1085 = vld [vmem:[%s9 + $0x50] sm:$0xf]
    %v1086 = vld [vmem:[%s9 + $0x54] sm:$0xf]
    %v1087 = vld [vmem:[%s9 + $0x58] sm:$0xf]
    %v1088 = vld [vmem:[%s9 + $0x5c] sm:$0xf]
    %v1089 = vld [vmem:[%s9 + $0x60] sm:$0xf]
    %v1090 = vld [vmem:[%s9 + $0x64] sm:$0xf]
    %v1091 = vld [vmem:[%s9 + $0x68] sm:$0xf]
    %v1092 = vld [vmem:[%s10] sm:$0x1]
    %v1094 = vlaneseq
    %v1095 = vshrl.u32 %v1094, 7
    %v1096 = vsub.s32 0, %v1095
    %v1097 = vrot.slane %v1092, %v1096
    %v1126 = vunpack.c.l.b16 %v1065
    %v1127 = vunpack.c.l.b16 %v1066
    %v1128 = vunpack.c.l.b16 %v1067
    %v1129 = vunpack.c.l.b16 %v1068
    %v1130 = vunpack.c.l.b16 %v1069
    %v1131 = vunpack.c.l.b16 %v1070
    %v1132 = vunpack.c.l.b16 %v1071
    %v1133 = vunpack.c.l.b16 %v1072
    %v1134 = vunpack.c.l.b16 %v1073
    %v1135 = vunpack.c.l.b16 %v1074
    %v1136 = vunpack.c.l.b16 %v1075
    %v1137 = vunpack.c.l.b16 %v1076
    %v1138 = vunpack.c.l.b16 %v1077
    %v1139 = vunpack.c.l.b16 %v1078
    %v1140 = vunpack.c.l.b16 %v1079
    %v1141 = vunpack.c.l.b16 %v1080
    %v1142 = vunpack.c.l.b16 %v1081
    %v1143 = vunpack.c.l.b16 %v1082
    %v1144 = vunpack.c.l.b16 %v1083
    %v1145 = vunpack.c.l.b16 %v1084
    %v1146 = vunpack.c.l.b16 %v1085
    %v1147 = vunpack.c.l.b16 %v1086
    %v1148 = vunpack.c.l.b16 %v1087
    %v1149 = vunpack.c.l.b16 %v1088
    %v1150 = vunpack.c.l.b16 %v1089
    %v1151 = vunpack.c.l.b16 %v1090
    %v1152 = vunpack.c.l.b16 %v1091
    %v1153 = vpack.c.b16 %v1127, %v1126
    %v1154 = vpack.c.b16 %v1129, %v1128
    %v1155 = vpack.c.b16 %v1131, %v1130
    %v1156 = vpack.c.b16 %v1133, %v1132
    %v1157 = vpack.c.b16 %v1135, %v1134
    %v1158 = vpack.c.b16 %v1137, %v1136
    %v1159 = vpack.c.b16 %v1139, %v1138
    %v1160 = vpack.c.b16 %v1141, %v1140
    %v1161 = vpack.c.b16 %v1143, %v1142
    %v1162 = vpack.c.b16 %v1145, %v1144
    %v1163 = vpack.c.b16 %v1147, %v1146
    %v1164 = vpack.c.b16 %v1149, %v1148
    %v1165 = vpack.c.b16 %v1151, %v1150
    %v1166 = vpack.c.b16 %v1152, %v1152
    %vm1180 = vcmask 719872
    %v1182 = vsel %vm1180, %v1064, 0
    %v1185 = vsel %vm121, %v1166, 0
    %1187 = vmatprep.subr.bf16.mxu0 0
    %1188 = vmatpush1.bf16.msra.mxu0 %v1160
    %1189 = vmatprep.subr.bf16.mxu0 0
    %1190 = vmatpush1.bf16.msra.mxu0 %v1159
    %1191 = vmatprep.subr.bf16.mxu0 0
    %1192 = vmatpush1.bf16.msra.mxu0 %v1158
    %1193 = vmatprep.subr.bf16.mxu0 0
    %1194 = vmatpush1.bf16.msra.mxu0 %v1157
    %1195 = vmatprep.subr.bf16.mxu0 0
    %1196 = vmatpush1.bf16.msra.mxu0 %v1156
    %1197 = vmatprep.subr.bf16.mxu0 0
    %1198 = vmatpush1.bf16.msra.mxu0 %v1155
    %1199 = vmatprep.subr.bf16.mxu0 0
    %1200 = vmatpush1.bf16.msra.mxu0 %v1154
    %1201 = vmatprep.subr.bf16.mxu0 0
    %1202 = vmatpush1.bf16.msra.mxu0 %v1153
    %1203 = vmatprep.subr.bf16.mxu0 0
    %1204 = vmatpush2.bf16.msra.mxu0 0
    %1205 = vmatprep.subr.bf16.mxu0 0
    %1206 = vmatpush2.bf16.msra.mxu0 0
    %1207 = vmatprep.subr.bf16.mxu0 0
    %1208 = vmatpush2.bf16.msra.mxu0 %v1185
    %1209 = vmatprep.subr.bf16.mxu0 0
    %1210 = vmatpush2.bf16.msra.mxu0 %v1165
    %1211 = vmatprep.subr.bf16.mxu0 0
    %1212 = vmatpush2.bf16.msra.mxu0 %v1164
    %1213 = vmatprep.subr.bf16.mxu0 0
    %1214 = vmatpush2.bf16.msra.mxu0 %v1163
    %1215 = vmatprep.subr.bf16.mxu0 0
    %1216 = vmatpush2.bf16.msra.mxu0 %v1162
    %1217 = vmatprep.subr.bf16.mxu0 0
    %1218 = vmatpush2.bf16.msra.mxu0 %v1161
    %1219 = vmatprep.mubr.bf16.mxu0 %v1182
    %1220 = vmatmul.mubr.bf16.gmra.mxu0 %v1063
    %v1221 = vpop.f32.mrf.mxu0
    %v1222 = vadd.f32 %v1097, %v1221
    %v1223 = vpop.f32.mrf.mxu0
    %v1224 = vpop.f32.mrf.mxu0
    %v1225 = vpop.f32.mrf.mxu0
    %1226 = vdwg.mxu0
    %v1227 = vmax.f32 %v1222, 0.0
    %v1229 = vrot.slane %v1227, 7
    %v1231 = vsel %vm56, 0.0, %v1229
    %v1232 = vsel %vm56, %v1229, 0.0
    %v1235 = vrot.slane %v1231, 1
    %v1236 = vrot.slane %v1232, 1
    %v1237 = vsel %vm67, %v1235, %v1236
    %1238 = vrot.lane.b32.xlu0 %v1237, 8
    %v1239 = vpop.permute.xlu0 %1238
    %v1241 = vrot.slane %v1231, 2
    %v1242 = vrot.slane %v1232, 2
    %v1243 = vsel %vm79, %v1241, %v1242
    %1244 = vrot.lane.b32.xlu0 %v1243, 16
    %v1245 = vpop.permute.xlu0 %1244
    %v1247 = vsel %vm91, %v1231, %v1239
    %v1248 = vsel %vm94, %v1247, %v1245
    %v1249 = vpack.c.bf16 %v1248, %v1248
    %v1250 = vld [vmem:[%s11] sm:$0xf]
    %v1251 = vld [vmem:[%s11 + $0x4] sm:$0xf]
    %v1252 = vld [vmem:[%s11 + $0x8] sm:$0xf]
    %v1253 = vld [vmem:[%s12] sm:$0x1]
    %v1255 = vlaneseq
    %v1256 = vshrl.u32 %v1255, 7
    %v1257 = vsub.s32 0, %v1256
    %v1258 = vrot.slane %v1253, %v1257
    %v1263 = vunpack.c.l.b16 %v1250
    %v1264 = vunpack.c.l.b16 %v1251
    %v1265 = vunpack.c.l.b16 %v1252
    %v1266 = vpack.c.b16 %v1264, %v1263
    %v1267 = vpack.c.b16 %v1265, %v1265
    %v1270 = vsel %vm117, %v1249, 0
    %v1273 = vsel %vm121, %v1267, 0
    %1275 = vmatprep.subr.bf16.mxu0 0
    %1276 = vmatpush1.bf16.msra.mxu0 0
    %1277 = vmatprep.subr.bf16.mxu0 0
    %1278 = vmatpush1.bf16.msra.mxu0 0
    %1279 = vmatprep.subr.bf16.mxu0 0
    %1280 = vmatpush1.bf16.msra.mxu0 0
    %1281 = vmatprep.subr.bf16.mxu0 0
    %1282 = vmatpush1.bf16.msra.mxu0 0
    %1283 = vmatprep.subr.bf16.mxu0 0
    %1284 = vmatpush1.bf16.msra.mxu0 0
    %1285 = vmatprep.subr.bf16.mxu0 0
    %1286 = vmatpush1.bf16.msra.mxu0 0
    %1287 = vmatprep.subr.bf16.mxu0 0
    %1288 = vmatpush1.bf16.msra.mxu0 %v1273
    %1289 = vmatprep.subr.bf16.mxu0 0
    %1290 = vmatpush1.bf16.msra.mxu0 %v1266
    %1291 = vmatprep.subr.bf16.mxu0 0
    %1292 = vmatpush2.bf16.msra.mxu0 0
    %1293 = vmatprep.subr.bf16.mxu0 0
    %1294 = vmatpush2.bf16.msra.mxu0 0
    %1295 = vmatprep.subr.bf16.mxu0 0
    %1296 = vmatpush2.bf16.msra.mxu0 0
    %1297 = vmatprep.subr.bf16.mxu0 0
    %1298 = vmatpush2.bf16.msra.mxu0 0
    %1299 = vmatprep.subr.bf16.mxu0 0
    %1300 = vmatpush2.bf16.msra.mxu0 0
    %1301 = vmatprep.subr.bf16.mxu0 0
    %1302 = vmatpush2.bf16.msra.mxu0 0
    %1303 = vmatprep.subr.bf16.mxu0 0
    %1304 = vmatpush2.bf16.msra.mxu0 0
    %1305 = vmatprep.subr.bf16.mxu0 0
    %1306 = vmatpush2.bf16.msra.mxu0 0
    %1307 = vmatprep.mubr.bf16.mxu0 0
    %1308 = vmatmul.mubr.bf16.gmra.mxu0 %v1270
    %v1309 = vpop.f32.mrf.mxu0
    %v1310 = vadd.f32 %v1258, %v1309
    %v1311 = vpop.f32.mrf.mxu0
    %v1312 = vpop.f32.mrf.mxu0
    %v1313 = vpop.f32.mrf.mxu0
    %1314 = vdwg.mxu0
    %v1315 = vmax.f32 %v1310, 0.0
    %v1316 = vpack.c.bf16 %v1315, %v1315
    %v1317 = vld [vmem:[%s13] sm:$0xf]
    %v1318 = vld [vmem:[%s14] sm:$0x1]
    %v1320 = vlaneseq
    %v1321 = vshrl.u32 %v1320, 7
    %v1322 = vsub.s32 0, %v1321
    %v1323 = vrot.slane %v1318, %v1322
    %v1326 = vsel %vm91, %v1316, 0
    %v1329 = vsel %vm121, %v1317, 0
    %1331 = vmatprep.subr.bf16.mxu0 0
    %1332 = vmatpush1.bf16.msra.mxu0 0
    %1333 = vmatprep.subr.bf16.mxu0 0
    %1334 = vmatpush1.bf16.msra.mxu0 0
    %1335 = vmatprep.subr.bf16.mxu0 0
    %1336 = vmatpush1.bf16.msra.mxu0 0
    %1337 = vmatprep.subr.bf16.mxu0 0
    %1338 = vmatpush1.bf16.msra.mxu0 0
    %1339 = vmatprep.subr.bf16.mxu0 0
    %1340 = vmatpush1.bf16.msra.mxu0 0
    %1341 = vmatprep.subr.bf16.mxu0 0
    %1342 = vmatpush1.bf16.msra.mxu0 0
    %1343 = vmatprep.subr.bf16.mxu0 0
    %1344 = vmatpush1.bf16.msra.mxu0 0
    %1345 = vmatprep.subr.bf16.mxu0 0
    %1346 = vmatpush1.bf16.msra.mxu0 %v1329
    %1347 = vmatprep.subr.bf16.mxu0 0
    %1348 = vmatpush2.bf16.msra.mxu0 0
    %1349 = vmatprep.subr.bf16.mxu0 0
    %1350 = vmatpush2.bf16.msra.mxu0 0
    %1351 = vmatprep.subr.bf16.mxu0 0
    %1352 = vmatpush2.bf16.msra.mxu0 0
    %1353 = vmatprep.subr.bf16.mxu0 0
    %1354 = vmatpush2.bf16.msra.mxu0 0
    %1355 = vmatprep.subr.bf16.mxu0 0
    %1356 = vmatpush2.bf16.msra.mxu0 0
    %1357 = vmatprep.subr.bf16.mxu0 0
    %1358 = vmatpush2.bf16.msra.mxu0 0
    %1359 = vmatprep.subr.bf16.mxu0 0
    %1360 = vmatpush2.bf16.msra.mxu0 0
    %1361 = vmatprep.subr.bf16.mxu0 0
    %1362 = vmatpush2.bf16.msra.mxu0 0
    %1363 = vmatprep.mubr.bf16.mxu0 0
    %1364 = vmatmul.mubr.bf16.gmra.mxu0 %v1326
    %v1365 = vpop.f32.mrf.mxu0
    %v1366 = vadd.f32 %v1323, %v1365
    %v1367 = vpop.f32.mrf.mxu0
    %v1368 = vpop.f32.mrf.mxu0
    %v1369 = vpop.f32.mrf.mxu0
    %1370 = vdwg.mxu0
    %1371 = vst.msk [vmem:[#allocation2] sm:$0xff] %vm91, %v1366
    // Predicated region
    $region62: #{tpu_custom_call.1} parent=1 // pred_check
      _
    $region63: #{tpu_custom_call.1} parent=1 // pred_check_branch
      %1373 = sbr.rel (0) target = $region65
    $region64: #{tpu_custom_call.1} parent=1 // pred_region
      %s1375 = ssub.s32 128, 128
      %1376 = vsyncadd [#allocation3], %s1375
      %s1378 = sshll.u32 [#allocation2], 4
      %s1379 = int_to_ptr.vmem [resolvable:$true] %s1378
      %1381 = dma.vmem_to_hbm [thread:$0]  %s1379, 128, %s15, [#allocation3]
    $region65: #{tpu_custom_call.1} parent=1 // pred_fallthru
      _
    // Predicated region
    $region66: #{tpu_custom_call.1} parent=1 // pred_check
      _
    $region67: #{tpu_custom_call.1} parent=1 // pred_check_branch
      %1383 = sbr.rel (0) target = $region69
    $region68: #{tpu_custom_call.1} parent=1 // pred_region
      %1384 = dma.done [#allocation3], 128
    $region69: #{tpu_custom_call.1} parent=1 // pred_fallthru
      _
    %1385 = vsyncpa [#allocation3], 1

// kernel: tpu_custom_call.1
$region0: #{tpu_custom_call.1}
  #allocation0 [shape = 'u32[]', space=smem, size = 0x4, offset = 0x4, fixed_abs, tag = 'smem constant byte address 0x4 - core index']
  #allocation1 [shape = 'u32[144,128]{1,0:T(1,128)}', space=vmem, size = 0x12000, scoped, tag = 'internal scratch']
  %s0 = inlined_call_operand.vmem [shape: f32[1,16,8], index: 0, kind: input, shape index: {}]
  %s1 = inlined_call_operand.vmem [shape: bf16[24,8], index: 1, kind: input, shape index: {}]
  %s2 = inlined_call_operand.vmem [shape: f32[1,8], index: 2, kind: input, shape index: {}]
  %s3 = inlined_call_operand.vmem [shape: bf16[24,16], index: 3, kind: input, shape index: {}]
  %s4 = inlined_call_operand.vmem [shape: f32[1,16], index: 4, kind: input, shape index: {}]
  %s5 = inlined_call_operand.vmem [shape: bf16[72,32], index: 5, kind: input, shape index: {}]
  %s6 = inlined_call_operand.vmem [shape: f32[1,32], index: 6, kind: input, shape index: {}]
  %s7 = inlined_call_operand.vmem [shape: bf16[168,16], index: 7, kind: input, shape index: {}]
  %s8 = inlined_call_operand.vmem [shape: f32[1,16], index: 8, kind: input, shape index: {}]
  %s9 = inlined_call_operand.vmem [shape: bf16[216,8], index: 9, kind: input, shape index: {}]
  %s10 = inlined_call_operand.vmem [shape: f32[1,8], index: 10, kind: input, shape index: {}]
  %s11 = inlined_call_operand.vmem [shape: bf16[24,8], index: 11, kind: input, shape index: {}]
  %s12 = inlined_call_operand.vmem [shape: f32[1,8], index: 12, kind: input, shape index: {}]
  %s13 = inlined_call_operand.vmem [shape: bf16[8,8], index: 13, kind: input, shape index: {}]
  %s14 = inlined_call_operand.vmem [shape: f32[1,8], index: 14, kind: input, shape index: {}]
  %s15 = inlined_call_operand.hbm [shape: f32[1,8,8], index: 15, kind: output, shape index: {}]
  %s16 = sld [smem:[#allocation0]]
  $region70: #{tpu_custom_call.1} parent=0
    _
  %s18 = ssub.s32 1, %s16
  %s19 = scalar_select 0, %s18, %s16
  $region1: #{tpu_custom_call.1} parent=0
    #allocation2 [shape = 'u8[4096]{0}', space=vmem, size = 0x1000, scoped, tag = 'output window, operand 0, single buffered']
    #allocation3 [shape = 's32[1]{0}', space=sflag, size = 0x4, scoped, tag = 'scoped memory for tpu_custom_call.1']
    %20 = vsyncpa [#allocation3], 0
    // Predicated region
    $region2: #{tpu_custom_call.1} parent=1 // pred_check
      _
    $region3: #{tpu_custom_call.1} parent=1 // pred_check_branch
      %22 = sbr.rel (0) target = $region5
    $region4: #{tpu_custom_call.1} parent=1 // pred_region
      _
    $region5: #{tpu_custom_call.1} parent=1 // pred_fallthru
      _
    // Predicated region
    $region6: #{tpu_custom_call.1} parent=1 // pred_check
      _
    $region7: #{tpu_custom_call.1} parent=1 // pred_check_branch
      %24 = sbr.rel (0) target = $region9
    $region8: #{tpu_custom_call.1} parent=1 // pred_region
      _
    $region9: #{tpu_custom_call.1} parent=1 // pred_fallthru
      _
    // Predicated region
    $region10: #{tpu_custom_call.1} parent=1 // pred_check
      _
    $region11: #{tpu_custom_call.1} parent=1 // pred_check_branch
      %26 = sbr.rel (0) target = $region13
    $region12: #{tpu_custom_call.1} parent=1 // pred_region
      _
    $region13: #{tpu_custom_call.1} parent=1 // pred_fallthru
      _
    // Predicated region
    $region14: #{tpu_custom_call.1} parent=1 // pred_check
      _
    $region15: #{tpu_custom_call.1} parent=1 // pred_check_branch
      %28 = sbr.rel (0) target = $region17
    $region16: #{tpu_custom_call.1} parent=1 // pred_region
      _
    $region17: #{tpu_custom_call.1} parent=1 // pred_fallthru
      _
    // Predicated region
    $region18: #{tpu_custom_call.1} parent=1 // pred_check
      _
    $region19: #{tpu_custom_call.1} parent=1 // pred_check_branch
      %30 = sbr.rel (0) target = $region21
    $region20: #{tpu_custom_call.1} parent=1 // pred_region
      _
    $region21: #{tpu_custom_call.1} parent=1 // pred_fallthru
      _
    // Predicated region
    $region22: #{tpu_custom_call.1} parent=1 // pred_check
      _
    $region23: #{tpu_custom_call.1} parent=1 // pred_check_branch
      %32 = sbr.rel (0) target = $region25
    $region24: #{tpu_custom_call.1} parent=1 // pred_region
      _
    $region25: #{tpu_custom_call.1} parent=1 // pred_fallthru
      _
    // Predicated region
    $region26: #{tpu_custom_call.1} parent=1 // pred_check
      _
    $region27: #{tpu_custom_call.1} parent=1 // pred_check_branch
      %34 = sbr.rel (0) target = $region29
    $region28: #{tpu_custom_call.1} parent=1 // pred_region
      _
    $region29: #{tpu_custom_call.1} parent=1 // pred_fallthru
      _
    // Predicated region
    $region30: #{tpu_custom_call.1} parent=1 // pred_check
      _
    $region31: #{tpu_custom_call.1} parent=1 // pred_check_branch
      %36 = sbr.rel (0) target = $region33
    $region32: #{tpu_custom_call.1} parent=1 // pred_region
      _
    $region33: #{tpu_custom_call.1} parent=1 // pred_fallthru
      _
    // Predicated region
    $region34: #{tpu_custom_call.1} parent=1 // pred_check
      _
    $region35: #{tpu_custom_call.1} parent=1 // pred_check_branch
      %38 = sbr.rel (0) target = $region37
    $region36: #{tpu_custom_call.1} parent=1 // pred_region
      _
    $region37: #{tpu_custom_call.1} parent=1 // pred_fallthru
      _
    // Predicated region
    $region38: #{tpu_custom_call.1} parent=1 // pred_check
      _
    $region39: #{tpu_custom_call.1} parent=1 // pred_check_branch
      %40 = sbr.rel (0) target = $region41
    $region40: #{tpu_custom_call.1} parent=1 // pred_region
      _
    $region41: #{tpu_custom_call.1} parent=1 // pred_fallthru
      _
    // Predicated region
    $region42: #{tpu_custom_call.1} parent=1 // pred_check
      _
    $region43: #{tpu_custom_call.1} parent=1 // pred_check_branch
      %42 = sbr.rel (0) target = $region45
    $region44: #{tpu_custom_call.1} parent=1 // pred_region
      _
    $region45: #{tpu_custom_call.1} parent=1 // pred_fallthru
      _
    // Predicated region
    $region46: #{tpu_custom_call.1} parent=1 // pred_check
      _
    $region47: #{tpu_custom_call.1} parent=1 // pred_check_branch
      %44 = sbr.rel (0) target = $region49
    $region48: #{tpu_custom_call.1} parent=1 // pred_region
      _
    $region49: #{tpu_custom_call.1} parent=1 // pred_fallthru
      _
    // Predicated region
    $region50: #{tpu_custom_call.1} parent=1 // pred_check
      _
    $region51: #{tpu_custom_call.1} parent=1 // pred_check_branch
      %46 = sbr.rel (0) target = $region53
    $region52: #{tpu_custom_call.1} parent=1 // pred_region
      _
    $region53: #{tpu_custom_call.1} parent=1 // pred_fallthru
      _
    // Predicated region
    $region54: #{tpu_custom_call.1} parent=1 // pred_check
      _
    $region55: #{tpu_custom_call.1} parent=1 // pred_check_branch
      %48 = sbr.rel (0) target = $region57
    $region56: #{tpu_custom_call.1} parent=1 // pred_region
      _
    $region57: #{tpu_custom_call.1} parent=1 // pred_fallthru
      _
    // Predicated region
    $region58: #{tpu_custom_call.1} parent=1 // pred_check
      _
    $region59: #{tpu_custom_call.1} parent=1 // pred_check_branch
      %50 = sbr.rel (0) target = $region61
    $region60: #{tpu_custom_call.1} parent=1 // pred_region
      _
    $region61: #{tpu_custom_call.1} parent=1 // pred_fallthru
      _
    %v52 = vld [vmem:[%s0] sm:$0xff]
    %v53 = vld [vmem:[%s0 + $0x8] sm:$0xff]
    %vm56 = vcmask 1040384
    %v57 = vrot.slane %v52, 7
    %v58 = vrot.slane %v53, 7
    %v59 = vsel %vm56, %v57, %v58
    %v63 = vsel %vm56, 0.0, %v57
    %v64 = vsel %vm56, %v58, 0.0
    %vm67 = vcmask 1046528
    %v68 = vrot.slane %v63, 1
    %v69 = vrot.slane %v59, 1
    %v70 = vsel %vm67, %v68, %v69
    %v71 = vrot.slane %v64, 1
    %v72 = vsel %vm67, %v69, %v71
    %73 = vrot.lane.b32.xlu0 %v70, 8
    %v74 = vpop.permute.xlu0 %73
    %75 = vrot.lane.b32.xlu0 %v72, 8
    %v76 = vpop.permute.xlu0 %75
    %vm79 = vcmask 1045504
    %v80 = vrot.slane %v63, 2
    %v81 = vrot.slane %v59, 2
    %v82 = vsel %vm79, %v80, %v81
    %v83 = vrot.slane %v64, 2
    %v84 = vsel %vm79, %v81, %v83
    %85 = vrot.lane.b32.xlu0 %v82, 16
    %v86 = vpop.permute.xlu0 %85
    %87 = vrot.lane.b32.xlu0 %v84, 16
    %v88 = vpop.permute.xlu0 %87
    %vm91 = vcmask 64512
    %v92 = vsel %vm91, %v63, %v74
    %v93 = vsel %vm91, %v59, %v76
    %vm94 = vcmask 130048
    %v95 = vsel %vm94, %v92, %v86
    %v96 = vsel %vm94, %v93, %v88
    %v97 = vpack.c.bf16 %v96, %v95
    %v98 = vld [vmem:[%s1] sm:$0xf]
    %v99 = vld [vmem:[%s1 + $0x4] sm:$0xf]
    %v100 = vld [vmem:[%s1 + $0x8] sm:$0xf]
    %v101 = vld [vmem:[%s2] sm:$0x1]
    %v103 = vlaneseq
    %v104 = vshrl.u32 %v103, 7
    %v105 = vsub.s32 0, %v104
    %v106 = vrot.slane %v101, %v105
    %v111 = vunpack.c.l.b16 %v98
    %v112 = vunpack.c.l.b16 %v99
    %v113 = vunpack.c.l.b16 %v100
    %v114 = vpack.c.b16 %v112, %v111
    %v115 = vpack.c.b16 %v113, %v113
    %vm117 = vcmask 195584
    %v119 = vsel %vm117, %v97, 0
    %vm121 = vcmask 1043456
    %v123 = vsel %vm121, %v115, 0
    %125 = vmatprep.subr.bf16.mxu0 0
    %126 = vmatpush1.bf16.msra.mxu0 0
    %127 = vmatprep.subr.bf16.mxu0 0
    %128 = vmatpush1.bf16.msra.mxu0 0
    %129 = vmatprep.subr.bf16.mxu0 0
    %130 = vmatpush1.bf16.msra.mxu0 0
    %131 = vmatprep.subr.bf16.mxu0 0
    %132 = vmatpush1.bf16.msra.mxu0 0
    %133 = vmatprep.subr.bf16.mxu0 0
    %134 = vmatpush1.bf16.msra.mxu0 0
    %135 = vmatprep.subr.bf16.mxu0 0
    %136 = vmatpush1.bf16.msra.mxu0 0
    %137 = vmatprep.subr.bf16.mxu0 0
    %138 = vmatpush1.bf16.msra.mxu0 %v123
    %139 = vmatprep.subr.bf16.mxu0 0
    %140 = vmatpush1.bf16.msra.mxu0 %v114
    %141 = vmatprep.subr.bf16.mxu0 0
    %142 = vmatpush2.bf16.msra.mxu0 0
    %143 = vmatprep.subr.bf16.mxu0 0
    %144 = vmatpush2.bf16.msra.mxu0 0
    %145 = vmatprep.subr.bf16.mxu0 0
    %146 = vmatpush2.bf16.msra.mxu0 0
    %147 = vmatprep.subr.bf16.mxu0 0
    %148 = vmatpush2.bf16.msra.mxu0 0
    %149 = vmatprep.subr.bf16.mxu0 0
    %150 = vmatpush2.bf16.msra.mxu0 0
    %151 = vmatprep.subr.bf16.mxu0 0
    %152 = vmatpush2.bf16.msra.mxu0 0
    %153 = vmatprep.subr.bf16.mxu0 0
    %154 = vmatpush2.bf16.msra.mxu0 0
    %155 = vmatprep.subr.bf16.mxu0 0
    %156 = vmatpush2.bf16.msra.mxu0 0
    %157 = vmatprep.mubr.bf16.mxu0 0
    %158 = vmatmul.mubr.bf16.gmra.mxu0 %v119
    %v159 = vpop.f32.mrf.mxu0
    %v160 = vadd.f32 %v106, %v159
    %v161 = vpop.f32.mrf.mxu0
    %v162 = vpop.f32.mrf.mxu0
    %v163 = vadd.f32 %v106, %v162
    %v164 = vpop.f32.mrf.mxu0
    %165 = vdwg.mxu0
    %v166 = vmax.f32 %v160, 0.0
    %v167 = vmax.f32 %v163, 0.0
    %v170 = vrot.slane %v166, 7
    %v171 = vrot.slane %v167, 7
    %v172 = vsel %vm56, %v170, %v171
    %v175 = vsel %vm56, 0.0, %v170
    %v176 = vsel %vm56, %v171, 0.0
    %v178 = vcombine.high %v175, %v175
    %v180 = vunpack.c.l.s4 1983009808
    %v181 = vunpack.c.0.s8 %v180
    %v182 = vlaneseq
    %v183 = vshrl.u32 %v182, 7
    %v184 = vsub.s32 %v181, %v183
    %v185 = vrot.slane %v175, %v184
    %v187 = vunpack.c.l.s4 1983009808
    %v188 = vunpack.c.0.s8 %v187
    %v189 = vlaneseq
    %v190 = vshrl.u32 %v189, 7
    %v191 = vsub.s32 %v188, %v190
    %v192 = vrot.slane %v178, %v191
    %v193 = vcombine.high %v185, %v185
    %v194 = vcombine.high %v192, %v192
    %v195 = vcombine.high %v172, %v172
    %v197 = vunpack.c.l.s4 1983009808
    %v198 = vunpack.c.0.s8 %v197
    %v199 = vlaneseq
    %v200 = vshrl.u32 %v199, 7
    %v201 = vsub.s32 %v198, %v200
    %v202 = vrot.slane %v172, %v201
    %v204 = vunpack.c.l.s4 1983009808
    %v205 = vunpack.c.0.s8 %v204
    %v206 = vlaneseq
    %v207 = vshrl.u32 %v206, 7
    %v208 = vsub.s32 %v205, %v207
    %v209 = vrot.slane %v195, %v208
    %v210 = vcombine.high %v202, %v202
    %v211 = vcombine.high %v209, %v209
    %v214 = vunpack.c.l.s4 1983009808
    %v215 = vunpack.c.0.s8 %v214
    %v216 = vlaneseq
    %v217 = vshrl.u32 %v216, 7
    %v218 = vsub.s32 %v215, %v217
    %v219 = vrot.slane %v176, %v218
    %vm220 = vcmask 1042434
    %vm221 = vmor %vm56, %vm220
    %vm222 = vcmask 1044484
    %vm223 = vmor %vm221, %vm222
    %vm224 = vcmask 1046534
    %vm225 = vmor %vm223, %vm224
    %v226 = vrot.slane %v185, 7
    %v227 = vrot.slane %v226, 2
    %v228 = vrot.slane %v193, 7
    %v229 = vsel %vm225, %v227, %v228
    %v230 = vrot.slane %v228, 2
    %v231 = vrot.slane %v192, 7
    %v232 = vsel %vm225, %v230, %v231
    %v233 = vrot.slane %v231, 2
    %v234 = vrot.slane %v194, 7
    %v235 = vsel %vm225, %v233, %v234
    %v236 = vrot.slane %v234, 2
    %v237 = vrot.slane %v202, 7
    %v238 = vsel %vm225, %v236, %v237
    %v239 = vrot.slane %v237, 2
    %v240 = vrot.slane %v210, 7
    %v241 = vsel %vm225, %v239, %v240
    %v242 = vrot.slane %v240, 2
    %v243 = vrot.slane %v209, 7
    %v244 = vsel %vm225, %v242, %v243
    %v245 = vrot.slane %v243, 2
    %v246 = vrot.slane %v211, 7
    %v247 = vsel %vm225, %v245, %v246
    %v248 = vrot.slane %v246, 2
    %v249 = vrot.slane %v219, 7
    %v250 = vsel %vm225, %v248, %v249
    %v251 = vlaneseq
    %v252 = vshrl.u32 %v251, 7
    %v253 = vsub.s32 0, %v252
    %v254 = vrot.slane %v185, %v253
    %v255 = vlaneseq
    %v256 = vshrl.u32 %v255, 7
    %v257 = vsub.s32 0, %v256
    %v258 = vrot.slane %v193, %v257
    %v259 = vlaneseq
    %v260 = vshrl.u32 %v259, 7
    %v261 = vsub.s32 0, %v260
    %v262 = vrot.slane %v192, %v261
    %v263 = vlaneseq
    %v264 = vshrl.u32 %v263, 7
    %v265 = vsub.s32 0, %v264
    %v266 = vrot.slane %v194, %v265
    %v267 = vlaneseq
    %v268 = vshrl.u32 %v267, 7
    %v269 = vsub.s32 0, %v268
    %v270 = vrot.slane %v202, %v269
    %v271 = vlaneseq
    %v272 = vshrl.u32 %v271, 7
    %v273 = vsub.s32 0, %v272
    %v274 = vrot.slane %v210, %v273
    %v275 = vlaneseq
    %v276 = vshrl.u32 %v275, 7
    %v277 = vsub.s32 0, %v276
    %v278 = vrot.slane %v209, %v277
    %v279 = vlaneseq
    %v280 = vshrl.u32 %v279, 7
    %v281 = vsub.s32 0, %v280
    %v282 = vrot.slane %v211, %v281
    %vm283 = vcmask 1041409
    %v284 = vsel %vm283, %v258, %v254
    %v285 = vsel %vm220, %v262, %v284
    %vm286 = vcmask 1043459
    %v287 = vsel %vm286, %v266, %v285
    %v288 = vsel %vm222, %v270, %v287
    %vm289 = vcmask 1045509
    %v290 = vsel %vm289, %v274, %v288
    %v291 = vsel %vm224, %v278, %v290
    %vm292 = vcmask 1047559
    %v293 = vsel %vm292, %v282, %v291
    %v295 = vlaneseq
    %v296 = vshrl.u32 %v295, 7
    %v297 = vsub.s32 0, %v296
    %v298 = vrot.slane %v229, %v297
    %v299 = vlaneseq
    %v300 = vshrl.u32 %v299, 7
    %v301 = vsub.s32 0, %v300
    %v302 = vrot.slane %v232, %v301
    %v303 = vlaneseq
    %v304 = vshrl.u32 %v303, 7
    %v305 = vsub.s32 0, %v304
    %v306 = vrot.slane %v235, %v305
    %v307 = vlaneseq
    %v308 = vshrl.u32 %v307, 7
    %v309 = vsub.s32 0, %v308
    %v310 = vrot.slane %v238, %v309
    %v311 = vlaneseq
    %v312 = vshrl.u32 %v311, 7
    %v313 = vsub.s32 0, %v312
    %v314 = vrot.slane %v241, %v313
    %v315 = vlaneseq
    %v316 = vshrl.u32 %v315, 7
    %v317 = vsub.s32 0, %v316
    %v318 = vrot.slane %v244, %v317
    %v319 = vlaneseq
    %v320 = vshrl.u32 %v319, 7
    %v321 = vsub.s32 0, %v320
    %v322 = vrot.slane %v247, %v321
    %v323 = vlaneseq
    %v324 = vshrl.u32 %v323, 7
    %v325 = vsub.s32 0, %v324
    %v326 = vrot.slane %v250, %v325
    %v327 = vsel %vm283, %v302, %v298
    %v328 = vsel %vm220, %v306, %v327
    %v329 = vsel %vm286, %v310, %v328
    %v330 = vsel %vm222, %v314, %v329
    %v331 = vsel %vm289, %v318, %v330
    %v332 = vsel %vm224, %v322, %v331
    %v333 = vsel %vm292, %v326, %v332
    %334 = vrot.lane.b32.xlu0 %v333, 8
    %v335 = vpop.permute.xlu0 %334
    %v337 = vlaneseq
    %v338 = vshrl.u32 %v337, 7
    %v339 = vsub.s32 0, %v338
    %v340 = vrot.slane %v219, %v339
    %v341 = vsel %vm283, %v262, %v258
    %v342 = vsel %vm220, %v266, %v341
    %v343 = vsel %vm286, %v270, %v342
    %v344 = vsel %vm222, %v274, %v343
    %v345 = vsel %vm289, %v278, %v344
    %v346 = vsel %vm224, %v282, %v345
    %v347 = vsel %vm292, %v340, %v346
    %348 = vrot.lane.b32.xlu0 %v347, 16
    %v349 = vpop.permute.xlu0 %348
    %v351 = vsel %vm91, %v293, %v335
    %v352 = vsel %vm94, %v351, %v349
    %v353 = vpack.c.bf16 %v352, %v352
    %v354 = vld [vmem:[%s3] sm:$0xf]
    %v355 = vld [vmem:[%s3 + $0x4] sm:$0xf]
    %v356 = vld [vmem:[%s3 + $0x8] sm:$0xf]
    %v357 = vld [vmem:[%s4] sm:$0x1]
    %v359 = vlaneseq
    %v360 = vshrl.u32 %v359, 7
    %v361 = vsub.s32 0, %v360
    %v362 = vrot.slane %v357, %v361
    %v367 = vunpack.c.l.b16 %v354
    %v368 = vunpack.c.l.b16 %v355
    %v369 = vunpack.c.l.b16 %v356
    %v370 = vpack.c.b16 %v368, %v367
    %v371 = vpack.c.b16 %v369, %v369
    %v374 = vsel %vm117, %v353, 0
    %v377 = vsel %vm121, %v371, 0
    %379 = vmatprep.subr.bf16.mxu0 0
    %380 = vmatpush1.bf16.msra.mxu0 0
    %381 = vmatprep.subr.bf16.mxu0 0
    %382 = vmatpush1.bf16.msra.mxu0 0
    %383 = vmatprep.subr.bf16.mxu0 0
    %384 = vmatpush1.bf16.msra.mxu0 0
    %385 = vmatprep.subr.bf16.mxu0 0
    %386 = vmatpush1.bf16.msra.mxu0 0
    %387 = vmatprep.subr.bf16.mxu0 0
    %388 = vmatpush1.bf16.msra.mxu0 0
    %389 = vmatprep.subr.bf16.mxu0 0
    %390 = vmatpush1.bf16.msra.mxu0 0
    %391 = vmatprep.subr.bf16.mxu0 0
    %392 = vmatpush1.bf16.msra.mxu0 %v377
    %393 = vmatprep.subr.bf16.mxu0 0
    %394 = vmatpush1.bf16.msra.mxu0 %v370
    %395 = vmatprep.subr.bf16.mxu0 0
    %396 = vmatpush2.bf16.msra.mxu0 0
    %397 = vmatprep.subr.bf16.mxu0 0
    %398 = vmatpush2.bf16.msra.mxu0 0
    %399 = vmatprep.subr.bf16.mxu0 0
    %400 = vmatpush2.bf16.msra.mxu0 0
    %401 = vmatprep.subr.bf16.mxu0 0
    %402 = vmatpush2.bf16.msra.mxu0 0
    %403 = vmatprep.subr.bf16.mxu0 0
    %404 = vmatpush2.bf16.msra.mxu0 0
    %405 = vmatprep.subr.bf16.mxu0 0
    %406 = vmatpush2.bf16.msra.mxu0 0
    %407 = vmatprep.subr.bf16.mxu0 0
    %408 = vmatpush2.bf16.msra.mxu0 0
    %409 = vmatprep.subr.bf16.mxu0 0
    %410 = vmatpush2.bf16.msra.mxu0 0
    %411 = vmatprep.mubr.bf16.mxu0 0
    %412 = vmatmul.mubr.bf16.gmra.mxu0 %v374
    %v413 = vpop.f32.mrf.mxu0
    %v414 = vadd.f32 %v362, %v413
    %v415 = vpop.f32.mrf.mxu0
    %v416 = vpop.f32.mrf.mxu0
    %v417 = vpop.f32.mrf.mxu0
    %418 = vdwg.mxu0
    %v419 = vmax.f32 %v414, 0.0
    %v420 = vcombine.high %v166, %v166
    %v422 = vunpack.c.l.s4 1983009808
    %v423 = vunpack.c.0.s8 %v422
    %v424 = vlaneseq
    %v425 = vshrl.u32 %v424, 7
    %v426 = vsub.s32 %v423, %v425
    %v427 = vrot.slane %v166, %v426
    %v429 = vunpack.c.l.s4 1983009808
    %v430 = vunpack.c.0.s8 %v429
    %v431 = vlaneseq
    %v432 = vshrl.u32 %v431, 7
    %v433 = vsub.s32 %v430, %v432
    %v434 = vrot.slane %v420, %v433
    %v435 = vcombine.high %v427, %v427
    %v436 = vcombine.high %v434, %v434
    %v437 = vcombine.high %v167, %v167
    %v439 = vunpack.c.l.s4 1983009808
    %v440 = vunpack.c.0.s8 %v439
    %v441 = vlaneseq
    %v442 = vshrl.u32 %v441, 7
    %v443 = vsub.s32 %v440, %v442
    %v444 = vrot.slane %v167, %v443
    %v446 = vunpack.c.l.s4 1983009808
    %v447 = vunpack.c.0.s8 %v446
    %v448 = vlaneseq
    %v449 = vshrl.u32 %v448, 7
    %v450 = vsub.s32 %v447, %v449
    %v451 = vrot.slane %v437, %v450
    %v452 = vcombine.high %v444, %v444
    %v453 = vcombine.high %v451, %v451
    %v454 = vlaneseq
    %v455 = vshrl.u32 %v454, 7
    %v456 = vsub.s32 0, %v455
    %v457 = vrot.slane %v427, %v456
    %v458 = vlaneseq
    %v459 = vshrl.u32 %v458, 7
    %v460 = vsub.s32 0, %v459
    %v461 = vrot.slane %v435, %v460
    %v462 = vlaneseq
    %v463 = vshrl.u32 %v462, 7
    %v464 = vsub.s32 0, %v463
    %v465 = vrot.slane %v434, %v464
    %v466 = vlaneseq
    %v467 = vshrl.u32 %v466, 7
    %v468 = vsub.s32 0, %v467
    %v469 = vrot.slane %v436, %v468
    %v470 = vlaneseq
    %v471 = vshrl.u32 %v470, 7
    %v472 = vsub.s32 0, %v471
    %v473 = vrot.slane %v444, %v472
    %v474 = vlaneseq
    %v475 = vshrl.u32 %v474, 7
    %v476 = vsub.s32 0, %v475
    %v477 = vrot.slane %v452, %v476
    %v478 = vlaneseq
    %v479 = vshrl.u32 %v478, 7
    %v480 = vsub.s32 0, %v479
    %v481 = vrot.slane %v451, %v480
    %v482 = vlaneseq
    %v483 = vshrl.u32 %v482, 7
    %v484 = vsub.s32 0, %v483
    %v485 = vrot.slane %v453, %v484
    %v486 = vsel %vm283, %v461, %v457
    %v487 = vsel %vm220, %v465, %v486
    %v488 = vsel %vm286, %v469, %v487
    %v489 = vsel %vm222, %v473, %v488
    %v490 = vsel %vm289, %v477, %v489
    %v491 = vsel %vm224, %v481, %v490
    %v492 = vsel %vm292, %v485, %v491
    %495 = vrot.lane.b32.xlu0 %v419, 8
    %v496 = vpop.permute.xlu0 %495
    %v498 = vsel %vm91, %v492, %v496
    %v500 = vrot.slane %v498, 7
    %v502 = vsel %vm56, 0.0, %v500
    %v503 = vsel %vm56, %v500, 0.0
    %v505 = vcombine.high %v502, %v502
    %v507 = vunpack.c.l.s4 1983009808
    %v508 = vunpack.c.0.s8 %v507
    %v509 = vlaneseq
    %v510 = vshrl.u32 %v509, 7
    %v511 = vsub.s32 %v508, %v510
    %v512 = vrot.slane %v502, %v511
    %v514 = vunpack.c.l.s4 1983009808
    %v515 = vunpack.c.0.s8 %v514
    %v516 = vlaneseq
    %v517 = vshrl.u32 %v516, 7
    %v518 = vsub.s32 %v515, %v517
    %v519 = vrot.slane %v505, %v518
    %v520 = vcombine.high %v512, %v512
    %v521 = vcombine.high %v519, %v519
    %v524 = vunpack.c.l.s4 1983009808
    %v525 = vunpack.c.0.s8 %v524
    %v526 = vlaneseq
    %v527 = vshrl.u32 %v526, 7
    %v528 = vsub.s32 %v525, %v527
    %v529 = vrot.slane %v503, %v528
    %v530 = vrot.slane %v512, 7
    %v531 = vrot.slane %v530, 2
    %v532 = vrot.slane %v520, 7
    %v533 = vsel %vm225, %v531, %v532
    %v534 = vrot.slane %v532, 2
    %v535 = vrot.slane %v519, 7
    %v536 = vsel %vm225, %v534, %v535
    %v537 = vrot.slane %v535, 2
    %v538 = vrot.slane %v521, 7
    %v539 = vsel %vm225, %v537, %v538
    %v540 = vrot.slane %v538, 2
    %v541 = vrot.slane %v529, 7
    %v542 = vsel %vm225, %v540, %v541
    %v543 = vlaneseq
    %v544 = vshrl.u32 %v543, 7
    %v545 = vsub.s32 0, %v544
    %v546 = vrot.slane %v512, %v545
    %v547 = vlaneseq
    %v548 = vshrl.u32 %v547, 7
    %v549 = vsub.s32 0, %v548
    %v550 = vrot.slane %v520, %v549
    %v551 = vlaneseq
    %v552 = vshrl.u32 %v551, 7
    %v553 = vsub.s32 0, %v552
    %v554 = vrot.slane %v519, %v553
    %v555 = vlaneseq
    %v556 = vshrl.u32 %v555, 7
    %v557 = vsub.s32 0, %v556
    %v558 = vrot.slane %v521, %v557
    %v559 = vsel %vm283, %v550, %v546
    %v560 = vsel %vm220, %v554, %v559
    %v561 = vsel %vm286, %v558, %v560
    %v563 = vlaneseq
    %v564 = vshrl.u32 %v563, 7
    %v565 = vsub.s32 0, %v564
    %v566 = vrot.slane %v533, %v565
    %v567 = vlaneseq
    %v568 = vshrl.u32 %v567, 7
    %v569 = vsub.s32 0, %v568
    %v570 = vrot.slane %v536, %v569
    %v571 = vlaneseq
    %v572 = vshrl.u32 %v571, 7
    %v573 = vsub.s32 0, %v572
    %v574 = vrot.slane %v539, %v573
    %v575 = vlaneseq
    %v576 = vshrl.u32 %v575, 7
    %v577 = vsub.s32 0, %v576
    %v578 = vrot.slane %v542, %v577
    %v579 = vsel %vm283, %v570, %v566
    %v580 = vsel %vm220, %v574, %v579
    %v581 = vsel %vm286, %v578, %v580
    %582 = vrot.lane.b32.xlu0 %v581, 24
    %v583 = vpop.permute.xlu0 %582
    %v585 = vlaneseq
    %v586 = vshrl.u32 %v585, 7
    %v587 = vsub.s32 0, %v586
    %v588 = vrot.slane %v529, %v587
    %v589 = vsel %vm283, %v554, %v550
    %v590 = vsel %vm220, %v558, %v589
    %v591 = vsel %vm286, %v588, %v590
    %592 = vrot.lane.b32.xlu0 %v591, 48
    %v593 = vpop.permute.xlu0 %592
    %v595 = vsel %vm117, %v561, %v583
    %vm596 = vcmask 392192
    %v597 = vsel %vm596, %v595, %v593
    %v598 = vpack.c.bf16 %v597, %v597
    %v599 = vld [vmem:[%s5] sm:$0xf]
    %v600 = vld [vmem:[%s5 + $0x4] sm:$0xf]
    %v601 = vld [vmem:[%s5 + $0x8] sm:$0xf]
    %v602 = vld [vmem:[%s5 + $0xc] sm:$0xf]
    %v603 = vld [vmem:[%s5 + $0x10] sm:$0xf]
    %v604 = vld [vmem:[%s5 + $0x14] sm:$0xf]
    %v605 = vld [vmem:[%s5 + $0x18] sm:$0xf]
    %v606 = vld [vmem:[%s5 + $0x1c] sm:$0xf]
    %v607 = vld [vmem:[%s5 + $0x20] sm:$0xf]
    %v608 = vld [vmem:[%s6] sm:$0x1]
    %v610 = vlaneseq
    %v611 = vshrl.u32 %v610, 7
    %v612 = vsub.s32 0, %v611
    %v613 = vrot.slane %v608, %v612
    %v624 = vunpack.c.l.b16 %v599
    %v625 = vunpack.c.l.b16 %v600
    %v626 = vunpack.c.l.b16 %v601
    %v627 = vunpack.c.l.b16 %v602
    %v628 = vunpack.c.l.b16 %v603
    %v629 = vunpack.c.l.b16 %v604
    %v630 = vunpack.c.l.b16 %v605
    %v631 = vunpack.c.l.b16 %v606
    %v632 = vunpack.c.l.b16 %v607
    %v633 = vpack.c.b16 %v625, %v624
    %v634 = vpack.c.b16 %v627, %v626
    %v635 = vpack.c.b16 %v629, %v628
    %v636 = vpack.c.b16 %v631, %v630
    %v637 = vpack.c.b16 %v632, %v632
    %vm642 = vcmask 588800
    %v644 = vsel %vm642, %v598, 0
    %v647 = vsel %vm121, %v637, 0
    %649 = vmatprep.subr.bf16.mxu0 0
    %650 = vmatpush1.bf16.msra.mxu0 0
    %651 = vmatprep.subr.bf16.mxu0 0
    %652 = vmatpush1.bf16.msra.mxu0 0
    %653 = vmatprep.subr.bf16.mxu0 0
    %654 = vmatpush1.bf16.msra.mxu0 0
    %655 = vmatprep.subr.bf16.mxu0 0
    %656 = vmatpush1.bf16.msra.mxu0 %v647
    %657 = vmatprep.subr.bf16.mxu0 0
    %658 = vmatpush1.bf16.msra.mxu0 %v636
    %659 = vmatprep.subr.bf16.mxu0 0
    %660 = vmatpush1.bf16.msra.mxu0 %v635
    %661 = vmatprep.subr.bf16.mxu0 0
    %662 = vmatpush1.bf16.msra.mxu0 %v634
    %663 = vmatprep.subr.bf16.mxu0 0
    %664 = vmatpush1.bf16.msra.mxu0 %v633
    %665 = vmatprep.subr.bf16.mxu0 0
    %666 = vmatpush2.bf16.msra.mxu0 0
    %667 = vmatprep.subr.bf16.mxu0 0
    %668 = vmatpush2.bf16.msra.mxu0 0
    %669 = vmatprep.subr.bf16.mxu0 0
    %670 = vmatpush2.bf16.msra.mxu0 0
    %671 = vmatprep.subr.bf16.mxu0 0
    %672 = vmatpush2.bf16.msra.mxu0 0
    %673 = vmatprep.subr.bf16.mxu0 0
    %674 = vmatpush2.bf16.msra.mxu0 0
    %675 = vmatprep.subr.bf16.mxu0 0
    %676 = vmatpush2.bf16.msra.mxu0 0
    %677 = vmatprep.subr.bf16.mxu0 0
    %678 = vmatpush2.bf16.msra.mxu0 0
    %679 = vmatprep.subr.bf16.mxu0 0
    %680 = vmatpush2.bf16.msra.mxu0 0
    %681 = vmatprep.mubr.bf16.mxu0 0
    %682 = vmatmul.mubr.bf16.gmra.mxu0 %v644
    %v683 = vpop.f32.mrf.mxu0
    %v684 = vadd.f32 %v613, %v683
    %v685 = vpop.f32.mrf.mxu0
    %v686 = vpop.f32.mrf.mxu0
    %v687 = vpop.f32.mrf.mxu0
    %688 = vdwg.mxu0
    %v689 = vmax.f32 %v684, 0.0
    %v690 = vcombine.high %v419, %v419
    %v692 = vunpack.c.l.s4 1983009808
    %v693 = vunpack.c.0.s8 %v692
    %v694 = vlaneseq
    %v695 = vshrl.u32 %v694, 7
    %v696 = vsub.s32 %v693, %v695
    %v697 = vrot.slane %v419, %v696
    %v699 = vunpack.c.l.s4 1983009808
    %v700 = vunpack.c.0.s8 %v699
    %v701 = vlaneseq
    %v702 = vshrl.u32 %v701, 7
    %v703 = vsub.s32 %v700, %v702
    %v704 = vrot.slane %v690, %v703
    %v705 = vcombine.high %v697, %v697
    %v706 = vcombine.high %v704, %v704
    %v707 = vlaneseq
    %v708 = vshrl.u32 %v707, 7
    %v709 = vsub.s32 0, %v708
    %v710 = vrot.slane %v166, %v709
    %v711 = vlaneseq
    %v712 = vshrl.u32 %v711, 7
    %v713 = vsub.s32 0, %v712
    %v714 = vrot.slane %v420, %v713
    %v715 = vlaneseq
    %v716 = vshrl.u32 %v715, 7
    %v717 = vsub.s32 0, %v716
    %v718 = vrot.slane %v167, %v717
    %v719 = vlaneseq
    %v720 = vshrl.u32 %v719, 7
    %v721 = vsub.s32 0, %v720
    %v722 = vrot.slane %v437, %v721
    %v723 = vsel %vm283, %v714, %v710
    %v724 = vsel %vm220, %v718, %v723
    %v725 = vsel %vm286, %v722, %v724
    %v727 = vlaneseq
    %v728 = vshrl.u32 %v727, 7
    %v729 = vsub.s32 0, %v728
    %v730 = vrot.slane %v697, %v729
    %v731 = vlaneseq
    %v732 = vshrl.u32 %v731, 7
    %v733 = vsub.s32 0, %v732
    %v734 = vrot.slane %v705, %v733
    %v735 = vlaneseq
    %v736 = vshrl.u32 %v735, 7
    %v737 = vsub.s32 0, %v736
    %v738 = vrot.slane %v704, %v737
    %v739 = vlaneseq
    %v740 = vshrl.u32 %v739, 7
    %v741 = vsub.s32 0, %v740
    %v742 = vrot.slane %v706, %v741
    %v743 = vsel %vm283, %v734, %v730
    %v744 = vsel %vm220, %v738, %v743
    %v745 = vsel %vm286, %v742, %v744
    %746 = vrot.lane.b32.xlu0 %v745, 8
    %v747 = vpop.permute.xlu0 %746
    %750 = vrot.lane.b32.xlu0 %v689, 24
    %v751 = vpop.permute.xlu0 %750
    %v753 = vsel %vm91, %v725, %v747
    %v754 = vsel %vm117, %v753, %v751
    %v757 = vunpack.c.l.s4 1966171168
    %v758 = vunpack.c.0.s8 %v757
    %v759 = vlaneseq
    %v760 = vshrl.u32 %v759, 7
    %v761 = vsub.s32 %v758, %v760
    %v762 = vrot.slane %v754, %v761
    %v763 = vcombine.high %v762, %v762
    %v765 = vunpack.c.l.s4 1966171168
    %v766 = vunpack.c.0.s8 %v765
    %v767 = vlaneseq
    %v768 = vshrl.u32 %v767, 7
    %v769 = vsub.s32 %v766, %v768
    %v770 = vrot.slane %v762, %v769
    %v772 = vunpack.c.l.s4 1966171168
    %v773 = vunpack.c.0.s8 %v772
    %v774 = vlaneseq
    %v775 = vshrl.u32 %v774, 7
    %v776 = vsub.s32 %v773, %v775
    %v777 = vrot.slane %v763, %v776
    %v778 = vcombine.high %v770, %v770
    %v779 = vcombine.high %v777, %v777
    %v780 = vlaneseq
    %v781 = vshrl.u32 %v780, 7
    %v782 = vsub.s32 0, %v781
    %v783 = vrot.slane %v770, %v782
    %v784 = vlaneseq
    %v785 = vshrl.u32 %v784, 7
    %v786 = vsub.s32 0, %v785
    %v787 = vrot.slane %v777, %v786
    %v788 = vlaneseq
    %v789 = vshrl.u32 %v788, 7
    %v790 = vsub.s32 0, %v789
    %v791 = vrot.slane %v778, %v790
    %v792 = vlaneseq
    %v793 = vshrl.u32 %v792, 7
    %v794 = vsub.s32 0, %v793
    %v795 = vrot.slane %v779, %v794
    %v796 = vcombine.low %v783, %v787
    %v797 = vcombine.low %v791, %v795
    %v799 = vunpack.c.l.s4 1983009808
    %v800 = vunpack.c.0.s8 %v799
    %v801 = vlaneseq
    %v802 = vshrl.u32 %v801, 7
    %v803 = vsub.s32 %v800, %v802
    %v804 = vrot.slane %v796, %v803
    %v806 = vunpack.c.l.s4 1983009808
    %v807 = vunpack.c.0.s8 %v806
    %v808 = vlaneseq
    %v809 = vshrl.u32 %v808, 7
    %v810 = vsub.s32 %v807, %v809
    %v811 = vrot.slane %v797, %v810
    %v812 = vcombine.low %v804, %v811
    %v813 = vrot.slane %v812, 7
    %v815 = vsel %vm56, 0.0, %v813
    %v816 = vsel %vm56, %v813, 0.0
    %v819 = vrot.slane %v815, 1
    %v820 = vrot.slane %v816, 1
    %v821 = vsel %vm67, %v819, %v820
    %822 = vrot.lane.b32.xlu0 %v821, 56
    %v823 = vpop.permute.xlu0 %822
    %v825 = vrot.slane %v815, 2
    %v826 = vrot.slane %v816, 2
    %v827 = vsel %vm79, %v825, %v826
    %828 = vrot.lane.b32.xlu0 %v827, 112
    %v829 = vpop.permute.xlu0 %828
    %vm831 = vcmask 457728
    %v832 = vsel %vm831, %v815, %v823
    %vm833 = vcmask 916480
    %v834 = vsel %vm833, %v832, %v829
    %v835 = vpack.c.bf16 %v834, %v834
    %v836 = vpack.c.bf16 %v829, %v829
    %v837 = vld [vmem:[%s7] sm:$0xf]
    %v838 = vld [vmem:[%s7 + $0x4] sm:$0xf]
    %v839 = vld [vmem:[%s7 + $0x8] sm:$0xf]
    %v840 = vld [vmem:[%s7 + $0xc] sm:$0xf]
    %v841 = vld [vmem:[%s7 + $0x10] sm:$0xf]
    %v842 = vld [vmem:[%s7 + $0x14] sm:$0xf]
    %v843 = vld [vmem:[%s7 + $0x18] sm:$0xf]
    %v844 = vld [vmem:[%s7 + $0x1c] sm:$0xf]
    %v845 = vld [vmem:[%s7 + $0x20] sm:$0xf]
    %v846 = vld [vmem:[%s7 + $0x24] sm:$0xf]
    %v847 = vld [vmem:[%s7 + $0x28] sm:$0xf]
    %v848 = vld [vmem:[%s7 + $0x2c] sm:$0xf]
    %v849 = vld [vmem:[%s7 + $0x30] sm:$0xf]
    %v850 = vld [vmem:[%s7 + $0x34] sm:$0xf]
    %v851 = vld [vmem:[%s7 + $0x38] sm:$0xf]
    %v852 = vld [vmem:[%s7 + $0x3c] sm:$0xf]
    %v853 = vld [vmem:[%s7 + $0x40] sm:$0xf]
    %v854 = vld [vmem:[%s7 + $0x44] sm:$0xf]
    %v855 = vld [vmem:[%s7 + $0x48] sm:$0xf]
    %v856 = vld [vmem:[%s7 + $0x4c] sm:$0xf]
    %v857 = vld [vmem:[%s7 + $0x50] sm:$0xf]
    %v858 = vld [vmem:[%s8] sm:$0x1]
    %v860 = vlaneseq
    %v861 = vshrl.u32 %v860, 7
    %v862 = vsub.s32 0, %v861
    %v863 = vrot.slane %v858, %v862
    %v886 = vunpack.c.l.b16 %v837
    %v887 = vunpack.c.l.b16 %v838
    %v888 = vunpack.c.l.b16 %v839
    %v889 = vunpack.c.l.b16 %v840
    %v890 = vunpack.c.l.b16 %v841
    %v891 = vunpack.c.l.b16 %v842
    %v892 = vunpack.c.l.b16 %v843
    %v893 = vunpack.c.l.b16 %v844
    %v894 = vunpack.c.l.b16 %v845
    %v895 = vunpack.c.l.b16 %v846
    %v896 = vunpack.c.l.b16 %v847
    %v897 = vunpack.c.l.b16 %v848
    %v898 = vunpack.c.l.b16 %v849
    %v899 = vunpack.c.l.b16 %v850
    %v900 = vunpack.c.l.b16 %v851
    %v901 = vunpack.c.l.b16 %v852
    %v902 = vunpack.c.l.b16 %v853
    %v903 = vunpack.c.l.b16 %v854
    %v904 = vunpack.c.l.b16 %v855
    %v905 = vunpack.c.l.b16 %v856
    %v906 = vunpack.c.l.b16 %v857
    %v907 = vpack.c.b16 %v887, %v886
    %v908 = vpack.c.b16 %v889, %v888
    %v909 = vpack.c.b16 %v891, %v890
    %v910 = vpack.c.b16 %v893, %v892
    %v911 = vpack.c.b16 %v895, %v894
    %v912 = vpack.c.b16 %v897, %v896
    %v913 = vpack.c.b16 %v899, %v898
    %v914 = vpack.c.b16 %v901, %v900
    %v915 = vpack.c.b16 %v903, %v902
    %v916 = vpack.c.b16 %v905, %v904
    %v917 = vpack.c.b16 %v906, %v906
    %vm928 = vcmask 326656
    %v930 = vsel %vm928, %v836, 0
    %v933 = vsel %vm121, %v917, 0
    %935 = vmatprep.subr.bf16.mxu0 0
    %936 = vmatpush1.bf16.msra.mxu0 %v914
    %937 = vmatprep.subr.bf16.mxu0 0
    %938 = vmatpush1.bf16.msra.mxu0 %v913
    %939 = vmatprep.subr.bf16.mxu0 0
    %940 = vmatpush1.bf16.msra.mxu0 %v912
    %941 = vmatprep.subr.bf16.mxu0 0
    %942 = vmatpush1.bf16.msra.mxu0 %v911
    %943 = vmatprep.subr.bf16.mxu0 0
    %944 = vmatpush1.bf16.msra.mxu0 %v910
    %945 = vmatprep.subr.bf16.mxu0 0
    %946 = vmatpush1.bf16.msra.mxu0 %v909
    %947 = vmatprep.subr.bf16.mxu0 0
    %948 = vmatpush1.bf16.msra.mxu0 %v908
    %949 = vmatprep.subr.bf16.mxu0 0
    %950 = vmatpush1.bf16.msra.mxu0 %v907
    %951 = vmatprep.subr.bf16.mxu0 0
    %952 = vmatpush2.bf16.msra.mxu0 0
    %953 = vmatprep.subr.bf16.mxu0 0
    %954 = vmatpush2.bf16.msra.mxu0 0
    %955 = vmatprep.subr.bf16.mxu0 0
    %956 = vmatpush2.bf16.msra.mxu0 0
    %957 = vmatprep.subr.bf16.mxu0 0
    %958 = vmatpush2.bf16.msra.mxu0 0
    %959 = vmatprep.subr.bf16.mxu0 0
    %960 = vmatpush2.bf16.msra.mxu0 0
    %961 = vmatprep.subr.bf16.mxu0 0
    %962 = vmatpush2.bf16.msra.mxu0 %v933
    %963 = vmatprep.subr.bf16.mxu0 0
    %964 = vmatpush2.bf16.msra.mxu0 %v916
    %965 = vmatprep.subr.bf16.mxu0 0
    %966 = vmatpush2.bf16.msra.mxu0 %v915
    %967 = vmatprep.mubr.bf16.mxu0 %v930
    %968 = vmatmul.mubr.bf16.gmra.mxu0 %v835
    %v969 = vpop.f32.mrf.mxu0
    %v970 = vadd.f32 %v863, %v969
    %v971 = vpop.f32.mrf.mxu0
    %v972 = vpop.f32.mrf.mxu0
    %v973 = vpop.f32.mrf.mxu0
    %974 = vdwg.mxu0
    %v975 = vmax.f32 %v970, 0.0
    %v977 = vunpack.c.l.s4 1966171168
    %v978 = vunpack.c.0.s8 %v977
    %v979 = vlaneseq
    %v980 = vshrl.u32 %v979, 7
    %v981 = vsub.s32 %v978, %v980
    %v982 = vrot.slane %v689, %v981
    %v983 = vcombine.high %v982, %v982
    %v985 = vunpack.c.l.s4 1966171168
    %v986 = vunpack.c.0.s8 %v985
    %v987 = vlaneseq
    %v988 = vshrl.u32 %v987, 7
    %v989 = vsub.s32 %v986, %v988
    %v990 = vrot.slane %v982, %v989
    %v992 = vunpack.c.l.s4 1966171168
    %v993 = vunpack.c.0.s8 %v992
    %v994 = vlaneseq
    %v995 = vshrl.u32 %v994, 7
    %v996 = vsub.s32 %v993, %v995
    %v997 = vrot.slane %v983, %v996
    %v998 = vcombine.high %v990, %v990
    %v999 = vcombine.high %v997, %v997
    %v1000 = vlaneseq
    %v1001 = vshrl.u32 %v1000, 7
    %v1002 = vsub.s32 0, %v1001
    %v1003 = vrot.slane %v990, %v1002
    %v1004 = vlaneseq
    %v1005 = vshrl.u32 %v1004, 7
    %v1006 = vsub.s32 0, %v1005
    %v1007 = vrot.slane %v997, %v1006
    %v1008 = vlaneseq
    %v1009 = vshrl.u32 %v1008, 7
    %v1010 = vsub.s32 0, %v1009
    %v1011 = vrot.slane %v998, %v1010
    %v1012 = vlaneseq
    %v1013 = vshrl.u32 %v1012, 7
    %v1014 = vsub.s32 0, %v1013
    %v1015 = vrot.slane %v999, %v1014
    %v1016 = vcombine.low %v1003, %v1007
    %v1017 = vcombine.low %v1011, %v1015
    %v1019 = vunpack.c.l.s4 1983009808
    %v1020 = vunpack.c.0.s8 %v1019
    %v1021 = vlaneseq
    %v1022 = vshrl.u32 %v1021, 7
    %v1023 = vsub.s32 %v1020, %v1022
    %v1024 = vrot.slane %v1016, %v1023
    %v1026 = vunpack.c.l.s4 1983009808
    %v1027 = vunpack.c.0.s8 %v1026
    %v1028 = vlaneseq
    %v1029 = vshrl.u32 %v1028, 7
    %v1030 = vsub.s32 %v1027, %v1029
    %v1031 = vrot.slane %v1017, %v1030
    %v1032 = vcombine.low %v1024, %v1031
    %1033 = vrot.lane.b32.xlu0 %v1032, 24
    %v1034 = vpop.permute.xlu0 %1033
    %1037 = vrot.lane.b32.xlu0 %v975, 56
    %v1038 = vpop.permute.xlu0 %1037
    %v1040 = vsel %vm117, %v498, %v1034
    %v1041 = vsel %vm831, %v1040, %v1038
    %v1043 = vrot.slane %v1041, 7
    %v1045 = vsel %vm56, 0.0, %v1043
    %v1046 = vsel %vm56, %v1043, 0.0
    %v1049 = vrot.slane %v1045, 1
    %v1050 = vrot.slane %v1046, 1
    %v1051 = vsel %vm67, %v1049, %v1050
    %1052 = vrot.lane.b32.xlu0 %v1051, 72
    %v1053 = vpop.permute.xlu0 %1052
    %v1055 = vrot.slane %v1045, 2
    %v1056 = vrot.slane %v1046, 2
    %v1057 = vsel %vm79, %v1055, %v1056
    %1058 = vrot.lane.b32.xlu0 %v1057, 16
    %v1059 = vpop.permute.xlu0 %1058
    %v1061 = vsel %vm642, %v1045, %v1053
    %v1062 = vsel %vm94, %v1053, %v1059
    %v1063 = vpack.c.bf16 %v1061, %v1061
    %v1064 = vpack.c.bf16 %v1062, %v1062
    %v1065 = vld [vmem:[%s9] sm:$0xf]
    %v1066 = vld [vmem:[%s9 + $0x4] sm:$0xf]
    %v1067 = vld [vmem:[%s9 + $0x8] sm:$0xf]
    %v1068 = vld [vmem:[%s9 + $0xc] sm:$0xf]
    %v1069 = vld [vmem:[%s9 + $0x10] sm:$0xf]
    %v1070 = vld [vmem:[%s9 + $0x14] sm:$0xf]
    %v1071 = vld [vmem:[%s9 + $0x18] sm:$0xf]
    %v1072 = vld [vmem:[%s9 + $0x1c] sm:$0xf]
    %v1073 = vld [vmem:[%s9 + $0x20] sm:$0xf]
    %v1074 = vld [vmem:[%s9 + $0x24] sm:$0xf]
    %v1075 = vld [vmem:[%s9 + $0x28] sm:$0xf]
    %v1076 = vld [vmem:[%s9 + $0x2c] sm:$0xf]
    %v1077 = vld [vmem:[%s9 + $0x30] sm:$0xf]
    %v1078 = vld [vmem:[%s9 + $0x34] sm:$0xf]
    %v1079 = vld [vmem:[%s9 + $0x38] sm:$0xf]
    %v1080 = vld [vmem:[%s9 + $0x3c] sm:$0xf]
    %v1081 = vld [vmem:[%s9 + $0x40] sm:$0xf]
    %v1082 = vld [vmem:[%s9 + $0x44] sm:$0xf]
    %v1083 = vld [vmem:[%s9 + $0x48] sm:$0xf]
    %v1084 = vld [vmem:[%s9 + $0x4c] sm:$0xf]
    %v1085 = vld [vmem:[%s9 + $0x50] sm:$0xf]
    %v1086 = vld [vmem:[%s9 + $0x54] sm:$0xf]
    %v1087 = vld [vmem:[%s9 + $0x58] sm:$0xf]
    %v1088 = vld [vmem:[%s9 + $0x5c] sm:$0xf]
    %v1089 = vld [vmem:[%s9 + $0x60] sm:$0xf]
    %v1090 = vld [vmem:[%s9 + $0x64] sm:$0xf]
    %v1091 = vld [vmem:[%s9 + $0x68] sm:$0xf]
    %v1092 = vld [vmem:[%s10] sm:$0x1]
    %v1094 = vlaneseq
    %v1095 = vshrl.u32 %v1094, 7
    %v1096 = vsub.s32 0, %v1095
    %v1097 = vrot.slane %v1092, %v1096
    %v1126 = vunpack.c.l.b16 %v1065
    %v1127 = vunpack.c.l.b16 %v1066
    %v1128 = vunpack.c.l.b16 %v1067
    %v1129 = vunpack.c.l.b16 %v1068
    %v1130 = vunpack.c.l.b16 %v1069
    %v1131 = vunpack.c.l.b16 %v1070
    %v1132 = vunpack.c.l.b16 %v1071
    %v1133 = vunpack.c.l.b16 %v1072
    %v1134 = vunpack.c.l.b16 %v1073
    %v1135 = vunpack.c.l.b16 %v1074
    %v1136 = vunpack.c.l.b16 %v1075
    %v1137 = vunpack.c.l.b16 %v1076
    %v1138 = vunpack.c.l.b16 %v1077
    %v1139 = vunpack.c.l.b16 %v1078
    %v1140 = vunpack.c.l.b16 %v1079
    %v1141 = vunpack.c.l.b16 %v1080
    %v1142 = vunpack.c.l.b16 %v1081
    %v1143 = vunpack.c.l.b16 %v1082
    %v1144 = vunpack.c.l.b16 %v1083
    %v1145 = vunpack.c.l.b16 %v1084
    %v1146 = vunpack.c.l.b16 %v1085
    %v1147 = vunpack.c.l.b16 %v1086
    %v1148 = vunpack.c.l.b16 %v1087
    %v1149 = vunpack.c.l.b16 %v1088
    %v1150 = vunpack.c.l.b16 %v1089
    %v1151 = vunpack.c.l.b16 %v1090
    %v1152 = vunpack.c.l.b16 %v1091
    %v1153 = vpack.c.b16 %v1127, %v1126
    %v1154 = vpack.c.b16 %v1129, %v1128
    %v1155 = vpack.c.b16 %v1131, %v1130
    %v1156 = vpack.c.b16 %v1133, %v1132
    %v1157 = vpack.c.b16 %v1135, %v1134
    %v1158 = vpack.c.b16 %v1137, %v1136
    %v1159 = vpack.c.b16 %v1139, %v1138
    %v1160 = vpack.c.b16 %v1141, %v1140
    %v1161 = vpack.c.b16 %v1143, %v1142
    %v1162 = vpack.c.b16 %v1145, %v1144
    %v1163 = vpack.c.b16 %v1147, %v1146
    %v1164 = vpack.c.b16 %v1149, %v1148
    %v1165 = vpack.c.b16 %v1151, %v1150
    %v1166 = vpack.c.b16 %v1152, %v1152
    %vm1180 = vcmask 719872
    %v1182 = vsel %vm1180, %v1064, 0
    %v1185 = vsel %vm121, %v1166, 0
    %1187 = vmatprep.subr.bf16.mxu0 0
    %1188 = vmatpush1.bf16.msra.mxu0 %v1160
    %1189 = vmatprep.subr.bf16.mxu0 0
    %1190 = vmatpush1.bf16.msra.mxu0 %v1159
    %1191 = vmatprep.subr.bf16.mxu0 0
    %1192 = vmatpush1.bf16.msra.mxu0 %v1158
    %1193 = vmatprep.subr.bf16.mxu0 0
    %1194 = vmatpush1.bf16.msra.mxu0 %v1157
    %1195 = vmatprep.subr.bf16.mxu0 0
    %1196 = vmatpush1.bf16.msra.mxu0 %v1156
    %1197 = vmatprep.subr.bf16.mxu0 0
    %1198 = vmatpush1.bf16.msra.mxu0 %v1155
    %1199 = vmatprep.subr.bf16.mxu0 0
    %1200 = vmatpush1.bf16.msra.mxu0 %v1154
    %1201 = vmatprep.subr.bf16.mxu0 0
    %1202 = vmatpush1.bf16.msra.mxu0 %v1153
    %1203 = vmatprep.subr.bf16.mxu0 0
    %1204 = vmatpush2.bf16.msra.mxu0 0
    %1205 = vmatprep.subr.bf16.mxu0 0
    %1206 = vmatpush2.bf16.msra.mxu0 0
    %1207 = vmatprep.subr.bf16.mxu0 0
    %1208 = vmatpush2.bf16.msra.mxu0 %v1185
    %1209 = vmatprep.subr.bf16.mxu0 0
    %1210 = vmatpush2.bf16.msra.mxu0 %v1165
    %1211 = vmatprep.subr.bf16.mxu0 0
    %1212 = vmatpush2.bf16.msra.mxu0 %v1164
    %1213 = vmatprep.subr.bf16.mxu0 0
    %1214 = vmatpush2.bf16.msra.mxu0 %v1163
    %1215 = vmatprep.subr.bf16.mxu0 0
    %1216 = vmatpush2.bf16.msra.mxu0 %v1162
    %1217 = vmatprep.subr.bf16.mxu0 0
    %1218 = vmatpush2.bf16.msra.mxu0 %v1161
    %1219 = vmatprep.mubr.bf16.mxu0 %v1182
    %1220 = vmatmul.mubr.bf16.gmra.mxu0 %v1063
    %v1221 = vpop.f32.mrf.mxu0
    %v1222 = vadd.f32 %v1097, %v1221
    %v1223 = vpop.f32.mrf.mxu0
    %v1224 = vpop.f32.mrf.mxu0
    %v1225 = vpop.f32.mrf.mxu0
    %1226 = vdwg.mxu0
    %v1227 = vmax.f32 %v1222, 0.0
    %v1229 = vrot.slane %v1227, 7
    %v1231 = vsel %vm56, 0.0, %v1229
    %v1232 = vsel %vm56, %v1229, 0.0
    %v1235 = vrot.slane %v1231, 1
    %v1236 = vrot.slane %v1232, 1
    %v1237 = vsel %vm67, %v1235, %v1236
    %1238 = vrot.lane.b32.xlu0 %v1237, 8
    %v1239 = vpop.permute.xlu0 %1238
    %v1241 = vrot.slane %v1231, 2
    %v1242 = vrot.slane %v1232, 2
    %v1243 = vsel %vm79, %v1241, %v1242
    %1244 = vrot.lane.b32.xlu0 %v1243, 16
    %v1245 = vpop.permute.xlu0 %1244
    %v1247 = vsel %vm91, %v1231, %v1239
    %v1248 = vsel %vm94, %v1247, %v1245
    %v1249 = vpack.c.bf16 %v1248, %v1248
    %v1250 = vld [vmem:[%s11] sm:$0xf]
    %v1251 = vld [vmem:[%s11 + $0x4] sm:$0xf]
    %v1252 = vld [vmem:[%s11 + $0x8] sm:$0xf]
    %v1253 = vld [vmem:[%s12] sm:$0x1]
    %v1255 = vlaneseq
    %v1256 = vshrl.u32 %v1255, 7
    %v1257 = vsub.s32 0, %v1256
    %v1258 = vrot.slane %v1253, %v1257
    %v1263 = vunpack.c.l.b16 %v1250
    %v1264 = vunpack.c.l.b16 %v1251
    %v1265 = vunpack.c.l.b16 %v1252
    %v1266 = vpack.c.b16 %v1264, %v1263
    %v1267 = vpack.c.b16 %v1265, %v1265
    %v1270 = vsel %vm117, %v1249, 0
    %v1273 = vsel %vm121, %v1267, 0
    %1275 = vmatprep.subr.bf16.mxu0 0
    %1276 = vmatpush1.bf16.msra.mxu0 0
    %1277 = vmatprep.subr.bf16.mxu0 0
    %1278 = vmatpush1.bf16.msra.mxu0 0
    %1279 = vmatprep.subr.bf16.mxu0 0
    %1280 = vmatpush1.bf16.msra.mxu0 0
    %1281 = vmatprep.subr.bf16.mxu0 0
    %1282 = vmatpush1.bf16.msra.mxu0 0
    %1283 = vmatprep.subr.bf16.mxu0 0
    %1284 = vmatpush1.bf16.msra.mxu0 0
    %1285 = vmatprep.subr.bf16.mxu0 0
    %1286 = vmatpush1.bf16.msra.mxu0 0
    %1287 = vmatprep.subr.bf16.mxu0 0
    %1288 = vmatpush1.bf16.msra.mxu0 %v1273
    %1289 = vmatprep.subr.bf16.mxu0 0
    %1290 = vmatpush1.bf16.msra.mxu0 %v1266
    %1291 = vmatprep.subr.bf16.mxu0 0
    %1292 = vmatpush2.bf16.msra.mxu0 0
    %1293 = vmatprep.subr.bf16.mxu0 0
    %1294 = vmatpush2.bf16.msra.mxu0 0
    %1295 = vmatprep.subr.bf16.mxu0 0
    %1296 = vmatpush2.bf16.msra.mxu0 0
    %1297 = vmatprep.subr.bf16.mxu0 0
    %1298 = vmatpush2.bf16.msra.mxu0 0
    %1299 = vmatprep.subr.bf16.mxu0 0
    %1300 = vmatpush2.bf16.msra.mxu0 0
    %1301 = vmatprep.subr.bf16.mxu0 0
    %1302 = vmatpush2.bf16.msra.mxu0 0
    %1303 = vmatprep.subr.bf16.mxu0 0
    %1304 = vmatpush2.bf16.msra.mxu0 0
    %1305 = vmatprep.subr.bf16.mxu0 0
    %1306 = vmatpush2.bf16.msra.mxu0 0
    %1307 = vmatprep.mubr.bf16.mxu0 0
    %1308 = vmatmul.mubr.bf16.gmra.mxu0 %v1270
    %v1309 = vpop.f32.mrf.mxu0
    %v1310 = vadd.f32 %v1258, %v1309
    %v1311 = vpop.f32.mrf.mxu0
    %v1312 = vpop.f32.mrf.mxu0
    %v1313 = vpop.f32.mrf.mxu0
    %1314 = vdwg.mxu0
    %v1315 = vmax.f32 %v1310, 0.0
    %v1316 = vpack.c.bf16 %v1315, %v1315
    %v1317 = vld [vmem:[%s13] sm:$0xf]
    %v1318 = vld [vmem:[%s14] sm:$0x1]
    %v1320 = vlaneseq
    %v1321 = vshrl.u32 %v1320, 7
    %v1322 = vsub.s32 0, %v1321
    %v1323 = vrot.slane %v1318, %v1322
    %v1326 = vsel %vm91, %v1316, 0
    %v1329 = vsel %vm121, %v1317, 0
    %1331 = vmatprep.subr.bf16.mxu0 0
    %1332 = vmatpush1.bf16.msra.mxu0 0
    %1333 = vmatprep.subr.bf16.mxu0 0
    %1334 = vmatpush1.bf16.msra.mxu0 0
    %1335 = vmatprep.subr.bf16.mxu0 0
    %1336 = vmatpush1.bf16.msra.mxu0 0
    %1337 = vmatprep.subr.bf16.mxu0 0
    %1338 = vmatpush1.bf16.msra.mxu0 0
    %1339 = vmatprep.subr.bf16.mxu0 0
    %1340 = vmatpush1.bf16.msra.mxu0 0
    %1341 = vmatprep.subr.bf16.mxu0 0
    %1342 = vmatpush1.bf16.msra.mxu0 0
    %1343 = vmatprep.subr.bf16.mxu0 0
    %1344 = vmatpush1.bf16.msra.mxu0 0
    %1345 = vmatprep.subr.bf16.mxu0 0
    %1346 = vmatpush1.bf16.msra.mxu0 %v1329
    %1347 = vmatprep.subr.bf16.mxu0 0
    %1348 = vmatpush2.bf16.msra.mxu0 0
    %1349 = vmatprep.subr.bf16.mxu0 0
    %1350 = vmatpush2.bf16.msra.mxu0 0
    %1351 = vmatprep.subr.bf16.mxu0 0
    %1352 = vmatpush2.bf16.msra.mxu0 0
    %1353 = vmatprep.subr.bf16.mxu0 0
    %1354 = vmatpush2.bf16.msra.mxu0 0
    %1355 = vmatprep.subr.bf16.mxu0 0
    %1356 = vmatpush2.bf16.msra.mxu0 0
    %1357 = vmatprep.subr.bf16.mxu0 0
    %1358 = vmatpush2.bf16.msra.mxu0 0
    %1359 = vmatprep.subr.bf16.mxu0 0
    %1360 = vmatpush2.bf16.msra.mxu0 0
    %1361 = vmatprep.subr.bf16.mxu0 0
    %1362 = vmatpush2.bf16.msra.mxu0 0
    %1363 = vmatprep.mubr.bf16.mxu0 0
    %1364 = vmatmul.mubr.bf16.gmra.mxu0 %v1326
    %v1365 = vpop.f32.mrf.mxu0
    %v1366 = vadd.f32 %v1323, %v1365
    %v1367 = vpop.f32.mrf.mxu0
    %v1368 = vpop.f32.mrf.mxu0
    %v1369 = vpop.f32.mrf.mxu0
    %1370 = vdwg.mxu0
    %1371 = vst.msk [vmem:[#allocation2] sm:$0xff] %vm91, %v1366
    // Predicated region
    $region62: #{tpu_custom_call.1} parent=1 // pred_check
      _
    $region63: #{tpu_custom_call.1} parent=1 // pred_check_branch
      %1373 = sbr.rel (0) target = $region65
    $region64: #{tpu_custom_call.1} parent=1 // pred_region
      %s1375 = ssub.s32 128, 128
      %1376 = vsyncadd [#allocation3], %s1375
      %s1378 = sshll.u32 [#allocation2], 4
      %s1379 = int_to_ptr.vmem [resolvable:$true] %s1378
      %1381 = dma.vmem_to_hbm [thread:$0]  %s1379, 128, %s15, [#allocation3]
    $region65: #{tpu_custom_call.1} parent=1 // pred_fallthru
      _
    // Predicated region
    $region66: #{tpu_custom_call.1} parent=1 // pred_check
      _
    $region67: #{tpu_custom_call.1} parent=1 // pred_check_branch
      %1383 = sbr.rel (0) target = $region69
    $region68: #{tpu_custom_call.1} parent=1 // pred_region
      %1384 = dma.done [#allocation3], 128
    $region69: #{tpu_custom_call.1} parent=1 // pred_fallthru
      _
    %1385 = vsyncpa [#allocation3], 1

</llo_original>
